<compile_context>
chip_gen: v7x
topology: tpu7x:2x2x1
jax: 0.10.0
libtpu: 0.0.40
codegen_flags: <defaults>
</compile_context>

<pallas_src>
import functools
import math

import jax
import jax.numpy as jnp
from jax.experimental import pallas as pl
from jax.experimental.pallas import tpu as pltpu

# ----------------------- small, module-consistent config -----------------------
IMG_SIZE = 16          # img_size
PATCH_SIZE = 8         # patch_size
CHANNELS = 3           # patch_dim = 3 * patch_size**2 in the module => channels must be 3
NUM_CLASSES = 3
DIM = 32               # model dim
DEPTH = 2              # encoder layers
HEADS = 4
MLP_DIM = 64
LN_EPS = 1e-5          # PyTorch LayerNorm default

HEAD_DIM = DIM // HEADS
NUM_PATCHES = (IMG_SIZE // PATCH_SIZE) ** 2      # 4
SEQ = NUM_PATCHES + 1                            # 5 (cls + patches)
PATCH_DIM = CHANNELS * PATCH_SIZE * PATCH_SIZE   # 192

LAYER_PARAM_ORDER = (
    "in_proj_w", "in_proj_b", "out_proj_w", "out_proj_b",
    "ln1_g", "ln1_b", "lin1_w", "lin1_b", "lin2_w", "lin2_b",
    "ln2_g", "ln2_b")
PARAMS_PER_LAYER = len(LAYER_PARAM_ORDER)


# ------------------------------- fused kernel ----------------------------------

def _layernorm(x, g, b):
    """LayerNorm over the last dim (biased variance, PyTorch semantics)."""
    mu = jnp.mean(x, axis=-1, keepdims=True)
    xc = x - mu
    var = jnp.mean(xc * xc, axis=-1, keepdims=True)
    return xc * jax.lax.rsqrt(var + LN_EPS) * g + b


def _vit_kernel(patches_ref, patch_w_ref, patch_b_ref, cls_ref, pos_ref,
                hsum_ref, hbc_ref, *rest, batch):
    """Whole ViT forward.  Everything stays in VMEM; only out_ref hits HBM."""
    n_layer_refs = DEPTH * PARAMS_PER_LAYER
    layer_refs = rest[:n_layer_refs]
    (head_g_ref, head_b_ref, head_w_ref, head_bias_ref,
     out_ref, buf_ref) = rest[n_layer_refs:]

    L = batch          # axis PyTorch's seq-first encoder attends over (= batch here)
    N = SEQ            # treated as the "batch" axis by the encoder
    E = DIM
    scale = 1.0 / math.sqrt(HEAD_DIM)

    # --- patch embedding + cls token + positional embedding (assembled in VMEM scratch)
    emb = (jnp.dot(patches_ref[...], patch_w_ref[...],
                   preferred_element_type=jnp.float32) + patch_b_ref[...])   # (L*NP, E)
    pos = pos_ref[...]                                                       # (SEQ, E)
    cls_row = cls_ref[...] + pos[0:1, :]                                     # (1, E)
    for b in range(L):
        buf_ref[b * N:b * N + 1, :] = cls_row
        buf_ref[b * N + 1:(b + 1) * N, :] = (
            emb[b * NUM_PATCHES:(b + 1) * NUM_PATCHES, :] + pos[1:N, :])
    x = buf_ref[...]                                                         # (L*N, E)

    hsum = hsum_ref[...]   # (E, HEADS) 0/1 head-segment sum mask
    hbc = hbc_ref[...]     # (HEADS, E) 0/1 head broadcast mask (= hsum.T)

    # --- transformer encoder layers (post-norm, nn.TransformerEncoderLayer default)
    for layer in range(DEPTH):
        (in_w_ref, in_b_ref, out_w_ref, out_b_ref, ln1_g_ref, ln1_b_ref,
         lin1_w_ref, lin1_b_ref, lin2_w_ref, lin2_b_ref, ln2_g_ref,
         ln2_b_ref) = layer_refs[layer * PARAMS_PER_LAYER:
                                 (layer + 1) * PARAMS_PER_LAYER]

        # packed qkv projection, all heads at once
        qkv = (jnp.dot(x, in_w_ref[...], preferred_element_type=jnp.float32)
               + in_b_ref[...])                                              # (L*N, 3E)
        q, k, v = qkv[:, :E], qkv[:, E:2 * E], qkv[:, 2 * E:]
        qs = [q[i * N:(i + 1) * N, :] for i in range(L)]                     # each (N, E)
        ks = [k[i * N:(i + 1) * N, :] for i in range(L)]
        vs = [v[i * N:(i + 1) * N, :] for i in range(L)]

        # attention over the L "row blocks" (== batch axis), per (seq pos, head)
        for i in range(L):
            # per-head scores against every j block: (N, HEADS) each
            s = [jnp.dot(qs[i] * ks[j], hsum,
                         preferred_element_type=jnp.float32) * scale
                 for j in range(L)]
            m = s[0]
            for j in range(1, L):
                m = jnp.maximum(m, s[j])
            e = [jnp.exp(sj - m) for sj in s]
            denom = e[0]
            for j in range(1, L):
                denom = denom + e[j]
            inv = pl.reciprocal(denom, approx=True)                          # EUP slot
            out_i = jnp.zeros((N, E), jnp.float32)
            for j in range(L):
                p_head = e[j] * inv                                          # (N, HEADS)
                out_i = out_i + jnp.dot(p_head, hbc,
                                        preferred_element_type=jnp.float32) * vs[j]
            buf_ref[i * N:(i + 1) * N, :] = out_i
        attn = buf_ref[...]                                                  # (L*N, E)

        # out_proj + residual + LayerNorm (fused epilogue)
        attn = (jnp.dot(attn, out_w_ref[...], preferred_element_type=jnp.float32)
                + out_b_ref[...])
        x = _layernorm(x + attn, ln1_g_ref[...], ln1_b_ref[...])

        # feed-forward (ReLU fused) + residual + LayerNorm
        ff = jnp.maximum(
            jnp.dot(x, lin1_w_ref[...], preferred_element_type=jnp.float32)
            + lin1_b_ref[...], 0.0)
        ff = (jnp.dot(ff, lin2_w_ref[...], preferred_element_type=jnp.float32)
              + lin2_b_ref[...])
        x = _layernorm(x + ff, ln2_g_ref[...], ln2_b_ref[...])

    # --- mlp head: LayerNorm + Linear on all rows (cheap), then pick the cls rows
    y = _layernorm(x, head_g_ref[...], head_b_ref[...])
    logits = (jnp.dot(y, head_w_ref[...], preferred_element_type=jnp.float32)
              + head_bias_ref[...])                                          # (L*N, C)
    for b in range(L):
        out_ref[b:b + 1, :] = logits[b * N:b * N + 1, :]


def vit_forward(params, x):
    B, C, H, W = x.shape
    P = int((PATCH_DIM // C) ** 0.5)          # recomputed exactly as the torch code does
    nH, nW = H // P, W // P

    # torch: x.unfold(2,P,P).unfold(3,P,P).contiguous().view(B, -1, patch_dim)
    xp = x.reshape(B, C, nH, P, nW, P).transpose(0, 1, 2, 4, 3, 5)   # (B,C,nH,nW,P,P)
    xp = xp.reshape(B, (C * nH * nW * P * P) // PATCH_DIM, PATCH_DIM)  # same raw view as torch
    patches = xp.reshape(-1, PATCH_DIM)                               # (B*NP, patch_dim)

    flat_inputs = [patches,
                   params["patch_w"], params["patch_b"],
                   params["cls_token"], params["pos_emb"],
                   params["head_sum_mask"], params["head_bcast_mask"]]
    for lp in params["layers"]:
        flat_inputs += [lp[name] for name in LAYER_PARAM_ORDER]
    flat_inputs += [params["head_ln_g"], params["head_ln_b"],
                    params["head_w"], params["head_b"]]

    return pl.pallas_call(
        functools.partial(_vit_kernel, batch=B),
        out_shape=jax.ShapeDtypeStruct((B, NUM_CLASSES), jnp.float32),
        scratch_shapes=[pltpu.VMEM((B * SEQ, DIM), jnp.float32)],
    )(*flat_inputs)


# ------------------------------ parameter setup --------------------------------

def init_params(key):
    keys = jax.random.split(key, 4 + DEPTH)

    def dense(k, in_f, out_f):
        kw, kb = jax.random.split(k)
        w = jax.random.normal(kw, (out_f, in_f), jnp.float32) * 0.02
        b = jax.random.normal(kb, (out_f,), jnp.float32) * 0.02
        # pre-transposed once at init: (in_features, out_features), bias (1, out_features)
        return jnp.transpose(w), b.reshape(1, out_f)

    params = {}
    params["patch_w"], params["patch_b"] = dense(keys[0], PATCH_DIM, DIM)
    params["pos_emb"] = jax.random.normal(keys[1], (SEQ, DIM), jnp.float32)
    params["cls_token"] = jax.random.normal(keys[2], (1, DIM), jnp.float32)

    layers = []
    for l in range(DEPTH):
        lk = jax.random.split(keys[3 + l], 4)
        in_w, in_b = dense(lk[0], DIM, 3 * DIM)        # nn.MultiheadAttention in_proj
        out_w, out_b = dense(lk[1], DIM, DIM)          # out_proj
        l1_w, l1_b = dense(lk[2], DIM, MLP_DIM)        # linear1
        l2_w, l2_b = dense(lk[3], MLP_DIM, DIM)        # linear2
        layers.append(dict(
            in_proj_w=in_w, in_proj_b=in_b,
            out_proj_w=out_w, out_proj_b=out_b,
            ln1_g=jnp.ones((1, DIM), jnp.float32), ln1_b=jnp.zeros((1, DIM), jnp.float32),
            lin1_w=l1_w, lin1_b=l1_b, lin2_w=l2_w, lin2_b=l2_b,
            ln2_g=jnp.ones((1, DIM), jnp.float32), ln2_b=jnp.zeros((1, DIM), jnp.float32),
        ))
    params["layers"] = layers

    params["head_ln_g"] = jnp.ones((1, DIM), jnp.float32)
    params["head_ln_b"] = jnp.zeros((1, DIM), jnp.float32)
    params["head_w"], params["head_b"] = dense(keys[3 + DEPTH], DIM, NUM_CLASSES)

    # constant 0/1 head masks: head-wise lane-segment sum and its transpose (broadcast)
    head_id = jnp.arange(DIM, dtype=jnp.int32) // HEAD_DIM
    hsum = (head_id[:, None] == jnp.arange(HEADS, dtype=jnp.int32)[None, :]
            ).astype(jnp.float32)
    params["head_sum_mask"] = hsum                       # (DIM, HEADS)
    params["head_bcast_mask"] = jnp.transpose(hsum)      # (HEADS, DIM)
    return params


# --------------------------- plain-JAX reference check -------------------------

def _ref_ln(x, g, b):
    mu = jnp.mean(x, axis=-1, keepdims=True)
    var = jnp.mean(jnp.square(x - mu), axis=-1, keepdims=True)
    return (x - mu) * jax.lax.rsqrt(var + LN_EPS) * g + b


def reference_forward(params, x):
    B, C, H, W = x.shape
    P = int((PATCH_DIM // C) ** 0.5)
    nH, nW = H // P, W // P
    xp = x.reshape(B, C, nH, P, nW, P).transpose(0, 1, 2, 4, 3, 5)
    xp = xp.reshape(B, -1, PATCH_DIM)
    emb = xp @ params["patch_w"] + params["patch_b"]                        # (B, NP, D)
    cls = jnp.broadcast_to(params["cls_token"][None], (B, 1, DIM))
    h = jnp.concatenate([cls, emb], axis=1) + params["pos_emb"][None]       # (B, S, D)
    L, N, E = h.shape
    hd = E // HEADS
    for lp in params["layers"]:
        x2 = h.reshape(L * N, E)
        qkv = x2 @ lp["in_proj_w"] + lp["in_proj_b"]
        q, k, v = jnp.split(qkv, 3, axis=-1)

        def split_heads(t):
            return jnp.transpose(t.reshape(L, N * HEADS, hd), (1, 0, 2))
        qh, kh, vh = split_heads(q), split_heads(k), split_heads(v)
        s = jnp.einsum("bld,bmd->blm", qh, kh) / math.sqrt(hd)
        p = jax.nn.softmax(s, axis=-1)
        o = jnp.einsum("blm,bmd->bld", p, vh)
        attn = jnp.transpose(o, (1, 0, 2)).reshape(L * N, E)
        attn = attn @ lp["out_proj_w"] + lp["out_proj_b"]
        x2 = _ref_ln(x2 + attn, lp["ln1_g"], lp["ln1_b"])
        ff = jax.nn.relu(x2 @ lp["lin1_w"] + lp["lin1_b"])
        ff = ff @ lp["lin2_w"] + lp["lin2_b"]
        x2 = _ref_ln(x2 + ff, lp["ln2_g"], lp["ln2_b"])
        h = x2.reshape(L, N, E)
    cls_out = h[:, 0]
    y = _ref_ln(cls_out, params["head_ln_g"], params["head_ln_b"])
    return y @ params["head_w"] + params["head_b"]


# ------------------------------------ main --------------------------------------

if __name__ == "__main__":
    key = jax.random.PRNGKey(0)
    kx, kp = jax.random.split(key)
    x = jax.random.normal(kx, (2, CHANNELS, IMG_SIZE, IMG_SIZE), jnp.float32)  # NCHW
    params = init_params(kp)

    out = jax.jit(vit_forward)(params, x)
    out = jax.block_until_ready(out)
    assert out.shape == (2, NUM_CLASSES) and out.dtype == jnp.float32

    ref = jax.block_until_ready(jax.jit(reference_forward)(params, x))
    err = float(jnp.max(jnp.abs(out - ref)))
    assert err < 5e-3, f"kernel/reference mismatch: max abs err = {err}"

    print("KERNEL_OK")
</pallas_src>

<mosaic_0001>
module attributes {stable_mosaic.version = 11 : i64} {
  func.func @_vit_kernel(%arg0: memref<8x192xf32, #tpu.memory_space<vmem>>, %arg1: memref<192x32xf32, #tpu.memory_space<vmem>>, %arg2: memref<1x32xf32, #tpu.memory_space<vmem>>, %arg3: memref<1x32xf32, #tpu.memory_space<vmem>>, %arg4: memref<5x32xf32, #tpu.memory_space<vmem>>, %arg5: memref<32x4xf32, #tpu.memory_space<vmem>>, %arg6: memref<4x32xf32, #tpu.memory_space<vmem>>, %arg7: memref<32x96xf32, #tpu.memory_space<vmem>>, %arg8: memref<1x96xf32, #tpu.memory_space<vmem>>, %arg9: memref<32x32xf32, #tpu.memory_space<vmem>>, %arg10: memref<1x32xf32, #tpu.memory_space<vmem>>, %arg11: memref<1x32xf32, #tpu.memory_space<vmem>>, %arg12: memref<1x32xf32, #tpu.memory_space<vmem>>, %arg13: memref<32x64xf32, #tpu.memory_space<vmem>>, %arg14: memref<1x64xf32, #tpu.memory_space<vmem>>, %arg15: memref<64x32xf32, #tpu.memory_space<vmem>>, %arg16: memref<1x32xf32, #tpu.memory_space<vmem>>, %arg17: memref<1x32xf32, #tpu.memory_space<vmem>>, %arg18: memref<1x32xf32, #tpu.memory_space<vmem>>, %arg19: memref<32x96xf32, #tpu.memory_space<vmem>>, %arg20: memref<1x96xf32, #tpu.memory_space<vmem>>, %arg21: memref<32x32xf32, #tpu.memory_space<vmem>>, %arg22: memref<1x32xf32, #tpu.memory_space<vmem>>, %arg23: memref<1x32xf32, #tpu.memory_space<vmem>>, %arg24: memref<1x32xf32, #tpu.memory_space<vmem>>, %arg25: memref<32x64xf32, #tpu.memory_space<vmem>>, %arg26: memref<1x64xf32, #tpu.memory_space<vmem>>, %arg27: memref<64x32xf32, #tpu.memory_space<vmem>>, %arg28: memref<1x32xf32, #tpu.memory_space<vmem>>, %arg29: memref<1x32xf32, #tpu.memory_space<vmem>>, %arg30: memref<1x32xf32, #tpu.memory_space<vmem>>, %arg31: memref<1x32xf32, #tpu.memory_space<vmem>>, %arg32: memref<1x32xf32, #tpu.memory_space<vmem>>, %arg33: memref<32x3xf32, #tpu.memory_space<vmem>>, %arg34: memref<1x3xf32, #tpu.memory_space<vmem>>, %arg35: memref<2x3xf32, #tpu.memory_space<vmem>>, %arg36: memref<10x32xf32, #tpu.memory_space<vmem>>) attributes {dimension_semantics = [], scalar_prefetch = 0 : i64, scratch_operands = 1 : i64, tpu.core_type = #tpu.core_type<tc>} {
    %c0 = arith.constant 0 : index
    %c0_0 = arith.constant 0 : index
    %0 = vector.load %arg0[%c0, %c0_0] : memref<8x192xf32, #tpu.memory_space<vmem>>, vector<8x192xf32>
    %c0_1 = arith.constant 0 : index
    %c0_2 = arith.constant 0 : index
    %1 = vector.load %arg1[%c0_1, %c0_2] : memref<192x32xf32, #tpu.memory_space<vmem>>, vector<192x32xf32>
    %cst = arith.constant dense<0.000000e+00> : vector<8x32xf32>
    %2 = tpu.matmul %0, %1, %cst {dimension_numbers = #tpu.dot_dimension_numbers<[1], [0], [0], [1], [0, 0, 1, 1], [], []>} : vector<8x192xf32>, vector<192x32xf32>, vector<8x32xf32> -> vector<8x32xf32>
    %c0_3 = arith.constant 0 : index
    %c0_4 = arith.constant 0 : index
    %3 = vector.load %arg2[%c0_3, %c0_4] : memref<1x32xf32, #tpu.memory_space<vmem>>, vector<1x32xf32>
    %4 = vector.broadcast %3 : vector<1x32xf32> to vector<8x32xf32>
    %5 = arith.addf %2, %4 : vector<8x32xf32>
    %c0_5 = arith.constant 0 : index
    %c0_6 = arith.constant 0 : index
    %6 = vector.load %arg4[%c0_5, %c0_6] : memref<5x32xf32, #tpu.memory_space<vmem>>, vector<5x32xf32>
    %c0_7 = arith.constant 0 : index
    %c0_8 = arith.constant 0 : index
    %7 = vector.load %arg3[%c0_7, %c0_8] : memref<1x32xf32, #tpu.memory_space<vmem>>, vector<1x32xf32>
    %8 = vector.extract_strided_slice %6 {offsets = [0, 0], sizes = [1, 32], strides = [1, 1]} : vector<5x32xf32> to vector<1x32xf32>
    %9 = arith.addf %7, %8 : vector<1x32xf32>
    %c0_9 = arith.constant 0 : index
    %c0_10 = arith.constant 0 : index
    %10 = vector.load %arg36[%c0_9, %c0_10] : memref<10x32xf32, #tpu.memory_space<vmem>>, vector<1x32xf32>
    tpu.vector_store %arg36[%c0_9, %c0_10], %9 {strides = array<i32>} : memref<10x32xf32, #tpu.memory_space<vmem>>, vector<1x32xf32>,
    %11 = vector.extract_strided_slice %5 {offsets = [0, 0], sizes = [4, 32], strides = [1, 1]} : vector<8x32xf32> to vector<4x32xf32>
    %12 = vector.extract_strided_slice %6 {offsets = [1, 0], sizes = [4, 32], strides = [1, 1]} : vector<5x32xf32> to vector<4x32xf32>
    %13 = arith.addf %11, %12 : vector<4x32xf32>
    %c1 = arith.constant 1 : index
    %c0_11 = arith.constant 0 : index
    %14 = vector.load %arg36[%c1, %c0_11] : memref<10x32xf32, #tpu.memory_space<vmem>>, vector<4x32xf32>
    tpu.vector_store %arg36[%c1, %c0_11], %13 {strides = array<i32>} : memref<10x32xf32, #tpu.memory_space<vmem>>, vector<4x32xf32>,
    %c5 = arith.constant 5 : index
    %c0_12 = arith.constant 0 : index
    %15 = vector.load %arg36[%c5, %c0_12] : memref<10x32xf32, #tpu.memory_space<vmem>>, vector<1x32xf32>
    tpu.vector_store %arg36[%c5, %c0_12], %9 {strides = array<i32>} : memref<10x32xf32, #tpu.memory_space<vmem>>, vector<1x32xf32>,
    %16 = vector.extract_strided_slice %5 {offsets = [4, 0], sizes = [4, 32], strides = [1, 1]} : vector<8x32xf32> to vector<4x32xf32>
    %17 = vector.extract_strided_slice %6 {offsets = [1, 0], sizes = [4, 32], strides = [1, 1]} : vector<5x32xf32> to vector<4x32xf32>
    %18 = arith.addf %16, %17 : vector<4x32xf32>
    %c6 = arith.constant 6 : index
    %c0_13 = arith.constant 0 : index
    %19 = vector.load %arg36[%c6, %c0_13] : memref<10x32xf32, #tpu.memory_space<vmem>>, vector<4x32xf32>
    tpu.vector_store %arg36[%c6, %c0_13], %18 {strides = array<i32>} : memref<10x32xf32, #tpu.memory_space<vmem>>, vector<4x32xf32>,
    %c0_14 = arith.constant 0 : index
    %c0_15 = arith.constant 0 : index
    %20 = vector.load %arg36[%c0_14, %c0_15] : memref<10x32xf32, #tpu.memory_space<vmem>>, vector<10x32xf32>
    %c0_16 = arith.constant 0 : index
    %c0_17 = arith.constant 0 : index
    %21 = vector.load %arg5[%c0_16, %c0_17] : memref<32x4xf32, #tpu.memory_space<vmem>>, vector<32x4xf32>
    %c0_18 = arith.constant 0 : index
    %c0_19 = arith.constant 0 : index
    %22 = vector.load %arg6[%c0_18, %c0_19] : memref<4x32xf32, #tpu.memory_space<vmem>>, vector<4x32xf32>
    %c0_20 = arith.constant 0 : index
    %c0_21 = arith.constant 0 : index
    %23 = vector.load %arg7[%c0_20, %c0_21] : memref<32x96xf32, #tpu.memory_space<vmem>>, vector<32x96xf32>
    %cst_22 = arith.constant dense<0.000000e+00> : vector<10x96xf32>
    %24 = tpu.matmul %20, %23, %cst_22 {dimension_numbers = #tpu.dot_dimension_numbers<[1], [0], [0], [1], [0, 0, 1, 1], [], []>} : vector<10x32xf32>, vector<32x96xf32>, vector<10x96xf32> -> vector<10x96xf32>
    %c0_23 = arith.constant 0 : index
    %c0_24 = arith.constant 0 : index
    %25 = vector.load %arg8[%c0_23, %c0_24] : memref<1x96xf32, #tpu.memory_space<vmem>>, vector<1x96xf32>
    %26 = vector.broadcast %25 : vector<1x96xf32> to vector<10x96xf32>
    %27 = arith.addf %24, %26 : vector<10x96xf32>
    %28 = vector.extract_strided_slice %27 {offsets = [0, 0], sizes = [10, 32], strides = [1, 1]} : vector<10x96xf32> to vector<10x32xf32>
    %29 = vector.extract_strided_slice %27 {offsets = [0, 32], sizes = [10, 32], strides = [1, 1]} : vector<10x96xf32> to vector<10x32xf32>
    %30 = vector.extract_strided_slice %27 {offsets = [0, 64], sizes = [10, 32], strides = [1, 1]} : vector<10x96xf32> to vector<10x32xf32>
    %31 = vector.extract_strided_slice %28 {offsets = [0, 0], sizes = [5, 32], strides = [1, 1]} : vector<10x32xf32> to vector<5x32xf32>
    %32 = vector.extract_strided_slice %28 {offsets = [5, 0], sizes = [5, 32], strides = [1, 1]} : vector<10x32xf32> to vector<5x32xf32>
    %33 = vector.extract_strided_slice %29 {offsets = [0, 0], sizes = [5, 32], strides = [1, 1]} : vector<10x32xf32> to vector<5x32xf32>
    %34 = vector.extract_strided_slice %29 {offsets = [5, 0], sizes = [5, 32], strides = [1, 1]} : vector<10x32xf32> to vector<5x32xf32>
    %35 = vector.extract_strided_slice %30 {offsets = [0, 0], sizes = [5, 32], strides = [1, 1]} : vector<10x32xf32> to vector<5x32xf32>
    %36 = vector.extract_strided_slice %30 {offsets = [5, 0], sizes = [5, 32], strides = [1, 1]} : vector<10x32xf32> to vector<5x32xf32>
    %37 = arith.mulf %31, %33 : vector<5x32xf32>
    %cst_25 = arith.constant dense<0.000000e+00> : vector<5x4xf32>
    %38 = tpu.matmul %37, %21, %cst_25 {dimension_numbers = #tpu.dot_dimension_numbers<[1], [0], [0], [1], [0, 0, 1, 1], [], []>} : vector<5x32xf32>, vector<32x4xf32>, vector<5x4xf32> -> vector<5x4xf32>
    %cst_26 = arith.constant 0.353553385 : f32
    %39 = vector.broadcast %cst_26 : f32 to vector<5x4xf32>
    %40 = arith.mulf %38, %39 : vector<5x4xf32>
    %41 = arith.mulf %31, %34 : vector<5x32xf32>
    %cst_27 = arith.constant dense<0.000000e+00> : vector<5x4xf32>
    %42 = tpu.matmul %41, %21, %cst_27 {dimension_numbers = #tpu.dot_dimension_numbers<[1], [0], [0], [1], [0, 0, 1, 1], [], []>} : vector<5x32xf32>, vector<32x4xf32>, vector<5x4xf32> -> vector<5x4xf32>
    %cst_28 = arith.constant 0.353553385 : f32
    %43 = vector.broadcast %cst_28 : f32 to vector<5x4xf32>
    %44 = arith.mulf %42, %43 : vector<5x4xf32>
    %45 = arith.maximumf %40, %44 : vector<5x4xf32>
    %46 = arith.subf %40, %45 : vector<5x4xf32>
    %47 = math.exp %46 : vector<5x4xf32>
    %48 = arith.subf %44, %45 : vector<5x4xf32>
    %49 = math.exp %48 : vector<5x4xf32>
    %50 = arith.addf %47, %49 : vector<5x4xf32>
    %51 = tpu.reciprocal %50 {approx = true} : vector<5x4xf32> -> vector<5x4xf32>
    %cst_29 = arith.constant 0.000000e+00 : f32
    %52 = vector.broadcast %cst_29 : f32 to vector<5x32xf32>
    %53 = arith.mulf %47, %51 : vector<5x4xf32>
    %cst_30 = arith.constant dense<0.000000e+00> : vector<5x32xf32>
    %54 = tpu.matmul %53, %22, %cst_30 {dimension_numbers = #tpu.dot_dimension_numbers<[1], [0], [0], [1], [0, 0, 1, 1], [], []>} : vector<5x4xf32>, vector<4x32xf32>, vector<5x32xf32> -> vector<5x32xf32>
    %55 = arith.mulf %54, %35 : vector<5x32xf32>
    %56 = arith.addf %52, %55 : vector<5x32xf32>
    %57 = arith.mulf %49, %51 : vector<5x4xf32>
    %cst_31 = arith.constant dense<0.000000e+00> : vector<5x32xf32>
    %58 = tpu.matmul %57, %22, %cst_31 {dimension_numbers = #tpu.dot_dimension_numbers<[1], [0], [0], [1], [0, 0, 1, 1], [], []>} : vector<5x4xf32>, vector<4x32xf32>, vector<5x32xf32> -> vector<5x32xf32>
    %59 = arith.mulf %58, %36 : vector<5x32xf32>
    %60 = arith.addf %56, %59 : vector<5x32xf32>
    %c0_32 = arith.constant 0 : index
    %c0_33 = arith.constant 0 : index
    %61 = vector.load %arg36[%c0_32, %c0_33] : memref<10x32xf32, #tpu.memory_space<vmem>>, vector<5x32xf32>
    tpu.vector_store %arg36[%c0_32, %c0_33], %60 {strides = array<i32>} : memref<10x32xf32, #tpu.memory_space<vmem>>, vector<5x32xf32>,
    %62 = arith.mulf %32, %33 : vector<5x32xf32>
    %cst_34 = arith.constant dense<0.000000e+00> : vector<5x4xf32>
    %63 = tpu.matmul %62, %21, %cst_34 {dimension_numbers = #tpu.dot_dimension_numbers<[1], [0], [0], [1], [0, 0, 1, 1], [], []>} : vector<5x32xf32>, vector<32x4xf32>, vector<5x4xf32> -> vector<5x4xf32>
    %cst_35 = arith.constant 0.353553385 : f32
    %64 = vector.broadcast %cst_35 : f32 to vector<5x4xf32>
    %65 = arith.mulf %63, %64 : vector<5x4xf32>
    %66 = arith.mulf %32, %34 : vector<5x32xf32>
    %cst_36 = arith.constant dense<0.000000e+00> : vector<5x4xf32>
    %67 = tpu.matmul %66, %21, %cst_36 {dimension_numbers = #tpu.dot_dimension_numbers<[1], [0], [0], [1], [0, 0, 1, 1], [], []>} : vector<5x32xf32>, vector<32x4xf32>, vector<5x4xf32> -> vector<5x4xf32>
    %cst_37 = arith.constant 0.353553385 : f32
    %68 = vector.broadcast %cst_37 : f32 to vector<5x4xf32>
    %69 = arith.mulf %67, %68 : vector<5x4xf32>
    %70 = arith.maximumf %65, %69 : vector<5x4xf32>
    %71 = arith.subf %65, %70 : vector<5x4xf32>
    %72 = math.exp %71 : vector<5x4xf32>
    %73 = arith.subf %69, %70 : vector<5x4xf32>
    %74 = math.exp %73 : vector<5x4xf32>
    %75 = arith.addf %72, %74 : vector<5x4xf32>
    %76 = tpu.reciprocal %75 {approx = true} : vector<5x4xf32> -> vector<5x4xf32>
    %cst_38 = arith.constant 0.000000e+00 : f32
    %77 = vector.broadcast %cst_38 : f32 to vector<5x32xf32>
    %78 = arith.mulf %72, %76 : vector<5x4xf32>
    %cst_39 = arith.constant dense<0.000000e+00> : vector<5x32xf32>
    %79 = tpu.matmul %78, %22, %cst_39 {dimension_numbers = #tpu.dot_dimension_numbers<[1], [0], [0], [1], [0, 0, 1, 1], [], []>} : vector<5x4xf32>, vector<4x32xf32>, vector<5x32xf32> -> vector<5x32xf32>
    %80 = arith.mulf %79, %35 : vector<5x32xf32>
    %81 = arith.addf %77, %80 : vector<5x32xf32>
    %82 = arith.mulf %74, %76 : vector<5x4xf32>
    %cst_40 = arith.constant dense<0.000000e+00> : vector<5x32xf32>
    %83 = tpu.matmul %82, %22, %cst_40 {dimension_numbers = #tpu.dot_dimension_numbers<[1], [0], [0], [1], [0, 0, 1, 1], [], []>} : vector<5x4xf32>, vector<4x32xf32>, vector<5x32xf32> -> vector<5x32xf32>
    %84 = arith.mulf %83, %36 : vector<5x32xf32>
    %85 = arith.addf %81, %84 : vector<5x32xf32>
    %c5_41 = arith.constant 5 : index
    %c0_42 = arith.constant 0 : index
    %86 = vector.load %arg36[%c5_41, %c0_42] : memref<10x32xf32, #tpu.memory_space<vmem>>, vector<5x32xf32>
    tpu.vector_store %arg36[%c5_41, %c0_42], %85 {strides = array<i32>} : memref<10x32xf32, #tpu.memory_space<vmem>>, vector<5x32xf32>,
    %c0_43 = arith.constant 0 : index
    %c0_44 = arith.constant 0 : index
    %87 = vector.load %arg36[%c0_43, %c0_44] : memref<10x32xf32, #tpu.memory_space<vmem>>, vector<10x32xf32>
    %c0_45 = arith.constant 0 : index
    %c0_46 = arith.constant 0 : index
    %88 = vector.load %arg9[%c0_45, %c0_46] : memref<32x32xf32, #tpu.memory_space<vmem>>, vector<32x32xf32>
    %cst_47 = arith.constant dense<0.000000e+00> : vector<10x32xf32>
    %89 = tpu.matmul %87, %88, %cst_47 {dimension_numbers = #tpu.dot_dimension_numbers<[1], [0], [0], [1], [0, 0, 1, 1], [], []>} : vector<10x32xf32>, vector<32x32xf32>, vector<10x32xf32> -> vector<10x32xf32>
    %c0_48 = arith.constant 0 : index
    %c0_49 = arith.constant 0 : index
    %90 = vector.load %arg10[%c0_48, %c0_49] : memref<1x32xf32, #tpu.memory_space<vmem>>, vector<1x32xf32>
    %91 = vector.broadcast %90 : vector<1x32xf32> to vector<10x32xf32>
    %92 = arith.addf %89, %91 : vector<10x32xf32>
    %93 = arith.addf %20, %92 : vector<10x32xf32>
    %c0_50 = arith.constant 0 : index
    %c0_51 = arith.constant 0 : index
    %94 = vector.load %arg11[%c0_50, %c0_51] : memref<1x32xf32, #tpu.memory_space<vmem>>, vector<1x32xf32>
    %c0_52 = arith.constant 0 : index
    %c0_53 = arith.constant 0 : index
    %95 = vector.load %arg12[%c0_52, %c0_53] : memref<1x32xf32, #tpu.memory_space<vmem>>, vector<1x32xf32>
    %cst_54 = arith.constant dense<0.000000e+00> : vector<10xf32>
    %96 = vector.multi_reduction <add>, %93, %cst_54 [1] : vector<10x32xf32> to vector<10xf32>
    %97 = vector.shape_cast %96 : vector<10xf32> to vector<10x1xf32>
    %cst_55 = arith.constant 3.200000e+01 : f32
    %98 = vector.broadcast %cst_55 : f32 to vector<10x1xf32>
    %99 = arith.divf %97, %98 : vector<10x1xf32>
    %100 = vector.broadcast %99 : vector<10x1xf32> to vector<10x32xf32>
    %101 = arith.subf %93, %100 : vector<10x32xf32>
    %102 = arith.mulf %101, %101 : vector<10x32xf32>
    %cst_56 = arith.constant dense<0.000000e+00> : vector<10xf32>
    %103 = vector.multi_reduction <add>, %102, %cst_56 [1] : vector<10x32xf32> to vector<10xf32>
    %104 = vector.shape_cast %103 : vector<10xf32> to vector<10x1xf32>
    %cst_57 = arith.constant 3.200000e+01 : f32
    %105 = vector.broadcast %cst_57 : f32 to vector<10x1xf32>
    %106 = arith.divf %104, %105 : vector<10x1xf32>
    %cst_58 = arith.constant 9.99999974E-6 : f32
    %107 = vector.broadcast %cst_58 : f32 to vector<10x1xf32>
    %108 = arith.addf %106, %107 : vector<10x1xf32>
    %109 = math.rsqrt %108 : vector<10x1xf32>
    %110 = vector.broadcast %109 : vector<10x1xf32> to vector<10x32xf32>
    %111 = arith.mulf %101, %110 : vector<10x32xf32>
    %112 = vector.broadcast %94 : vector<1x32xf32> to vector<10x32xf32>
    %113 = arith.mulf %111, %112 : vector<10x32xf32>
    %114 = vector.broadcast %95 : vector<1x32xf32> to vector<10x32xf32>
    %115 = arith.addf %113, %114 : vector<10x32xf32>
    %c0_59 = arith.constant 0 : index
    %c0_60 = arith.constant 0 : index
    %116 = vector.load %arg13[%c0_59, %c0_60] : memref<32x64xf32, #tpu.memory_space<vmem>>, vector<32x64xf32>
    %cst_61 = arith.constant dense<0.000000e+00> : vector<10x64xf32>
    %117 = tpu.matmul %115, %116, %cst_61 {dimension_numbers = #tpu.dot_dimension_numbers<[1], [0], [0], [1], [0, 0, 1, 1], [], []>} : vector<10x32xf32>, vector<32x64xf32>, vector<10x64xf32> -> vector<10x64xf32>
    %c0_62 = arith.constant 0 : index
    %c0_63 = arith.constant 0 : index
    %118 = vector.load %arg14[%c0_62, %c0_63] : memref<1x64xf32, #tpu.memory_space<vmem>>, vector<1x64xf32>
    %119 = vector.broadcast %118 : vector<1x64xf32> to vector<10x64xf32>
    %120 = arith.addf %117, %119 : vector<10x64xf32>
    %cst_64 = arith.constant 0.000000e+00 : f32
    %121 = vector.broadcast %cst_64 : f32 to vector<10x64xf32>
    %122 = arith.maximumf %120, %121 : vector<10x64xf32>
    %c0_65 = arith.constant 0 : index
    %c0_66 = arith.constant 0 : index
    %123 = vector.load %arg15[%c0_65, %c0_66] : memref<64x32xf32, #tpu.memory_space<vmem>>, vector<64x32xf32>
    %cst_67 = arith.constant dense<0.000000e+00> : vector<10x32xf32>
    %124 = tpu.matmul %122, %123, %cst_67 {dimension_numbers = #tpu.dot_dimension_numbers<[1], [0], [0], [1], [0, 0, 1, 1], [], []>} : vector<10x64xf32>, vector<64x32xf32>, vector<10x32xf32> -> vector<10x32xf32>
    %c0_68 = arith.constant 0 : index
    %c0_69 = arith.constant 0 : index
    %125 = vector.load %arg16[%c0_68, %c0_69] : memref<1x32xf32, #tpu.memory_space<vmem>>, vector<1x32xf32>
    %126 = vector.broadcast %125 : vector<1x32xf32> to vector<10x32xf32>
    %127 = arith.addf %124, %126 : vector<10x32xf32>
    %128 = arith.addf %115, %127 : vector<10x32xf32>
    %c0_70 = arith.constant 0 : index
    %c0_71 = arith.constant 0 : index
    %129 = vector.load %arg17[%c0_70, %c0_71] : memref<1x32xf32, #tpu.memory_space<vmem>>, vector<1x32xf32>
    %c0_72 = arith.constant 0 : index
    %c0_73 = arith.constant 0 : index
    %130 = vector.load %arg18[%c0_72, %c0_73] : memref<1x32xf32, #tpu.memory_space<vmem>>, vector<1x32xf32>
    %cst_74 = arith.constant dense<0.000000e+00> : vector<10xf32>
    %131 = vector.multi_reduction <add>, %128, %cst_74 [1] : vector<10x32xf32> to vector<10xf32>
    %132 = vector.shape_cast %131 : vector<10xf32> to vector<10x1xf32>
    %cst_75 = arith.constant 3.200000e+01 : f32
    %133 = vector.broadcast %cst_75 : f32 to vector<10x1xf32>
    %134 = arith.divf %132, %133 : vector<10x1xf32>
    %135 = vector.broadcast %134 : vector<10x1xf32> to vector<10x32xf32>
    %136 = arith.subf %128, %135 : vector<10x32xf32>
    %137 = arith.mulf %136, %136 : vector<10x32xf32>
    %cst_76 = arith.constant dense<0.000000e+00> : vector<10xf32>
    %138 = vector.multi_reduction <add>, %137, %cst_76 [1] : vector<10x32xf32> to vector<10xf32>
    %139 = vector.shape_cast %138 : vector<10xf32> to vector<10x1xf32>
    %cst_77 = arith.constant 3.200000e+01 : f32
    %140 = vector.broadcast %cst_77 : f32 to vector<10x1xf32>
    %141 = arith.divf %139, %140 : vector<10x1xf32>
    %cst_78 = arith.constant 9.99999974E-6 : f32
    %142 = vector.broadcast %cst_78 : f32 to vector<10x1xf32>
    %143 = arith.addf %141, %142 : vector<10x1xf32>
    %144 = math.rsqrt %143 : vector<10x1xf32>
    %145 = vector.broadcast %144 : vector<10x1xf32> to vector<10x32xf32>
    %146 = arith.mulf %136, %145 : vector<10x32xf32>
    %147 = vector.broadcast %129 : vector<1x32xf32> to vector<10x32xf32>
    %148 = arith.mulf %146, %147 : vector<10x32xf32>
    %149 = vector.broadcast %130 : vector<1x32xf32> to vector<10x32xf32>
    %150 = arith.addf %148, %149 : vector<10x32xf32>
    %c0_79 = arith.constant 0 : index
    %c0_80 = arith.constant 0 : index
    %151 = vector.load %arg19[%c0_79, %c0_80] : memref<32x96xf32, #tpu.memory_space<vmem>>, vector<32x96xf32>
    %cst_81 = arith.constant dense<0.000000e+00> : vector<10x96xf32>
    %152 = tpu.matmul %150, %151, %cst_81 {dimension_numbers = #tpu.dot_dimension_numbers<[1], [0], [0], [1], [0, 0, 1, 1], [], []>} : vector<10x32xf32>, vector<32x96xf32>, vector<10x96xf32> -> vector<10x96xf32>
    %c0_82 = arith.constant 0 : index
    %c0_83 = arith.constant 0 : index
    %153 = vector.load %arg20[%c0_82, %c0_83] : memref<1x96xf32, #tpu.memory_space<vmem>>, vector<1x96xf32>
    %154 = vector.broadcast %153 : vector<1x96xf32> to vector<10x96xf32>
    %155 = arith.addf %152, %154 : vector<10x96xf32>
    %156 = vector.extract_strided_slice %155 {offsets = [0, 0], sizes = [10, 32], strides = [1, 1]} : vector<10x96xf32> to vector<10x32xf32>
    %157 = vector.extract_strided_slice %155 {offsets = [0, 32], sizes = [10, 32], strides = [1, 1]} : vector<10x96xf32> to vector<10x32xf32>
    %158 = vector.extract_strided_slice %155 {offsets = [0, 64], sizes = [10, 32], strides = [1, 1]} : vector<10x96xf32> to vector<10x32xf32>
    %159 = vector.extract_strided_slice %156 {offsets = [0, 0], sizes = [5, 32], strides = [1, 1]} : vector<10x32xf32> to vector<5x32xf32>
    %160 = vector.extract_strided_slice %156 {offsets = [5, 0], sizes = [5, 32], strides = [1, 1]} : vector<10x32xf32> to vector<5x32xf32>
    %161 = vector.extract_strided_slice %157 {offsets = [0, 0], sizes = [5, 32], strides = [1, 1]} : vector<10x32xf32> to vector<5x32xf32>
    %162 = vector.extract_strided_slice %157 {offsets = [5, 0], sizes = [5, 32], strides = [1, 1]} : vector<10x32xf32> to vector<5x32xf32>
    %163 = vector.extract_strided_slice %158 {offsets = [0, 0], sizes = [5, 32], strides = [1, 1]} : vector<10x32xf32> to vector<5x32xf32>
    %164 = vector.extract_strided_slice %158 {offsets = [5, 0], sizes = [5, 32], strides = [1, 1]} : vector<10x32xf32> to vector<5x32xf32>
    %165 = arith.mulf %159, %161 : vector<5x32xf32>
    %cst_84 = arith.constant dense<0.000000e+00> : vector<5x4xf32>
    %166 = tpu.matmul %165, %21, %cst_84 {dimension_numbers = #tpu.dot_dimension_numbers<[1], [0], [0], [1], [0, 0, 1, 1], [], []>} : vector<5x32xf32>, vector<32x4xf32>, vector<5x4xf32> -> vector<5x4xf32>
    %cst_85 = arith.constant 0.353553385 : f32
    %167 = vector.broadcast %cst_85 : f32 to vector<5x4xf32>
    %168 = arith.mulf %166, %167 : vector<5x4xf32>
    %169 = arith.mulf %159, %162 : vector<5x32xf32>
    %cst_86 = arith.constant dense<0.000000e+00> : vector<5x4xf32>
    %170 = tpu.matmul %169, %21, %cst_86 {dimension_numbers = #tpu.dot_dimension_numbers<[1], [0], [0], [1], [0, 0, 1, 1], [], []>} : vector<5x32xf32>, vector<32x4xf32>, vector<5x4xf32> -> vector<5x4xf32>
    %cst_87 = arith.constant 0.353553385 : f32
    %171 = vector.broadcast %cst_87 : f32 to vector<5x4xf32>
    %172 = arith.mulf %170, %171 : vector<5x4xf32>
    %173 = arith.maximumf %168, %172 : vector<5x4xf32>
    %174 = arith.subf %168, %173 : vector<5x4xf32>
    %175 = math.exp %174 : vector<5x4xf32>
    %176 = arith.subf %172, %173 : vector<5x4xf32>
    %177 = math.exp %176 : vector<5x4xf32>
    %178 = arith.addf %175, %177 : vector<5x4xf32>
    %179 = tpu.reciprocal %178 {approx = true} : vector<5x4xf32> -> vector<5x4xf32>
    %cst_88 = arith.constant 0.000000e+00 : f32
    %180 = vector.broadcast %cst_88 : f32 to vector<5x32xf32>
    %181 = arith.mulf %175, %179 : vector<5x4xf32>
    %cst_89 = arith.constant dense<0.000000e+00> : vector<5x32xf32>
    %182 = tpu.matmul %181, %22, %cst_89 {dimension_numbers = #tpu.dot_dimension_numbers<[1], [0], [0], [1], [0, 0, 1, 1], [], []>} : vector<5x4xf32>, vector<4x32xf32>, vector<5x32xf32> -> vector<5x32xf32>
    %183 = arith.mulf %182, %163 : vector<5x32xf32>
    %184 = arith.addf %180, %183 : vector<5x32xf32>
    %185 = arith.mulf %177, %179 : vector<5x4xf32>
    %cst_90 = arith.constant dense<0.000000e+00> : vector<5x32xf32>
    %186 = tpu.matmul %185, %22, %cst_90 {dimension_numbers = #tpu.dot_dimension_numbers<[1], [0], [0], [1], [0, 0, 1, 1], [], []>} : vector<5x4xf32>, vector<4x32xf32>, vector<5x32xf32> -> vector<5x32xf32>
    %187 = arith.mulf %186, %164 : vector<5x32xf32>
    %188 = arith.addf %184, %187 : vector<5x32xf32>
    %c0_91 = arith.constant 0 : index
    %c0_92 = arith.constant 0 : index
    %189 = vector.load %arg36[%c0_91, %c0_92] : memref<10x32xf32, #tpu.memory_space<vmem>>, vector<5x32xf32>
    tpu.vector_store %arg36[%c0_91, %c0_92], %188 {strides = array<i32>} : memref<10x32xf32, #tpu.memory_space<vmem>>, vector<5x32xf32>,
    %190 = arith.mulf %160, %161 : vector<5x32xf32>
    %cst_93 = arith.constant dense<0.000000e+00> : vector<5x4xf32>
    %191 = tpu.matmul %190, %21, %cst_93 {dimension_numbers = #tpu.dot_dimension_numbers<[1], [0], [0], [1], [0, 0, 1, 1], [], []>} : vector<5x32xf32>, vector<32x4xf32>, vector<5x4xf32> -> vector<5x4xf32>
    %cst_94 = arith.constant 0.353553385 : f32
    %192 = vector.broadcast %cst_94 : f32 to vector<5x4xf32>
    %193 = arith.mulf %191, %192 : vector<5x4xf32>
    %194 = arith.mulf %160, %162 : vector<5x32xf32>
    %cst_95 = arith.constant dense<0.000000e+00> : vector<5x4xf32>
    %195 = tpu.matmul %194, %21, %cst_95 {dimension_numbers = #tpu.dot_dimension_numbers<[1], [0], [0], [1], [0, 0, 1, 1], [], []>} : vector<5x32xf32>, vector<32x4xf32>, vector<5x4xf32> -> vector<5x4xf32>
    %cst_96 = arith.constant 0.353553385 : f32
    %196 = vector.broadcast %cst_96 : f32 to vector<5x4xf32>
    %197 = arith.mulf %195, %196 : vector<5x4xf32>
    %198 = arith.maximumf %193, %197 : vector<5x4xf32>
    %199 = arith.subf %193, %198 : vector<5x4xf32>
    %200 = math.exp %199 : vector<5x4xf32>
    %201 = arith.subf %197, %198 : vector<5x4xf32>
    %202 = math.exp %201 : vector<5x4xf32>
    %203 = arith.addf %200, %202 : vector<5x4xf32>
    %204 = tpu.reciprocal %203 {approx = true} : vector<5x4xf32> -> vector<5x4xf32>
    %cst_97 = arith.constant 0.000000e+00 : f32
    %205 = vector.broadcast %cst_97 : f32 to vector<5x32xf32>
    %206 = arith.mulf %200, %204 : vector<5x4xf32>
    %cst_98 = arith.constant dense<0.000000e+00> : vector<5x32xf32>
    %207 = tpu.matmul %206, %22, %cst_98 {dimension_numbers = #tpu.dot_dimension_numbers<[1], [0], [0], [1], [0, 0, 1, 1], [], []>} : vector<5x4xf32>, vector<4x32xf32>, vector<5x32xf32> -> vector<5x32xf32>
    %208 = arith.mulf %207, %163 : vector<5x32xf32>
    %209 = arith.addf %205, %208 : vector<5x32xf32>
    %210 = arith.mulf %202, %204 : vector<5x4xf32>
    %cst_99 = arith.constant dense<0.000000e+00> : vector<5x32xf32>
    %211 = tpu.matmul %210, %22, %cst_99 {dimension_numbers = #tpu.dot_dimension_numbers<[1], [0], [0], [1], [0, 0, 1, 1], [], []>} : vector<5x4xf32>, vector<4x32xf32>, vector<5x32xf32> -> vector<5x32xf32>
    %212 = arith.mulf %211, %164 : vector<5x32xf32>
    %213 = arith.addf %209, %212 : vector<5x32xf32>
    %c5_100 = arith.constant 5 : index
    %c0_101 = arith.constant 0 : index
    %214 = vector.load %arg36[%c5_100, %c0_101] : memref<10x32xf32, #tpu.memory_space<vmem>>, vector<5x32xf32>
    tpu.vector_store %arg36[%c5_100, %c0_101], %213 {strides = array<i32>} : memref<10x32xf32, #tpu.memory_space<vmem>>, vector<5x32xf32>,
    %c0_102 = arith.constant 0 : index
    %c0_103 = arith.constant 0 : index
    %215 = vector.load %arg36[%c0_102, %c0_103] : memref<10x32xf32, #tpu.memory_space<vmem>>, vector<10x32xf32>
    %c0_104 = arith.constant 0 : index
    %c0_105 = arith.constant 0 : index
    %216 = vector.load %arg21[%c0_104, %c0_105] : memref<32x32xf32, #tpu.memory_space<vmem>>, vector<32x32xf32>
    %cst_106 = arith.constant dense<0.000000e+00> : vector<10x32xf32>
    %217 = tpu.matmul %215, %216, %cst_106 {dimension_numbers = #tpu.dot_dimension_numbers<[1], [0], [0], [1], [0, 0, 1, 1], [], []>} : vector<10x32xf32>, vector<32x32xf32>, vector<10x32xf32> -> vector<10x32xf32>
    %c0_107 = arith.constant 0 : index
    %c0_108 = arith.constant 0 : index
    %218 = vector.load %arg22[%c0_107, %c0_108] : memref<1x32xf32, #tpu.memory_space<vmem>>, vector<1x32xf32>
    %219 = vector.broadcast %218 : vector<1x32xf32> to vector<10x32xf32>
    %220 = arith.addf %217, %219 : vector<10x32xf32>
    %221 = arith.addf %150, %220 : vector<10x32xf32>
    %c0_109 = arith.constant 0 : index
    %c0_110 = arith.constant 0 : index
    %222 = vector.load %arg23[%c0_109, %c0_110] : memref<1x32xf32, #tpu.memory_space<vmem>>, vector<1x32xf32>
    %c0_111 = arith.constant 0 : index
    %c0_112 = arith.constant 0 : index
    %223 = vector.load %arg24[%c0_111, %c0_112] : memref<1x32xf32, #tpu.memory_space<vmem>>, vector<1x32xf32>
    %cst_113 = arith.constant dense<0.000000e+00> : vector<10xf32>
    %224 = vector.multi_reduction <add>, %221, %cst_113 [1] : vector<10x32xf32> to vector<10xf32>
    %225 = vector.shape_cast %224 : vector<10xf32> to vector<10x1xf32>
    %cst_114 = arith.constant 3.200000e+01 : f32
    %226 = vector.broadcast %cst_114 : f32 to vector<10x1xf32>
    %227 = arith.divf %225, %226 : vector<10x1xf32>
    %228 = vector.broadcast %227 : vector<10x1xf32> to vector<10x32xf32>
    %229 = arith.subf %221, %228 : vector<10x32xf32>
    %230 = arith.mulf %229, %229 : vector<10x32xf32>
    %cst_115 = arith.constant dense<0.000000e+00> : vector<10xf32>
    %231 = vector.multi_reduction <add>, %230, %cst_115 [1] : vector<10x32xf32> to vector<10xf32>
    %232 = vector.shape_cast %231 : vector<10xf32> to vector<10x1xf32>
    %cst_116 = arith.constant 3.200000e+01 : f32
    %233 = vector.broadcast %cst_116 : f32 to vector<10x1xf32>
    %234 = arith.divf %232, %233 : vector<10x1xf32>
    %cst_117 = arith.constant 9.99999974E-6 : f32
    %235 = vector.broadcast %cst_117 : f32 to vector<10x1xf32>
    %236 = arith.addf %234, %235 : vector<10x1xf32>
    %237 = math.rsqrt %236 : vector<10x1xf32>
    %238 = vector.broadcast %237 : vector<10x1xf32> to vector<10x32xf32>
    %239 = arith.mulf %229, %238 : vector<10x32xf32>
    %240 = vector.broadcast %222 : vector<1x32xf32> to vector<10x32xf32>
    %241 = arith.mulf %239, %240 : vector<10x32xf32>
    %242 = vector.broadcast %223 : vector<1x32xf32> to vector<10x32xf32>
    %243 = arith.addf %241, %242 : vector<10x32xf32>
    %c0_118 = arith.constant 0 : index
    %c0_119 = arith.constant 0 : index
    %244 = vector.load %arg25[%c0_118, %c0_119] : memref<32x64xf32, #tpu.memory_space<vmem>>, vector<32x64xf32>
    %cst_120 = arith.constant dense<0.000000e+00> : vector<10x64xf32>
    %245 = tpu.matmul %243, %244, %cst_120 {dimension_numbers = #tpu.dot_dimension_numbers<[1], [0], [0], [1], [0, 0, 1, 1], [], []>} : vector<10x32xf32>, vector<32x64xf32>, vector<10x64xf32> -> vector<10x64xf32>
    %c0_121 = arith.constant 0 : index
    %c0_122 = arith.constant 0 : index
    %246 = vector.load %arg26[%c0_121, %c0_122] : memref<1x64xf32, #tpu.memory_space<vmem>>, vector<1x64xf32>
    %247 = vector.broadcast %246 : vector<1x64xf32> to vector<10x64xf32>
    %248 = arith.addf %245, %247 : vector<10x64xf32>
    %cst_123 = arith.constant 0.000000e+00 : f32
    %249 = vector.broadcast %cst_123 : f32 to vector<10x64xf32>
    %250 = arith.maximumf %248, %249 : vector<10x64xf32>
    %c0_124 = arith.constant 0 : index
    %c0_125 = arith.constant 0 : index
    %251 = vector.load %arg27[%c0_124, %c0_125] : memref<64x32xf32, #tpu.memory_space<vmem>>, vector<64x32xf32>
    %cst_126 = arith.constant dense<0.000000e+00> : vector<10x32xf32>
    %252 = tpu.matmul %250, %251, %cst_126 {dimension_numbers = #tpu.dot_dimension_numbers<[1], [0], [0], [1], [0, 0, 1, 1], [], []>} : vector<10x64xf32>, vector<64x32xf32>, vector<10x32xf32> -> vector<10x32xf32>
    %c0_127 = arith.constant 0 : index
    %c0_128 = arith.constant 0 : index
    %253 = vector.load %arg28[%c0_127, %c0_128] : memref<1x32xf32, #tpu.memory_space<vmem>>, vector<1x32xf32>
    %254 = vector.broadcast %253 : vector<1x32xf32> to vector<10x32xf32>
    %255 = arith.addf %252, %254 : vector<10x32xf32>
    %256 = arith.addf %243, %255 : vector<10x32xf32>
    %c0_129 = arith.constant 0 : index
    %c0_130 = arith.constant 0 : index
    %257 = vector.load %arg29[%c0_129, %c0_130] : memref<1x32xf32, #tpu.memory_space<vmem>>, vector<1x32xf32>
    %c0_131 = arith.constant 0 : index
    %c0_132 = arith.constant 0 : index
    %258 = vector.load %arg30[%c0_131, %c0_132] : memref<1x32xf32, #tpu.memory_space<vmem>>, vector<1x32xf32>
    %cst_133 = arith.constant dense<0.000000e+00> : vector<10xf32>
    %259 = vector.multi_reduction <add>, %256, %cst_133 [1] : vector<10x32xf32> to vector<10xf32>
    %260 = vector.shape_cast %259 : vector<10xf32> to vector<10x1xf32>
    %cst_134 = arith.constant 3.200000e+01 : f32
    %261 = vector.broadcast %cst_134 : f32 to vector<10x1xf32>
    %262 = arith.divf %260, %261 : vector<10x1xf32>
    %263 = vector.broadcast %262 : vector<10x1xf32> to vector<10x32xf32>
    %264 = arith.subf %256, %263 : vector<10x32xf32>
    %265 = arith.mulf %264, %264 : vector<10x32xf32>
    %cst_135 = arith.constant dense<0.000000e+00> : vector<10xf32>
    %266 = vector.multi_reduction <add>, %265, %cst_135 [1] : vector<10x32xf32> to vector<10xf32>
    %267 = vector.shape_cast %266 : vector<10xf32> to vector<10x1xf32>
    %cst_136 = arith.constant 3.200000e+01 : f32
    %268 = vector.broadcast %cst_136 : f32 to vector<10x1xf32>
    %269 = arith.divf %267, %268 : vector<10x1xf32>
    %cst_137 = arith.constant 9.99999974E-6 : f32
    %270 = vector.broadcast %cst_137 : f32 to vector<10x1xf32>
    %271 = arith.addf %269, %270 : vector<10x1xf32>
    %272 = math.rsqrt %271 : vector<10x1xf32>
    %273 = vector.broadcast %272 : vector<10x1xf32> to vector<10x32xf32>
    %274 = arith.mulf %264, %273 : vector<10x32xf32>
    %275 = vector.broadcast %257 : vector<1x32xf32> to vector<10x32xf32>
    %276 = arith.mulf %274, %275 : vector<10x32xf32>
    %277 = vector.broadcast %258 : vector<1x32xf32> to vector<10x32xf32>
    %278 = arith.addf %276, %277 : vector<10x32xf32>
    %c0_138 = arith.constant 0 : index
    %c0_139 = arith.constant 0 : index
    %279 = vector.load %arg31[%c0_138, %c0_139] : memref<1x32xf32, #tpu.memory_space<vmem>>, vector<1x32xf32>
    %c0_140 = arith.constant 0 : index
    %c0_141 = arith.constant 0 : index
    %280 = vector.load %arg32[%c0_140, %c0_141] : memref<1x32xf32, #tpu.memory_space<vmem>>, vector<1x32xf32>
    %cst_142 = arith.constant dense<0.000000e+00> : vector<10xf32>
    %281 = vector.multi_reduction <add>, %278, %cst_142 [1] : vector<10x32xf32> to vector<10xf32>
    %282 = vector.shape_cast %281 : vector<10xf32> to vector<10x1xf32>
    %cst_143 = arith.constant 3.200000e+01 : f32
    %283 = vector.broadcast %cst_143 : f32 to vector<10x1xf32>
    %284 = arith.divf %282, %283 : vector<10x1xf32>
    %285 = vector.broadcast %284 : vector<10x1xf32> to vector<10x32xf32>
    %286 = arith.subf %278, %285 : vector<10x32xf32>
    %287 = arith.mulf %286, %286 : vector<10x32xf32>
    %cst_144 = arith.constant dense<0.000000e+00> : vector<10xf32>
    %288 = vector.multi_reduction <add>, %287, %cst_144 [1] : vector<10x32xf32> to vector<10xf32>
    %289 = vector.shape_cast %288 : vector<10xf32> to vector<10x1xf32>
    %cst_145 = arith.constant 3.200000e+01 : f32
    %290 = vector.broadcast %cst_145 : f32 to vector<10x1xf32>
    %291 = arith.divf %289, %290 : vector<10x1xf32>
    %cst_146 = arith.constant 9.99999974E-6 : f32
    %292 = vector.broadcast %cst_146 : f32 to vector<10x1xf32>
    %293 = arith.addf %291, %292 : vector<10x1xf32>
    %294 = math.rsqrt %293 : vector<10x1xf32>
    %295 = vector.broadcast %294 : vector<10x1xf32> to vector<10x32xf32>
    %296 = arith.mulf %286, %295 : vector<10x32xf32>
    %297 = vector.broadcast %279 : vector<1x32xf32> to vector<10x32xf32>
    %298 = arith.mulf %296, %297 : vector<10x32xf32>
    %299 = vector.broadcast %280 : vector<1x32xf32> to vector<10x32xf32>
    %300 = arith.addf %298, %299 : vector<10x32xf32>
    %c0_147 = arith.constant 0 : index
    %c0_148 = arith.constant 0 : index
    %301 = vector.load %arg33[%c0_147, %c0_148] : memref<32x3xf32, #tpu.memory_space<vmem>>, vector<32x3xf32>
    %cst_149 = arith.constant dense<0.000000e+00> : vector<10x3xf32>
    %302 = tpu.matmul %300, %301, %cst_149 {dimension_numbers = #tpu.dot_dimension_numbers<[1], [0], [0], [1], [0, 0, 1, 1], [], []>} : vector<10x32xf32>, vector<32x3xf32>, vector<10x3xf32> -> vector<10x3xf32>
    %c0_150 = arith.constant 0 : index
    %c0_151 = arith.constant 0 : index
    %303 = vector.load %arg34[%c0_150, %c0_151] : memref<1x3xf32, #tpu.memory_space<vmem>>, vector<1x3xf32>
    %304 = vector.broadcast %303 : vector<1x3xf32> to vector<10x3xf32>
    %305 = arith.addf %302, %304 : vector<10x3xf32>
    %306 = vector.extract_strided_slice %305 {offsets = [0, 0], sizes = [1, 3], strides = [1, 1]} : vector<10x3xf32> to vector<1x3xf32>
    %c0_152 = arith.constant 0 : index
    %c0_153 = arith.constant 0 : index
    %307 = vector.load %arg35[%c0_152, %c0_153] : memref<2x3xf32, #tpu.memory_space<vmem>>, vector<1x3xf32>
    tpu.vector_store %arg35[%c0_152, %c0_153], %306 {strides = array<i32>} : memref<2x3xf32, #tpu.memory_space<vmem>>, vector<1x3xf32>,
    %308 = vector.extract_strided_slice %305 {offsets = [5, 0], sizes = [1, 3], strides = [1, 1]} : vector<10x3xf32> to vector<1x3xf32>
    %c1_154 = arith.constant 1 : index
    %c0_155 = arith.constant 0 : index
    %309 = vector.load %arg35[%c1_154, %c0_155] : memref<2x3xf32, #tpu.memory_space<vmem>>, vector<1x3xf32>
    tpu.vector_store %arg35[%c1_154, %c0_155], %308 {strides = array<i32>} : memref<2x3xf32, #tpu.memory_space<vmem>>, vector<1x3xf32>,
    return
  }
}

</mosaic_0001>

<llo_original>
// kernel: vit_forward.1
$region0: #{vit_forward.1}
  #allocation0 [shape = 'u32[]', space=smem, size = 0x4, offset = 0x4, fixed_abs, tag = 'smem constant byte address 0x4 - core index']
  #allocation1 [shape = 'u32[144,128]{1,0:T(1,128)}', space=vmem, size = 0x12000, scoped, tag = 'internal scratch']
  #allocation2 [shape = 'f32[10,32]{1,0:T(8,128)}', space=vmem, size = 0x2000, scoped, tag = 'scratch operand']
  %s0 = inlined_call_operand.smem [shape: u32[36], index: -1, kind: input, shape index: {}]
  %s1 = sld [smem:[%s0]]
  %s2 = scalar_lea.smem %s0, 1
  %s3 = sld [smem:[%s2]]
  %s4 = scalar_lea.smem %s0, 2
  %s5 = sld [smem:[%s4]]
  %s6 = scalar_lea.smem %s0, 3
  %s7 = sld [smem:[%s6]]
  %s8 = scalar_lea.smem %s0, 4
  %s9 = sld [smem:[%s8]]
  %s10 = scalar_lea.smem %s0, 5
  %s11 = sld [smem:[%s10]]
  %s12 = scalar_lea.smem %s0, 6
  %s13 = sld [smem:[%s12]]
  %s14 = scalar_lea.smem %s0, 7
  %s15 = sld [smem:[%s14]]
  %s16 = scalar_lea.smem %s0, 8
  %s17 = sld [smem:[%s16]]
  %s18 = scalar_lea.smem %s0, 9
  %s19 = sld [smem:[%s18]]
  %s20 = scalar_lea.smem %s0, 10
  %s21 = sld [smem:[%s20]]
  %s22 = scalar_lea.smem %s0, 11
  %s23 = sld [smem:[%s22]]
  %s24 = scalar_lea.smem %s0, 12
  %s25 = sld [smem:[%s24]]
  %s26 = scalar_lea.smem %s0, 13
  %s27 = sld [smem:[%s26]]
  %s28 = scalar_lea.smem %s0, 14
  %s29 = sld [smem:[%s28]]
  %s30 = scalar_lea.smem %s0, 15
  %s31 = sld [smem:[%s30]]
  %s32 = scalar_lea.smem %s0, 16
  %s33 = sld [smem:[%s32]]
  %s34 = scalar_lea.smem %s0, 17
  %s35 = sld [smem:[%s34]]
  %s36 = scalar_lea.smem %s0, 18
  %s37 = sld [smem:[%s36]]
  %s38 = scalar_lea.smem %s0, 19
  %s39 = sld [smem:[%s38]]
  %s40 = scalar_lea.smem %s0, 20
  %s41 = sld [smem:[%s40]]
  %s42 = scalar_lea.smem %s0, 21
  %s43 = sld [smem:[%s42]]
  %s44 = scalar_lea.smem %s0, 22
  %s45 = sld [smem:[%s44]]
  %s46 = scalar_lea.smem %s0, 23
  %s47 = sld [smem:[%s46]]
  %s48 = scalar_lea.smem %s0, 24
  %s49 = sld [smem:[%s48]]
  %s50 = scalar_lea.smem %s0, 25
  %s51 = sld [smem:[%s50]]
  %s52 = scalar_lea.smem %s0, 26
  %s53 = sld [smem:[%s52]]
  %s54 = scalar_lea.smem %s0, 27
  %s55 = sld [smem:[%s54]]
  %s56 = scalar_lea.smem %s0, 28
  %s57 = sld [smem:[%s56]]
  %s58 = scalar_lea.smem %s0, 29
  %s59 = sld [smem:[%s58]]
  %s60 = scalar_lea.smem %s0, 30
  %s61 = sld [smem:[%s60]]
  %s62 = scalar_lea.smem %s0, 31
  %s63 = sld [smem:[%s62]]
  %s64 = scalar_lea.smem %s0, 32
  %s65 = sld [smem:[%s64]]
  %s66 = scalar_lea.smem %s0, 33
  %s67 = sld [smem:[%s66]]
  %s68 = scalar_lea.smem %s0, 34
  %s69 = sld [smem:[%s68]]
  %s70 = scalar_lea.smem %s0, 35
  %s71 = sld [smem:[%s70]]
  %s72 = sld [smem:[#allocation0]]
  $region150: #{vit_forward.1} parent=0
    _
  %s74 = ssub.s32 1, %s72
  %s75 = scalar_select 0, %s74, %s72
  $region1: #{vit_forward.1} parent=0
    #allocation3 [shape = 'u8[1024]{0}', space=vmem, size = 0x400, scoped, tag = 'output window, operand 0, single buffered']
    #allocation4 [shape = 's32[1]{0}', space=sflag, size = 0x4, scoped, tag = 'scoped memory for vit_forward.1']
    %76 = vsyncpa [#allocation4], 0
    // Predicated region
    $region2: #{vit_forward.1} parent=1 // pred_check
      _
    $region3: #{vit_forward.1} parent=1 // pred_check_branch
      %78 = sbr.rel (0) target = $region5
    $region4: #{vit_forward.1} parent=1 // pred_region
      _
    $region5: #{vit_forward.1} parent=1 // pred_fallthru
      _
    // Predicated region
    $region6: #{vit_forward.1} parent=1 // pred_check
      _
    $region7: #{vit_forward.1} parent=1 // pred_check_branch
      %80 = sbr.rel (0) target = $region9
    $region8: #{vit_forward.1} parent=1 // pred_region
      _
    $region9: #{vit_forward.1} parent=1 // pred_fallthru
      _
    // Predicated region
    $region10: #{vit_forward.1} parent=1 // pred_check
      _
    $region11: #{vit_forward.1} parent=1 // pred_check_branch
      %82 = sbr.rel (0) target = $region13
    $region12: #{vit_forward.1} parent=1 // pred_region
      _
    $region13: #{vit_forward.1} parent=1 // pred_fallthru
      _
    // Predicated region
    $region14: #{vit_forward.1} parent=1 // pred_check
      _
    $region15: #{vit_forward.1} parent=1 // pred_check_branch
      %84 = sbr.rel (0) target = $region17
    $region16: #{vit_forward.1} parent=1 // pred_region
      _
    $region17: #{vit_forward.1} parent=1 // pred_fallthru
      _
    // Predicated region
    $region18: #{vit_forward.1} parent=1 // pred_check
      _
    $region19: #{vit_forward.1} parent=1 // pred_check_branch
      %86 = sbr.rel (0) target = $region21
    $region20: #{vit_forward.1} parent=1 // pred_region
      _
    $region21: #{vit_forward.1} parent=1 // pred_fallthru
      _
    // Predicated region
    $region22: #{vit_forward.1} parent=1 // pred_check
      _
    $region23: #{vit_forward.1} parent=1 // pred_check_branch
      %88 = sbr.rel (0) target = $region25
    $region24: #{vit_forward.1} parent=1 // pred_region
      _
    $region25: #{vit_forward.1} parent=1 // pred_fallthru
      _
    // Predicated region
    $region26: #{vit_forward.1} parent=1 // pred_check
      _
    $region27: #{vit_forward.1} parent=1 // pred_check_branch
      %90 = sbr.rel (0) target = $region29
    $region28: #{vit_forward.1} parent=1 // pred_region
      _
    $region29: #{vit_forward.1} parent=1 // pred_fallthru
      _
    // Predicated region
    $region30: #{vit_forward.1} parent=1 // pred_check
      _
    $region31: #{vit_forward.1} parent=1 // pred_check_branch
      %92 = sbr.rel (0) target = $region33
    $region32: #{vit_forward.1} parent=1 // pred_region
      _
    $region33: #{vit_forward.1} parent=1 // pred_fallthru
      _
    // Predicated region
    $region34: #{vit_forward.1} parent=1 // pred_check
      _
    $region35: #{vit_forward.1} parent=1 // pred_check_branch
      %94 = sbr.rel (0) target = $region37
    $region36: #{vit_forward.1} parent=1 // pred_region
      _
    $region37: #{vit_forward.1} parent=1 // pred_fallthru
      _
    // Predicated region
    $region38: #{vit_forward.1} parent=1 // pred_check
      _
    $region39: #{vit_forward.1} parent=1 // pred_check_branch
      %96 = sbr.rel (0) target = $region41
    $region40: #{vit_forward.1} parent=1 // pred_region
      _
    $region41: #{vit_forward.1} parent=1 // pred_fallthru
      _
    // Predicated region
    $region42: #{vit_forward.1} parent=1 // pred_check
      _
    $region43: #{vit_forward.1} parent=1 // pred_check_branch
      %98 = sbr.rel (0) target = $region45
    $region44: #{vit_forward.1} parent=1 // pred_region
      _
    $region45: #{vit_forward.1} parent=1 // pred_fallthru
      _
    // Predicated region
    $region46: #{vit_forward.1} parent=1 // pred_check
      _
    $region47: #{vit_forward.1} parent=1 // pred_check_branch
      %100 = sbr.rel (0) target = $region49
    $region48: #{vit_forward.1} parent=1 // pred_region
      _
    $region49: #{vit_forward.1} parent=1 // pred_fallthru
      _
    // Predicated region
    $region50: #{vit_forward.1} parent=1 // pred_check
      _
    $region51: #{vit_forward.1} parent=1 // pred_check_branch
      %102 = sbr.rel (0) target = $region53
    $region52: #{vit_forward.1} parent=1 // pred_region
      _
    $region53: #{vit_forward.1} parent=1 // pred_fallthru
      _
    // Predicated region
    $region54: #{vit_forward.1} parent=1 // pred_check
      _
    $region55: #{vit_forward.1} parent=1 // pred_check_branch
      %104 = sbr.rel (0) target = $region57
    $region56: #{vit_forward.1} parent=1 // pred_region
      _
    $region57: #{vit_forward.1} parent=1 // pred_fallthru
      _
    // Predicated region
    $region58: #{vit_forward.1} parent=1 // pred_check
      _
    $region59: #{vit_forward.1} parent=1 // pred_check_branch
      %106 = sbr.rel (0) target = $region61
    $region60: #{vit_forward.1} parent=1 // pred_region
      _
    $region61: #{vit_forward.1} parent=1 // pred_fallthru
      _
    // Predicated region
    $region62: #{vit_forward.1} parent=1 // pred_check
      _
    $region63: #{vit_forward.1} parent=1 // pred_check_branch
      %108 = sbr.rel (0) target = $region65
    $region64: #{vit_forward.1} parent=1 // pred_region
      _
    $region65: #{vit_forward.1} parent=1 // pred_fallthru
      _
    // Predicated region
    $region66: #{vit_forward.1} parent=1 // pred_check
      _
    $region67: #{vit_forward.1} parent=1 // pred_check_branch
      %110 = sbr.rel (0) target = $region69
    $region68: #{vit_forward.1} parent=1 // pred_region
      _
    $region69: #{vit_forward.1} parent=1 // pred_fallthru
      _
    // Predicated region
    $region70: #{vit_forward.1} parent=1 // pred_check
      _
    $region71: #{vit_forward.1} parent=1 // pred_check_branch
      %112 = sbr.rel (0) target = $region73
    $region72: #{vit_forward.1} parent=1 // pred_region
      _
    $region73: #{vit_forward.1} parent=1 // pred_fallthru
      _
    // Predicated region
    $region74: #{vit_forward.1} parent=1 // pred_check
      _
    $region75: #{vit_forward.1} parent=1 // pred_check_branch
      %114 = sbr.rel (0) target = $region77
    $region76: #{vit_forward.1} parent=1 // pred_region
      _
    $region77: #{vit_forward.1} parent=1 // pred_fallthru
      _
    // Predicated region
    $region78: #{vit_forward.1} parent=1 // pred_check
      _
    $region79: #{vit_forward.1} parent=1 // pred_check_branch
      %116 = sbr.rel (0) target = $region81
    $region80: #{vit_forward.1} parent=1 // pred_region
      _
    $region81: #{vit_forward.1} parent=1 // pred_fallthru
      _
    // Predicated region
    $region82: #{vit_forward.1} parent=1 // pred_check
      _
    $region83: #{vit_forward.1} parent=1 // pred_check_branch
      %118 = sbr.rel (0) target = $region85
    $region84: #{vit_forward.1} parent=1 // pred_region
      _
    $region85: #{vit_forward.1} parent=1 // pred_fallthru
      _
    // Predicated region
    $region86: #{vit_forward.1} parent=1 // pred_check
      _
    $region87: #{vit_forward.1} parent=1 // pred_check_branch
      %120 = sbr.rel (0) target = $region89
    $region88: #{vit_forward.1} parent=1 // pred_region
      _
    $region89: #{vit_forward.1} parent=1 // pred_fallthru
      _
    // Predicated region
    $region90: #{vit_forward.1} parent=1 // pred_check
      _
    $region91: #{vit_forward.1} parent=1 // pred_check_branch
      %122 = sbr.rel (0) target = $region93
    $region92: #{vit_forward.1} parent=1 // pred_region
      _
    $region93: #{vit_forward.1} parent=1 // pred_fallthru
      _
    // Predicated region
    $region94: #{vit_forward.1} parent=1 // pred_check
      _
    $region95: #{vit_forward.1} parent=1 // pred_check_branch
      %124 = sbr.rel (0) target = $region97
    $region96: #{vit_forward.1} parent=1 // pred_region
      _
    $region97: #{vit_forward.1} parent=1 // pred_fallthru
      _
    // Predicated region
    $region98: #{vit_forward.1} parent=1 // pred_check
      _
    $region99: #{vit_forward.1} parent=1 // pred_check_branch
      %126 = sbr.rel (0) target = $region101
    $region100: #{vit_forward.1} parent=1 // pred_region
      _
    $region101: #{vit_forward.1} parent=1 // pred_fallthru
      _
    // Predicated region
    $region102: #{vit_forward.1} parent=1 // pred_check
      _
    $region103: #{vit_forward.1} parent=1 // pred_check_branch
      %128 = sbr.rel (0) target = $region105
    $region104: #{vit_forward.1} parent=1 // pred_region
      _
    $region105: #{vit_forward.1} parent=1 // pred_fallthru
      _
    // Predicated region
    $region106: #{vit_forward.1} parent=1 // pred_check
      _
    $region107: #{vit_forward.1} parent=1 // pred_check_branch
      %130 = sbr.rel (0) target = $region109
    $region108: #{vit_forward.1} parent=1 // pred_region
      _
    $region109: #{vit_forward.1} parent=1 // pred_fallthru
      _
    // Predicated region
    $region110: #{vit_forward.1} parent=1 // pred_check
      _
    $region111: #{vit_forward.1} parent=1 // pred_check_branch
      %132 = sbr.rel (0) target = $region113
    $region112: #{vit_forward.1} parent=1 // pred_region
      _
    $region113: #{vit_forward.1} parent=1 // pred_fallthru
      _
    // Predicated region
    $region114: #{vit_forward.1} parent=1 // pred_check
      _
    $region115: #{vit_forward.1} parent=1 // pred_check_branch
      %134 = sbr.rel (0) target = $region117
    $region116: #{vit_forward.1} parent=1 // pred_region
      _
    $region117: #{vit_forward.1} parent=1 // pred_fallthru
      _
    // Predicated region
    $region118: #{vit_forward.1} parent=1 // pred_check
      _
    $region119: #{vit_forward.1} parent=1 // pred_check_branch
      %136 = sbr.rel (0) target = $region121
    $region120: #{vit_forward.1} parent=1 // pred_region
      _
    $region121: #{vit_forward.1} parent=1 // pred_fallthru
      _
    // Predicated region
    $region122: #{vit_forward.1} parent=1 // pred_check
      _
    $region123: #{vit_forward.1} parent=1 // pred_check_branch
      %138 = sbr.rel (0) target = $region125
    $region124: #{vit_forward.1} parent=1 // pred_region
      _
    $region125: #{vit_forward.1} parent=1 // pred_fallthru
      _
    // Predicated region
    $region126: #{vit_forward.1} parent=1 // pred_check
      _
    $region127: #{vit_forward.1} parent=1 // pred_check_branch
      %140 = sbr.rel (0) target = $region129
    $region128: #{vit_forward.1} parent=1 // pred_region
      _
    $region129: #{vit_forward.1} parent=1 // pred_fallthru
      _
    // Predicated region
    $region130: #{vit_forward.1} parent=1 // pred_check
      _
    $region131: #{vit_forward.1} parent=1 // pred_check_branch
      %142 = sbr.rel (0) target = $region133
    $region132: #{vit_forward.1} parent=1 // pred_region
      _
    $region133: #{vit_forward.1} parent=1 // pred_fallthru
      _
    // Predicated region
    $region134: #{vit_forward.1} parent=1 // pred_check
      _
    $region135: #{vit_forward.1} parent=1 // pred_check_branch
      %144 = sbr.rel (0) target = $region137
    $region136: #{vit_forward.1} parent=1 // pred_region
      _
    $region137: #{vit_forward.1} parent=1 // pred_fallthru
      _
    // Predicated region
    $region138: #{vit_forward.1} parent=1 // pred_check
      _
    $region139: #{vit_forward.1} parent=1 // pred_check_branch
      %146 = sbr.rel (0) target = $region141
    $region140: #{vit_forward.1} parent=1 // pred_region
      _
    $region141: #{vit_forward.1} parent=1 // pred_fallthru
      _
    %v147 = vld [vmem:[%s1] sm:$0xff]
    %v148 = vld [vmem:[%s1 + $0x8] sm:$0xff]
    %v149 = vld [vmem:[%s3] sm:$0xff]
    %v150 = vld [vmem:[%s3 + $0x8] sm:$0xff]
    %v151 = vld [vmem:[%s3 + $0x10] sm:$0xff]
    %v152 = vld [vmem:[%s3 + $0x18] sm:$0xff]
    %v153 = vld [vmem:[%s3 + $0x20] sm:$0xff]
    %v154 = vld [vmem:[%s3 + $0x28] sm:$0xff]
    %v155 = vld [vmem:[%s3 + $0x30] sm:$0xff]
    %v156 = vld [vmem:[%s3 + $0x38] sm:$0xff]
    %v157 = vld [vmem:[%s3 + $0x40] sm:$0xff]
    %v158 = vld [vmem:[%s3 + $0x48] sm:$0xff]
    %v159 = vld [vmem:[%s3 + $0x50] sm:$0xff]
    %v160 = vld [vmem:[%s3 + $0x58] sm:$0xff]
    %v161 = vld [vmem:[%s3 + $0x60] sm:$0xff]
    %v162 = vld [vmem:[%s3 + $0x68] sm:$0xff]
    %v163 = vld [vmem:[%s3 + $0x70] sm:$0xff]
    %v164 = vld [vmem:[%s3 + $0x78] sm:$0xff]
    %v165 = vld [vmem:[%s3 + $0x80] sm:$0xff]
    %v166 = vld [vmem:[%s3 + $0x88] sm:$0xff]
    %v167 = vld [vmem:[%s3 + $0x90] sm:$0xff]
    %v168 = vld [vmem:[%s3 + $0x98] sm:$0xff]
    %v169 = vld [vmem:[%s3 + $0xa0] sm:$0xff]
    %v170 = vld [vmem:[%s3 + $0xa8] sm:$0xff]
    %v171 = vld [vmem:[%s3 + $0xb0] sm:$0xff]
    %v172 = vld [vmem:[%s3 + $0xb8] sm:$0xff]
    %v173 = vld [vmem:[%s5] sm:$0x1]
    %v175 = vlaneseq
    %v176 = vshrl.u32 %v175, 7
    %v177 = vsub.s32 0, %v176
    %v178 = vrot.slane %v173, %v177
    %vm180 = vcmask 523264
    %v182 = vsel %vm180, %v148, 0
    %184 = vmatprep.subr.mxu0 0.0
    %185 = vmatpush1.msra.mxu0 %v149
    %186 = vmatprep.subr.mxu0 0.0
    %187 = vmatpush1.msra.mxu0 %v150
    %188 = vmatprep.subr.mxu0 0.0
    %189 = vmatpush1.msra.mxu0 %v151
    %190 = vmatprep.subr.mxu0 0.0
    %191 = vmatpush1.msra.mxu0 %v152
    %192 = vmatprep.subr.mxu0 0.0
    %193 = vmatpush1.msra.mxu0 %v153
    %194 = vmatprep.subr.mxu0 0.0
    %195 = vmatpush1.msra.mxu0 %v154
    %196 = vmatprep.subr.mxu0 0.0
    %197 = vmatpush1.msra.mxu0 %v155
    %198 = vmatprep.subr.mxu0 0.0
    %199 = vmatpush1.msra.mxu0 %v156
    %200 = vmatprep.subr.mxu0 0.0
    %201 = vmatpush1.msra.mxu0 %v157
    %202 = vmatprep.subr.mxu0 0.0
    %203 = vmatpush1.msra.mxu0 %v158
    %204 = vmatprep.subr.mxu0 0.0
    %205 = vmatpush1.msra.mxu0 %v159
    %206 = vmatprep.subr.mxu0 0.0
    %207 = vmatpush1.msra.mxu0 %v160
    %208 = vmatprep.subr.mxu0 0.0
    %209 = vmatpush1.msra.mxu0 %v161
    %210 = vmatprep.subr.mxu0 0.0
    %211 = vmatpush1.msra.mxu0 %v162
    %212 = vmatprep.subr.mxu0 0.0
    %213 = vmatpush1.msra.mxu0 %v163
    %214 = vmatprep.subr.mxu0 0.0
    %215 = vmatpush1.msra.mxu0 %v164
    %216 = vmatprep.subr.mxu0 0.0
    %217 = vmatpush1.msra.mxu0 %v165
    %218 = vmatprep.subr.mxu0 0.0
    %219 = vmatpush1.msra.mxu0 %v166
    %220 = vmatprep.subr.mxu0 0.0
    %221 = vmatpush1.msra.mxu0 %v167
    %222 = vmatprep.subr.mxu0 0.0
    %223 = vmatpush1.msra.mxu0 %v168
    %224 = vmatprep.subr.mxu0 0.0
    %225 = vmatpush1.msra.mxu0 %v169
    %226 = vmatprep.subr.mxu0 0.0
    %227 = vmatpush1.msra.mxu0 %v170
    %228 = vmatprep.subr.mxu0 0.0
    %229 = vmatpush1.msra.mxu0 %v171
    %230 = vmatprep.subr.mxu0 0.0
    %231 = vmatpush1.msra.mxu0 %v172
    %232 = vmatprep.subr.mxu0 0.0
    %233 = vmatpush1.msra.mxu0 0.0
    %234 = vmatprep.subr.mxu0 0.0
    %235 = vmatpush1.msra.mxu0 0.0
    %236 = vmatprep.subr.mxu0 0.0
    %237 = vmatpush1.msra.mxu0 0.0
    %238 = vmatprep.subr.mxu0 0.0
    %239 = vmatpush1.msra.mxu0 0.0
    %240 = vmatprep.subr.mxu0 0.0
    %241 = vmatpush1.msra.mxu0 0.0
    %242 = vmatprep.subr.mxu0 0.0
    %243 = vmatpush1.msra.mxu0 0.0
    %244 = vmatprep.subr.mxu0 0.0
    %245 = vmatpush1.msra.mxu0 0.0
    %246 = vmatprep.subr.mxu0 0.0
    %247 = vmatpush1.msra.mxu0 0.0
    %248 = vmatprep.mubr.f32.mxu0 %v182
    %249 = vmatmul.mubr.f32.gmra.mrb[0].mxu0 %v147
    %v250 = vpop.f32.mrb[0].mxu0
    %v251 = vadd.f32 %v178, %v250
    %v252 = vpop.f32.mrb[0].mxu0
    %253 = vdwg.mxu0
    %v254 = vld [vmem:[%s9] sm:$0x1f]
    %v255 = vld [vmem:[%s7] sm:$0x1]
    %v256 = vadd.f32 %v255, %v254
    %vm257 = vcmask 253952
    %258 = vst.msk [vmem:[#allocation2] sm:$0x1] %vm257, %v256
    %v260 = vrot.slane %v254, 1
    %v262 = vadd.f32 %v251, %v260
    %vm263 = vcmask 257024
    %264 = vst.msk [vmem:[#allocation2 + $0x1] sm:$0xf] %vm263, %v262
    %265 = vst.msk [vmem:[#allocation2 + $0x5] sm:$0x1] %vm257, %v256
    %v266 = vrot.slane %v254, 5
    %v268 = vadd.f32 %v251, %v266
    %vm269 = vcmask 261124
    %270 = vst.msk [vmem:[#allocation2 + $0x2] sm:$0xf0] %vm269, %v268
    %v271 = vld [vmem:[#allocation2] sm:$0xff]
    %v272 = vld [vmem:[#allocation2 + $0x8] sm:$0x3]
    %v273 = vld [vmem:[%s11] sm:$0xff]
    %v274 = vld [vmem:[%s11 + $0x8] sm:$0xff]
    %v275 = vld [vmem:[%s11 + $0x10] sm:$0xff]
    %v276 = vld [vmem:[%s11 + $0x18] sm:$0xff]
    %v277 = vld [vmem:[%s13] sm:$0xf]
    %v278 = vld [vmem:[%s15] sm:$0xff]
    %v279 = vld [vmem:[%s15 + $0x8] sm:$0xff]
    %v280 = vld [vmem:[%s15 + $0x10] sm:$0xff]
    %v281 = vld [vmem:[%s15 + $0x18] sm:$0xff]
    %v282 = vld [vmem:[%s17] sm:$0x1]
    %v284 = vlaneseq
    %v285 = vshrl.u32 %v284, 7
    %v286 = vsub.s32 0, %v285
    %v287 = vrot.slane %v282, %v286
    %vm289 = vcmask 261120
    %v291 = vsel %vm289, %v271, 0
    %v294 = vsel %vm289, %v272, 0
    %296 = vmatprep.subr.mxu0 0.0
    %297 = vmatpush1.msra.mxu0 %v278
    %298 = vmatprep.subr.mxu0 0.0
    %299 = vmatpush1.msra.mxu0 %v279
    %300 = vmatprep.subr.mxu0 0.0
    %301 = vmatpush1.msra.mxu0 %v280
    %302 = vmatprep.subr.mxu0 0.0
    %303 = vmatpush1.msra.mxu0 %v281
    %304 = vmatprep.subr.mxu0 0.0
    %305 = vmatpush1.msra.mxu0 0.0
    %306 = vmatprep.subr.mxu0 0.0
    %307 = vmatpush1.msra.mxu0 0.0
    %308 = vmatprep.subr.mxu0 0.0
    %309 = vmatpush1.msra.mxu0 0.0
    %310 = vmatprep.subr.mxu0 0.0
    %311 = vmatpush1.msra.mxu0 0.0
    %312 = vmatprep.subr.mxu0 0.0
    %313 = vmatpush1.msra.mxu0 0.0
    %314 = vmatprep.subr.mxu0 0.0
    %315 = vmatpush1.msra.mxu0 0.0
    %316 = vmatprep.subr.mxu0 0.0
    %317 = vmatpush1.msra.mxu0 0.0
    %318 = vmatprep.subr.mxu0 0.0
    %319 = vmatpush1.msra.mxu0 0.0
    %320 = vmatprep.subr.mxu0 0.0
    %321 = vmatpush1.msra.mxu0 0.0
    %322 = vmatprep.subr.mxu0 0.0
    %323 = vmatpush1.msra.mxu0 0.0
    %324 = vmatprep.subr.mxu0 0.0
    %325 = vmatpush1.msra.mxu0 0.0
    %326 = vmatprep.subr.mxu0 0.0
    %327 = vmatpush1.msra.mxu0 0.0
    %328 = vmatprep.subr.mxu0 0.0
    %329 = vmatpush1.msra.mxu0 0.0
    %330 = vmatprep.subr.mxu0 0.0
    %331 = vmatpush1.msra.mxu0 0.0
    %332 = vmatprep.subr.mxu0 0.0
    %333 = vmatpush1.msra.mxu0 0.0
    %334 = vmatprep.subr.mxu0 0.0
    %335 = vmatpush1.msra.mxu0 0.0
    %336 = vmatprep.subr.mxu0 0.0
    %337 = vmatpush1.msra.mxu0 0.0
    %338 = vmatprep.subr.mxu0 0.0
    %339 = vmatpush1.msra.mxu0 0.0
    %340 = vmatprep.subr.mxu0 0.0
    %341 = vmatpush1.msra.mxu0 0.0
    %342 = vmatprep.subr.mxu0 0.0
    %343 = vmatpush1.msra.mxu0 0.0
    %344 = vmatprep.subr.mxu0 0.0
    %345 = vmatpush1.msra.mxu0 0.0
    %346 = vmatprep.subr.mxu0 0.0
    %347 = vmatpush1.msra.mxu0 0.0
    %348 = vmatprep.subr.mxu0 0.0
    %349 = vmatpush1.msra.mxu0 0.0
    %350 = vmatprep.subr.mxu0 0.0
    %351 = vmatpush1.msra.mxu0 0.0
    %352 = vmatprep.subr.mxu0 0.0
    %353 = vmatpush1.msra.mxu0 0.0
    %354 = vmatprep.subr.mxu0 0.0
    %355 = vmatpush1.msra.mxu0 0.0
    %356 = vmatprep.subr.mxu0 0.0
    %357 = vmatpush1.msra.mxu0 0.0
    %358 = vmatprep.subr.mxu0 0.0
    %359 = vmatpush1.msra.mxu0 0.0
    %360 = vmatprep.mubr.f32.mxu0 0.0
    %361 = vmatmul.mubr.f32.gmra.mrb[0].mxu0 %v291
    %v362 = vpop.f32.mrb[0].mxu0
    %v363 = vadd.f32 %v287, %v362
    %v364 = vpop.f32.mrb[0].mxu0
    %365 = vmatprep.mubr.f32.mxu0 0.0
    %366 = vmatmul.mubr.f32.gmra.mrb[0].mxu0 %v294
    %v367 = vpop.f32.mrb[0].mxu0
    %v368 = vadd.f32 %v287, %v367
    %v369 = vpop.f32.mrb[0].mxu0
    %370 = vdwg.mxu0
    %372 = vrot.lane.b32.xlu0 %v363, 96
    %v373 = vpop.permute.xlu0 %372
    %v375 = vmul.f32 %v363, %v373
    %v377 = vsel %vm289, %v375, 0
    %379 = vmatprep.subr.mxu0 0.0
    %380 = vmatpush1.msra.mxu0 %v273
    %381 = vmatprep.subr.mxu0 0.0
    %382 = vmatpush1.msra.mxu0 %v274
    %383 = vmatprep.subr.mxu0 0.0
    %384 = vmatpush1.msra.mxu0 %v275
    %385 = vmatprep.subr.mxu0 0.0
    %386 = vmatpush1.msra.mxu0 %v276
    %387 = vmatprep.subr.mxu0 0.0
    %388 = vmatpush1.msra.mxu0 0.0
    %389 = vmatprep.subr.mxu0 0.0
    %390 = vmatpush1.msra.mxu0 0.0
    %391 = vmatprep.subr.mxu0 0.0
    %392 = vmatpush1.msra.mxu0 0.0
    %393 = vmatprep.subr.mxu0 0.0
    %394 = vmatpush1.msra.mxu0 0.0
    %395 = vmatprep.subr.mxu0 0.0
    %396 = vmatpush1.msra.mxu0 0.0
    %397 = vmatprep.subr.mxu0 0.0
    %398 = vmatpush1.msra.mxu0 0.0
    %399 = vmatprep.subr.mxu0 0.0
    %400 = vmatpush1.msra.mxu0 0.0
    %401 = vmatprep.subr.mxu0 0.0
    %402 = vmatpush1.msra.mxu0 0.0
    %403 = vmatprep.subr.mxu0 0.0
    %404 = vmatpush1.msra.mxu0 0.0
    %405 = vmatprep.subr.mxu0 0.0
    %406 = vmatpush1.msra.mxu0 0.0
    %407 = vmatprep.subr.mxu0 0.0
    %408 = vmatpush1.msra.mxu0 0.0
    %409 = vmatprep.subr.mxu0 0.0
    %410 = vmatpush1.msra.mxu0 0.0
    %411 = vmatprep.subr.mxu0 0.0
    %412 = vmatpush1.msra.mxu0 0.0
    %413 = vmatprep.subr.mxu0 0.0
    %414 = vmatpush1.msra.mxu0 0.0
    %415 = vmatprep.subr.mxu0 0.0
    %416 = vmatpush1.msra.mxu0 0.0
    %417 = vmatprep.subr.mxu0 0.0
    %418 = vmatpush1.msra.mxu0 0.0
    %419 = vmatprep.subr.mxu0 0.0
    %420 = vmatpush1.msra.mxu0 0.0
    %421 = vmatprep.subr.mxu0 0.0
    %422 = vmatpush1.msra.mxu0 0.0
    %423 = vmatprep.subr.mxu0 0.0
    %424 = vmatpush1.msra.mxu0 0.0
    %425 = vmatprep.subr.mxu0 0.0
    %426 = vmatpush1.msra.mxu0 0.0
    %427 = vmatprep.subr.mxu0 0.0
    %428 = vmatpush1.msra.mxu0 0.0
    %429 = vmatprep.subr.mxu0 0.0
    %430 = vmatpush1.msra.mxu0 0.0
    %431 = vmatprep.subr.mxu0 0.0
    %432 = vmatpush1.msra.mxu0 0.0
    %433 = vmatprep.subr.mxu0 0.0
    %434 = vmatpush1.msra.mxu0 0.0
    %435 = vmatprep.subr.mxu0 0.0
    %436 = vmatpush1.msra.mxu0 0.0
    %437 = vmatprep.subr.mxu0 0.0
    %438 = vmatpush1.msra.mxu0 0.0
    %439 = vmatprep.subr.mxu0 0.0
    %440 = vmatpush1.msra.mxu0 0.0
    %441 = vmatprep.subr.mxu0 0.0
    %442 = vmatpush1.msra.mxu0 0.0
    %443 = vmatprep.mubr.f32.mxu0 0.0
    %444 = vmatmul.mubr.f32.gmra.mrb[0].mxu0 %v377
    %v445 = vpop.f32.mrb[0].mxu0
    %v446 = vadd.f32 0.0, %v445
    %v447 = vpop.f32.mrb[0].mxu0
    %448 = vdwg.mxu0
    %v449 = vmul.f32 %v446, 0.35355338
    %vm451 = vcmask 1042432
    %v452 = vrot.slane %v363, 5
    %v453 = vrot.slane %v368, 5
    %v454 = vsel %vm451, %v452, %v453
    %455 = vrot.lane.b32.xlu0 %v454, 96
    %v456 = vpop.permute.xlu0 %455
    %v458 = vmul.f32 %v363, %v456
    %v460 = vsel %vm289, %v458, 0
    %462 = vmatprep.subr.mxu0 0.0
    %463 = vmatpush1.msra.mxu0 %v273
    %464 = vmatprep.subr.mxu0 0.0
    %465 = vmatpush1.msra.mxu0 %v274
    %466 = vmatprep.subr.mxu0 0.0
    %467 = vmatpush1.msra.mxu0 %v275
    %468 = vmatprep.subr.mxu0 0.0
    %469 = vmatpush1.msra.mxu0 %v276
    %470 = vmatprep.subr.mxu0 0.0
    %471 = vmatpush1.msra.mxu0 0.0
    %472 = vmatprep.subr.mxu0 0.0
    %473 = vmatpush1.msra.mxu0 0.0
    %474 = vmatprep.subr.mxu0 0.0
    %475 = vmatpush1.msra.mxu0 0.0
    %476 = vmatprep.subr.mxu0 0.0
    %477 = vmatpush1.msra.mxu0 0.0
    %478 = vmatprep.subr.mxu0 0.0
    %479 = vmatpush1.msra.mxu0 0.0
    %480 = vmatprep.subr.mxu0 0.0
    %481 = vmatpush1.msra.mxu0 0.0
    %482 = vmatprep.subr.mxu0 0.0
    %483 = vmatpush1.msra.mxu0 0.0
    %484 = vmatprep.subr.mxu0 0.0
    %485 = vmatpush1.msra.mxu0 0.0
    %486 = vmatprep.subr.mxu0 0.0
    %487 = vmatpush1.msra.mxu0 0.0
    %488 = vmatprep.subr.mxu0 0.0
    %489 = vmatpush1.msra.mxu0 0.0
    %490 = vmatprep.subr.mxu0 0.0
    %491 = vmatpush1.msra.mxu0 0.0
    %492 = vmatprep.subr.mxu0 0.0
    %493 = vmatpush1.msra.mxu0 0.0
    %494 = vmatprep.subr.mxu0 0.0
    %495 = vmatpush1.msra.mxu0 0.0
    %496 = vmatprep.subr.mxu0 0.0
    %497 = vmatpush1.msra.mxu0 0.0
    %498 = vmatprep.subr.mxu0 0.0
    %499 = vmatpush1.msra.mxu0 0.0
    %500 = vmatprep.subr.mxu0 0.0
    %501 = vmatpush1.msra.mxu0 0.0
    %502 = vmatprep.subr.mxu0 0.0
    %503 = vmatpush1.msra.mxu0 0.0
    %504 = vmatprep.subr.mxu0 0.0
    %505 = vmatpush1.msra.mxu0 0.0
    %506 = vmatprep.subr.mxu0 0.0
    %507 = vmatpush1.msra.mxu0 0.0
    %508 = vmatprep.subr.mxu0 0.0
    %509 = vmatpush1.msra.mxu0 0.0
    %510 = vmatprep.subr.mxu0 0.0
    %511 = vmatpush1.msra.mxu0 0.0
    %512 = vmatprep.subr.mxu0 0.0
    %513 = vmatpush1.msra.mxu0 0.0
    %514 = vmatprep.subr.mxu0 0.0
    %515 = vmatpush1.msra.mxu0 0.0
    %516 = vmatprep.subr.mxu0 0.0
    %517 = vmatpush1.msra.mxu0 0.0
    %518 = vmatprep.subr.mxu0 0.0
    %519 = vmatpush1.msra.mxu0 0.0
    %520 = vmatprep.subr.mxu0 0.0
    %521 = vmatpush1.msra.mxu0 0.0
    %522 = vmatprep.subr.mxu0 0.0
    %523 = vmatpush1.msra.mxu0 0.0
    %524 = vmatprep.subr.mxu0 0.0
    %525 = vmatpush1.msra.mxu0 0.0
    %526 = vmatprep.mubr.f32.mxu0 0.0
    %527 = vmatmul.mubr.f32.gmra.mrb[0].mxu0 %v460
    %v528 = vpop.f32.mrb[0].mxu0
    %v529 = vadd.f32 0.0, %v528
    %v530 = vpop.f32.mrb[0].mxu0
    %531 = vdwg.mxu0
    %v532 = vmul.f32 %v529, 0.35355338
    %v533 = vmax.f32 %v449, %v532
    %v534 = vsub.f32 %v449, %v533
    %v535 = vmul.f32 %v534, 1.442695
    %v536 = vpow.pop %v535
    %v537 = vsub.f32 %v532, %v533
    %v538 = vmul.f32 %v537, 1.442695
    %v539 = vpow.pop %v538
    %v540 = vadd.f32 %v536, %v539
    %v541 = vrcp.pop %v540
    %v542 = vmul.f32 %v536, %v541
    %vm543 = vcmask 31744
    %v545 = vsel %vm543, %v542, 0
    %vm547 = vcmask 1043456
    %v549 = vsel %vm547, %v277, 0
    %551 = vmatprep.subr.mxu0 0.0
    %552 = vmatpush1.msra.mxu0 %v549
    %553 = vmatprep.subr.mxu0 0.0
    %554 = vmatpush1.msra.mxu0 0.0
    %555 = vmatprep.subr.mxu0 0.0
    %556 = vmatpush1.msra.mxu0 0.0
    %557 = vmatprep.subr.mxu0 0.0
    %558 = vmatpush1.msra.mxu0 0.0
    %559 = vmatprep.subr.mxu0 0.0
    %560 = vmatpush1.msra.mxu0 0.0
    %561 = vmatprep.subr.mxu0 0.0
    %562 = vmatpush1.msra.mxu0 0.0
    %563 = vmatprep.subr.mxu0 0.0
    %564 = vmatpush1.msra.mxu0 0.0
    %565 = vmatprep.subr.mxu0 0.0
    %566 = vmatpush1.msra.mxu0 0.0
    %567 = vmatprep.subr.mxu0 0.0
    %568 = vmatpush1.msra.mxu0 0.0
    %569 = vmatprep.subr.mxu0 0.0
    %570 = vmatpush1.msra.mxu0 0.0
    %571 = vmatprep.subr.mxu0 0.0
    %572 = vmatpush1.msra.mxu0 0.0
    %573 = vmatprep.subr.mxu0 0.0
    %574 = vmatpush1.msra.mxu0 0.0
    %575 = vmatprep.subr.mxu0 0.0
    %576 = vmatpush1.msra.mxu0 0.0
    %577 = vmatprep.subr.mxu0 0.0
    %578 = vmatpush1.msra.mxu0 0.0
    %579 = vmatprep.subr.mxu0 0.0
    %580 = vmatpush1.msra.mxu0 0.0
    %581 = vmatprep.subr.mxu0 0.0
    %582 = vmatpush1.msra.mxu0 0.0
    %583 = vmatprep.subr.mxu0 0.0
    %584 = vmatpush1.msra.mxu0 0.0
    %585 = vmatprep.subr.mxu0 0.0
    %586 = vmatpush1.msra.mxu0 0.0
    %587 = vmatprep.subr.mxu0 0.0
    %588 = vmatpush1.msra.mxu0 0.0
    %589 = vmatprep.subr.mxu0 0.0
    %590 = vmatpush1.msra.mxu0 0.0
    %591 = vmatprep.subr.mxu0 0.0
    %592 = vmatpush1.msra.mxu0 0.0
    %593 = vmatprep.subr.mxu0 0.0
    %594 = vmatpush1.msra.mxu0 0.0
    %595 = vmatprep.subr.mxu0 0.0
    %596 = vmatpush1.msra.mxu0 0.0
    %597 = vmatprep.subr.mxu0 0.0
    %598 = vmatpush1.msra.mxu0 0.0
    %599 = vmatprep.subr.mxu0 0.0
    %600 = vmatpush1.msra.mxu0 0.0
    %601 = vmatprep.subr.mxu0 0.0
    %602 = vmatpush1.msra.mxu0 0.0
    %603 = vmatprep.subr.mxu0 0.0
    %604 = vmatpush1.msra.mxu0 0.0
    %605 = vmatprep.subr.mxu0 0.0
    %606 = vmatpush1.msra.mxu0 0.0
    %607 = vmatprep.subr.mxu0 0.0
    %608 = vmatpush1.msra.mxu0 0.0
    %609 = vmatprep.subr.mxu0 0.0
    %610 = vmatpush1.msra.mxu0 0.0
    %611 = vmatprep.subr.mxu0 0.0
    %612 = vmatpush1.msra.mxu0 0.0
    %613 = vmatprep.subr.mxu0 0.0
    %614 = vmatpush1.msra.mxu0 0.0
    %615 = vmatprep.mubr.f32.mxu0 0.0
    %616 = vmatmul.mubr.f32.gmra.mrb[0].mxu0 %v545
    %v617 = vpop.f32.mrb[0].mxu0
    %v618 = vadd.f32 0.0, %v617
    %v619 = vpop.f32.mrb[0].mxu0
    %620 = vdwg.mxu0
    %621 = vrot.lane.b32.xlu0 %v363, 64
    %v622 = vpop.permute.xlu0 %621
    %v624 = vmul.f32 %v618, %v622
    %v625 = vadd.f32 %v624, 0.0
    %v626 = vmul.f32 %v539, %v541
    %v628 = vsel %vm543, %v626, 0
    %630 = vmatprep.subr.mxu0 0.0
    %631 = vmatpush1.msra.mxu0 %v549
    %632 = vmatprep.subr.mxu0 0.0
    %633 = vmatpush1.msra.mxu0 0.0
    %634 = vmatprep.subr.mxu0 0.0
    %635 = vmatpush1.msra.mxu0 0.0
    %636 = vmatprep.subr.mxu0 0.0
    %637 = vmatpush1.msra.mxu0 0.0
    %638 = vmatprep.subr.mxu0 0.0
    %639 = vmatpush1.msra.mxu0 0.0
    %640 = vmatprep.subr.mxu0 0.0
    %641 = vmatpush1.msra.mxu0 0.0
    %642 = vmatprep.subr.mxu0 0.0
    %643 = vmatpush1.msra.mxu0 0.0
    %644 = vmatprep.subr.mxu0 0.0
    %645 = vmatpush1.msra.mxu0 0.0
    %646 = vmatprep.subr.mxu0 0.0
    %647 = vmatpush1.msra.mxu0 0.0
    %648 = vmatprep.subr.mxu0 0.0
    %649 = vmatpush1.msra.mxu0 0.0
    %650 = vmatprep.subr.mxu0 0.0
    %651 = vmatpush1.msra.mxu0 0.0
    %652 = vmatprep.subr.mxu0 0.0
    %653 = vmatpush1.msra.mxu0 0.0
    %654 = vmatprep.subr.mxu0 0.0
    %655 = vmatpush1.msra.mxu0 0.0
    %656 = vmatprep.subr.mxu0 0.0
    %657 = vmatpush1.msra.mxu0 0.0
    %658 = vmatprep.subr.mxu0 0.0
    %659 = vmatpush1.msra.mxu0 0.0
    %660 = vmatprep.subr.mxu0 0.0
    %661 = vmatpush1.msra.mxu0 0.0
    %662 = vmatprep.subr.mxu0 0.0
    %663 = vmatpush1.msra.mxu0 0.0
    %664 = vmatprep.subr.mxu0 0.0
    %665 = vmatpush1.msra.mxu0 0.0
    %666 = vmatprep.subr.mxu0 0.0
    %667 = vmatpush1.msra.mxu0 0.0
    %668 = vmatprep.subr.mxu0 0.0
    %669 = vmatpush1.msra.mxu0 0.0
    %670 = vmatprep.subr.mxu0 0.0
    %671 = vmatpush1.msra.mxu0 0.0
    %672 = vmatprep.subr.mxu0 0.0
    %673 = vmatpush1.msra.mxu0 0.0
    %674 = vmatprep.subr.mxu0 0.0
    %675 = vmatpush1.msra.mxu0 0.0
    %676 = vmatprep.subr.mxu0 0.0
    %677 = vmatpush1.msra.mxu0 0.0
    %678 = vmatprep.subr.mxu0 0.0
    %679 = vmatpush1.msra.mxu0 0.0
    %680 = vmatprep.subr.mxu0 0.0
    %681 = vmatpush1.msra.mxu0 0.0
    %682 = vmatprep.subr.mxu0 0.0
    %683 = vmatpush1.msra.mxu0 0.0
    %684 = vmatprep.subr.mxu0 0.0
    %685 = vmatpush1.msra.mxu0 0.0
    %686 = vmatprep.subr.mxu0 0.0
    %687 = vmatpush1.msra.mxu0 0.0
    %688 = vmatprep.subr.mxu0 0.0
    %689 = vmatpush1.msra.mxu0 0.0
    %690 = vmatprep.subr.mxu0 0.0
    %691 = vmatpush1.msra.mxu0 0.0
    %692 = vmatprep.subr.mxu0 0.0
    %693 = vmatpush1.msra.mxu0 0.0
    %694 = vmatprep.mubr.f32.mxu0 0.0
    %695 = vmatmul.mubr.f32.gmra.mrb[0].mxu0 %v628
    %v696 = vpop.f32.mrb[0].mxu0
    %v697 = vadd.f32 0.0, %v696
    %v698 = vpop.f32.mrb[0].mxu0
    %699 = vdwg.mxu0
    %700 = vrot.lane.b32.xlu0 %v454, 64
    %v701 = vpop.permute.xlu0 %700
    %v703 = vmul.f32 %v697, %v701
    %v704 = vadd.f32 %v625, %v703
    %vm705 = vcmask 258048
    %706 = vst.msk [vmem:[#allocation2] sm:$0x1f] %vm705, %v704
    %v707 = vrot.slane %v363, 3
    %708 = vrot.lane.b32.xlu0 %v707, 96
    %v709 = vpop.permute.xlu0 %708
    %v711 = vmul.f32 %v363, %v709
    %v712 = vmul.f32 %v368, %v709
    %v715 = vrot.slane %v711, 5
    %v716 = vrot.slane %v712, 5
    %v717 = vsel %vm451, %v715, %v716
    %v718 = vsel %vm289, %v717, 0
    %720 = vmatprep.subr.mxu0 0.0
    %721 = vmatpush1.msra.mxu0 %v273
    %722 = vmatprep.subr.mxu0 0.0
    %723 = vmatpush1.msra.mxu0 %v274
    %724 = vmatprep.subr.mxu0 0.0
    %725 = vmatpush1.msra.mxu0 %v275
    %726 = vmatprep.subr.mxu0 0.0
    %727 = vmatpush1.msra.mxu0 %v276
    %728 = vmatprep.subr.mxu0 0.0
    %729 = vmatpush1.msra.mxu0 0.0
    %730 = vmatprep.subr.mxu0 0.0
    %731 = vmatpush1.msra.mxu0 0.0
    %732 = vmatprep.subr.mxu0 0.0
    %733 = vmatpush1.msra.mxu0 0.0
    %734 = vmatprep.subr.mxu0 0.0
    %735 = vmatpush1.msra.mxu0 0.0
    %736 = vmatprep.subr.mxu0 0.0
    %737 = vmatpush1.msra.mxu0 0.0
    %738 = vmatprep.subr.mxu0 0.0
    %739 = vmatpush1.msra.mxu0 0.0
    %740 = vmatprep.subr.mxu0 0.0
    %741 = vmatpush1.msra.mxu0 0.0
    %742 = vmatprep.subr.mxu0 0.0
    %743 = vmatpush1.msra.mxu0 0.0
    %744 = vmatprep.subr.mxu0 0.0
    %745 = vmatpush1.msra.mxu0 0.0
    %746 = vmatprep.subr.mxu0 0.0
    %747 = vmatpush1.msra.mxu0 0.0
    %748 = vmatprep.subr.mxu0 0.0
    %749 = vmatpush1.msra.mxu0 0.0
    %750 = vmatprep.subr.mxu0 0.0
    %751 = vmatpush1.msra.mxu0 0.0
    %752 = vmatprep.subr.mxu0 0.0
    %753 = vmatpush1.msra.mxu0 0.0
    %754 = vmatprep.subr.mxu0 0.0
    %755 = vmatpush1.msra.mxu0 0.0
    %756 = vmatprep.subr.mxu0 0.0
    %757 = vmatpush1.msra.mxu0 0.0
    %758 = vmatprep.subr.mxu0 0.0
    %759 = vmatpush1.msra.mxu0 0.0
    %760 = vmatprep.subr.mxu0 0.0
    %761 = vmatpush1.msra.mxu0 0.0
    %762 = vmatprep.subr.mxu0 0.0
    %763 = vmatpush1.msra.mxu0 0.0
    %764 = vmatprep.subr.mxu0 0.0
    %765 = vmatpush1.msra.mxu0 0.0
    %766 = vmatprep.subr.mxu0 0.0
    %767 = vmatpush1.msra.mxu0 0.0
    %768 = vmatprep.subr.mxu0 0.0
    %769 = vmatpush1.msra.mxu0 0.0
    %770 = vmatprep.subr.mxu0 0.0
    %771 = vmatpush1.msra.mxu0 0.0
    %772 = vmatprep.subr.mxu0 0.0
    %773 = vmatpush1.msra.mxu0 0.0
    %774 = vmatprep.subr.mxu0 0.0
    %775 = vmatpush1.msra.mxu0 0.0
    %776 = vmatprep.subr.mxu0 0.0
    %777 = vmatpush1.msra.mxu0 0.0
    %778 = vmatprep.subr.mxu0 0.0
    %779 = vmatpush1.msra.mxu0 0.0
    %780 = vmatprep.subr.mxu0 0.0
    %781 = vmatpush1.msra.mxu0 0.0
    %782 = vmatprep.subr.mxu0 0.0
    %783 = vmatpush1.msra.mxu0 0.0
    %784 = vmatprep.mubr.f32.mxu0 0.0
    %785 = vmatmul.mubr.f32.gmra.mrb[0].mxu0 %v718
    %v786 = vpop.f32.mrb[0].mxu0
    %v787 = vadd.f32 0.0, %v786
    %v788 = vpop.f32.mrb[0].mxu0
    %789 = vdwg.mxu0
    %v790 = vmul.f32 %v787, 0.35355338
    %791 = vrot.lane.b32.xlu0 %v368, 96
    %v792 = vpop.permute.xlu0 %791
    %v794 = vmul.f32 %v368, %v792
    %v796 = vrot.slane %v375, 5
    %v797 = vrot.slane %v794, 5
    %v798 = vsel %vm451, %v796, %v797
    %v799 = vsel %vm289, %v798, 0
    %801 = vmatprep.subr.mxu0 0.0
    %802 = vmatpush1.msra.mxu0 %v273
    %803 = vmatprep.subr.mxu0 0.0
    %804 = vmatpush1.msra.mxu0 %v274
    %805 = vmatprep.subr.mxu0 0.0
    %806 = vmatpush1.msra.mxu0 %v275
    %807 = vmatprep.subr.mxu0 0.0
    %808 = vmatpush1.msra.mxu0 %v276
    %809 = vmatprep.subr.mxu0 0.0
    %810 = vmatpush1.msra.mxu0 0.0
    %811 = vmatprep.subr.mxu0 0.0
    %812 = vmatpush1.msra.mxu0 0.0
    %813 = vmatprep.subr.mxu0 0.0
    %814 = vmatpush1.msra.mxu0 0.0
    %815 = vmatprep.subr.mxu0 0.0
    %816 = vmatpush1.msra.mxu0 0.0
    %817 = vmatprep.subr.mxu0 0.0
    %818 = vmatpush1.msra.mxu0 0.0
    %819 = vmatprep.subr.mxu0 0.0
    %820 = vmatpush1.msra.mxu0 0.0
    %821 = vmatprep.subr.mxu0 0.0
    %822 = vmatpush1.msra.mxu0 0.0
    %823 = vmatprep.subr.mxu0 0.0
    %824 = vmatpush1.msra.mxu0 0.0
    %825 = vmatprep.subr.mxu0 0.0
    %826 = vmatpush1.msra.mxu0 0.0
    %827 = vmatprep.subr.mxu0 0.0
    %828 = vmatpush1.msra.mxu0 0.0
    %829 = vmatprep.subr.mxu0 0.0
    %830 = vmatpush1.msra.mxu0 0.0
    %831 = vmatprep.subr.mxu0 0.0
    %832 = vmatpush1.msra.mxu0 0.0
    %833 = vmatprep.subr.mxu0 0.0
    %834 = vmatpush1.msra.mxu0 0.0
    %835 = vmatprep.subr.mxu0 0.0
    %836 = vmatpush1.msra.mxu0 0.0
    %837 = vmatprep.subr.mxu0 0.0
    %838 = vmatpush1.msra.mxu0 0.0
    %839 = vmatprep.subr.mxu0 0.0
    %840 = vmatpush1.msra.mxu0 0.0
    %841 = vmatprep.subr.mxu0 0.0
    %842 = vmatpush1.msra.mxu0 0.0
    %843 = vmatprep.subr.mxu0 0.0
    %844 = vmatpush1.msra.mxu0 0.0
    %845 = vmatprep.subr.mxu0 0.0
    %846 = vmatpush1.msra.mxu0 0.0
    %847 = vmatprep.subr.mxu0 0.0
    %848 = vmatpush1.msra.mxu0 0.0
    %849 = vmatprep.subr.mxu0 0.0
    %850 = vmatpush1.msra.mxu0 0.0
    %851 = vmatprep.subr.mxu0 0.0
    %852 = vmatpush1.msra.mxu0 0.0
    %853 = vmatprep.subr.mxu0 0.0
    %854 = vmatpush1.msra.mxu0 0.0
    %855 = vmatprep.subr.mxu0 0.0
    %856 = vmatpush1.msra.mxu0 0.0
    %857 = vmatprep.subr.mxu0 0.0
    %858 = vmatpush1.msra.mxu0 0.0
    %859 = vmatprep.subr.mxu0 0.0
    %860 = vmatpush1.msra.mxu0 0.0
    %861 = vmatprep.subr.mxu0 0.0
    %862 = vmatpush1.msra.mxu0 0.0
    %863 = vmatprep.subr.mxu0 0.0
    %864 = vmatpush1.msra.mxu0 0.0
    %865 = vmatprep.mubr.f32.mxu0 0.0
    %866 = vmatmul.mubr.f32.gmra.mrb[0].mxu0 %v799
    %v867 = vpop.f32.mrb[0].mxu0
    %v868 = vadd.f32 0.0, %v867
    %v869 = vpop.f32.mrb[0].mxu0
    %870 = vdwg.mxu0
    %v871 = vmul.f32 %v868, 0.35355338
    %v872 = vmax.f32 %v790, %v871
    %v873 = vsub.f32 %v790, %v872
    %v874 = vmul.f32 %v873, 1.442695
    %v875 = vpow.pop %v874
    %v876 = vsub.f32 %v871, %v872
    %v877 = vmul.f32 %v876, 1.442695
    %v878 = vpow.pop %v877
    %v879 = vadd.f32 %v875, %v878
    %v880 = vrcp.pop %v879
    %v881 = vmul.f32 %v875, %v880
    %v883 = vsel %vm543, %v881, 0
    %885 = vmatprep.subr.mxu0 0.0
    %886 = vmatpush1.msra.mxu0 %v549
    %887 = vmatprep.subr.mxu0 0.0
    %888 = vmatpush1.msra.mxu0 0.0
    %889 = vmatprep.subr.mxu0 0.0
    %890 = vmatpush1.msra.mxu0 0.0
    %891 = vmatprep.subr.mxu0 0.0
    %892 = vmatpush1.msra.mxu0 0.0
    %893 = vmatprep.subr.mxu0 0.0
    %894 = vmatpush1.msra.mxu0 0.0
    %895 = vmatprep.subr.mxu0 0.0
    %896 = vmatpush1.msra.mxu0 0.0
    %897 = vmatprep.subr.mxu0 0.0
    %898 = vmatpush1.msra.mxu0 0.0
    %899 = vmatprep.subr.mxu0 0.0
    %900 = vmatpush1.msra.mxu0 0.0
    %901 = vmatprep.subr.mxu0 0.0
    %902 = vmatpush1.msra.mxu0 0.0
    %903 = vmatprep.subr.mxu0 0.0
    %904 = vmatpush1.msra.mxu0 0.0
    %905 = vmatprep.subr.mxu0 0.0
    %906 = vmatpush1.msra.mxu0 0.0
    %907 = vmatprep.subr.mxu0 0.0
    %908 = vmatpush1.msra.mxu0 0.0
    %909 = vmatprep.subr.mxu0 0.0
    %910 = vmatpush1.msra.mxu0 0.0
    %911 = vmatprep.subr.mxu0 0.0
    %912 = vmatpush1.msra.mxu0 0.0
    %913 = vmatprep.subr.mxu0 0.0
    %914 = vmatpush1.msra.mxu0 0.0
    %915 = vmatprep.subr.mxu0 0.0
    %916 = vmatpush1.msra.mxu0 0.0
    %917 = vmatprep.subr.mxu0 0.0
    %918 = vmatpush1.msra.mxu0 0.0
    %919 = vmatprep.subr.mxu0 0.0
    %920 = vmatpush1.msra.mxu0 0.0
    %921 = vmatprep.subr.mxu0 0.0
    %922 = vmatpush1.msra.mxu0 0.0
    %923 = vmatprep.subr.mxu0 0.0
    %924 = vmatpush1.msra.mxu0 0.0
    %925 = vmatprep.subr.mxu0 0.0
    %926 = vmatpush1.msra.mxu0 0.0
    %927 = vmatprep.subr.mxu0 0.0
    %928 = vmatpush1.msra.mxu0 0.0
    %929 = vmatprep.subr.mxu0 0.0
    %930 = vmatpush1.msra.mxu0 0.0
    %931 = vmatprep.subr.mxu0 0.0
    %932 = vmatpush1.msra.mxu0 0.0
    %933 = vmatprep.subr.mxu0 0.0
    %934 = vmatpush1.msra.mxu0 0.0
    %935 = vmatprep.subr.mxu0 0.0
    %936 = vmatpush1.msra.mxu0 0.0
    %937 = vmatprep.subr.mxu0 0.0
    %938 = vmatpush1.msra.mxu0 0.0
    %939 = vmatprep.subr.mxu0 0.0
    %940 = vmatpush1.msra.mxu0 0.0
    %941 = vmatprep.subr.mxu0 0.0
    %942 = vmatpush1.msra.mxu0 0.0
    %943 = vmatprep.subr.mxu0 0.0
    %944 = vmatpush1.msra.mxu0 0.0
    %945 = vmatprep.subr.mxu0 0.0
    %946 = vmatpush1.msra.mxu0 0.0
    %947 = vmatprep.subr.mxu0 0.0
    %948 = vmatpush1.msra.mxu0 0.0
    %949 = vmatprep.mubr.f32.mxu0 0.0
    %950 = vmatmul.mubr.f32.gmra.mrb[0].mxu0 %v883
    %v951 = vpop.f32.mrb[0].mxu0
    %v952 = vadd.f32 0.0, %v951
    %v953 = vpop.f32.mrb[0].mxu0
    %954 = vdwg.mxu0
    %v955 = vmul.f32 %v952, %v622
    %v956 = vadd.f32 %v955, 0.0
    %v957 = vmul.f32 %v878, %v880
    %v959 = vsel %vm543, %v957, 0
    %961 = vmatprep.subr.mxu0 0.0
    %962 = vmatpush1.msra.mxu0 %v549
    %963 = vmatprep.subr.mxu0 0.0
    %964 = vmatpush1.msra.mxu0 0.0
    %965 = vmatprep.subr.mxu0 0.0
    %966 = vmatpush1.msra.mxu0 0.0
    %967 = vmatprep.subr.mxu0 0.0
    %968 = vmatpush1.msra.mxu0 0.0
    %969 = vmatprep.subr.mxu0 0.0
    %970 = vmatpush1.msra.mxu0 0.0
    %971 = vmatprep.subr.mxu0 0.0
    %972 = vmatpush1.msra.mxu0 0.0
    %973 = vmatprep.subr.mxu0 0.0
    %974 = vmatpush1.msra.mxu0 0.0
    %975 = vmatprep.subr.mxu0 0.0
    %976 = vmatpush1.msra.mxu0 0.0
    %977 = vmatprep.subr.mxu0 0.0
    %978 = vmatpush1.msra.mxu0 0.0
    %979 = vmatprep.subr.mxu0 0.0
    %980 = vmatpush1.msra.mxu0 0.0
    %981 = vmatprep.subr.mxu0 0.0
    %982 = vmatpush1.msra.mxu0 0.0
    %983 = vmatprep.subr.mxu0 0.0
    %984 = vmatpush1.msra.mxu0 0.0
    %985 = vmatprep.subr.mxu0 0.0
    %986 = vmatpush1.msra.mxu0 0.0
    %987 = vmatprep.subr.mxu0 0.0
    %988 = vmatpush1.msra.mxu0 0.0
    %989 = vmatprep.subr.mxu0 0.0
    %990 = vmatpush1.msra.mxu0 0.0
    %991 = vmatprep.subr.mxu0 0.0
    %992 = vmatpush1.msra.mxu0 0.0
    %993 = vmatprep.subr.mxu0 0.0
    %994 = vmatpush1.msra.mxu0 0.0
    %995 = vmatprep.subr.mxu0 0.0
    %996 = vmatpush1.msra.mxu0 0.0
    %997 = vmatprep.subr.mxu0 0.0
    %998 = vmatpush1.msra.mxu0 0.0
    %999 = vmatprep.subr.mxu0 0.0
    %1000 = vmatpush1.msra.mxu0 0.0
    %1001 = vmatprep.subr.mxu0 0.0
    %1002 = vmatpush1.msra.mxu0 0.0
    %1003 = vmatprep.subr.mxu0 0.0
    %1004 = vmatpush1.msra.mxu0 0.0
    %1005 = vmatprep.subr.mxu0 0.0
    %1006 = vmatpush1.msra.mxu0 0.0
    %1007 = vmatprep.subr.mxu0 0.0
    %1008 = vmatpush1.msra.mxu0 0.0
    %1009 = vmatprep.subr.mxu0 0.0
    %1010 = vmatpush1.msra.mxu0 0.0
    %1011 = vmatprep.subr.mxu0 0.0
    %1012 = vmatpush1.msra.mxu0 0.0
    %1013 = vmatprep.subr.mxu0 0.0
    %1014 = vmatpush1.msra.mxu0 0.0
    %1015 = vmatprep.subr.mxu0 0.0
    %1016 = vmatpush1.msra.mxu0 0.0
    %1017 = vmatprep.subr.mxu0 0.0
    %1018 = vmatpush1.msra.mxu0 0.0
    %1019 = vmatprep.subr.mxu0 0.0
    %1020 = vmatpush1.msra.mxu0 0.0
    %1021 = vmatprep.subr.mxu0 0.0
    %1022 = vmatpush1.msra.mxu0 0.0
    %1023 = vmatprep.subr.mxu0 0.0
    %1024 = vmatpush1.msra.mxu0 0.0
    %1025 = vmatprep.mubr.f32.mxu0 0.0
    %1026 = vmatmul.mubr.f32.gmra.mrb[0].mxu0 %v959
    %v1027 = vpop.f32.mrb[0].mxu0
    %v1028 = vadd.f32 0.0, %v1027
    %v1029 = vpop.f32.mrb[0].mxu0
    %1030 = vdwg.mxu0
    %v1031 = vmul.f32 %v1028, %v701
    %v1032 = vadd.f32 %v956, %v1031
    %1033 = vst.msk [vmem:[#allocation2 + $0x5] sm:$0x1f] %vm705, %v1032
    %v1034 = vld [vmem:[#allocation2] sm:$0xff]
    %v1035 = vld [vmem:[#allocation2 + $0x8] sm:$0x3]
    %v1036 = vld [vmem:[%s19] sm:$0xff]
    %v1037 = vld [vmem:[%s19 + $0x8] sm:$0xff]
    %v1038 = vld [vmem:[%s19 + $0x10] sm:$0xff]
    %v1039 = vld [vmem:[%s19 + $0x18] sm:$0xff]
    %v1040 = vld [vmem:[%s21] sm:$0x1]
    %v1042 = vlaneseq
    %v1043 = vshrl.u32 %v1042, 7
    %v1044 = vsub.s32 0, %v1043
    %v1045 = vrot.slane %v1040, %v1044
    %v1048 = vsel %vm289, %v1034, 0
    %v1051 = vsel %vm289, %v1035, 0
    %1053 = vmatprep.subr.mxu0 0.0
    %1054 = vmatpush1.msra.mxu0 %v1036
    %1055 = vmatprep.subr.mxu0 0.0
    %1056 = vmatpush1.msra.mxu0 %v1037
    %1057 = vmatprep.subr.mxu0 0.0
    %1058 = vmatpush1.msra.mxu0 %v1038
    %1059 = vmatprep.subr.mxu0 0.0
    %1060 = vmatpush1.msra.mxu0 %v1039
    %1061 = vmatprep.subr.mxu0 0.0
    %1062 = vmatpush1.msra.mxu0 0.0
    %1063 = vmatprep.subr.mxu0 0.0
    %1064 = vmatpush1.msra.mxu0 0.0
    %1065 = vmatprep.subr.mxu0 0.0
    %1066 = vmatpush1.msra.mxu0 0.0
    %1067 = vmatprep.subr.mxu0 0.0
    %1068 = vmatpush1.msra.mxu0 0.0
    %1069 = vmatprep.subr.mxu0 0.0
    %1070 = vmatpush1.msra.mxu0 0.0
    %1071 = vmatprep.subr.mxu0 0.0
    %1072 = vmatpush1.msra.mxu0 0.0
    %1073 = vmatprep.subr.mxu0 0.0
    %1074 = vmatpush1.msra.mxu0 0.0
    %1075 = vmatprep.subr.mxu0 0.0
    %1076 = vmatpush1.msra.mxu0 0.0
    %1077 = vmatprep.subr.mxu0 0.0
    %1078 = vmatpush1.msra.mxu0 0.0
    %1079 = vmatprep.subr.mxu0 0.0
    %1080 = vmatpush1.msra.mxu0 0.0
    %1081 = vmatprep.subr.mxu0 0.0
    %1082 = vmatpush1.msra.mxu0 0.0
    %1083 = vmatprep.subr.mxu0 0.0
    %1084 = vmatpush1.msra.mxu0 0.0
    %1085 = vmatprep.subr.mxu0 0.0
    %1086 = vmatpush1.msra.mxu0 0.0
    %1087 = vmatprep.subr.mxu0 0.0
    %1088 = vmatpush1.msra.mxu0 0.0
    %1089 = vmatprep.subr.mxu0 0.0
    %1090 = vmatpush1.msra.mxu0 0.0
    %1091 = vmatprep.subr.mxu0 0.0
    %1092 = vmatpush1.msra.mxu0 0.0
    %1093 = vmatprep.subr.mxu0 0.0
    %1094 = vmatpush1.msra.mxu0 0.0
    %1095 = vmatprep.subr.mxu0 0.0
    %1096 = vmatpush1.msra.mxu0 0.0
    %1097 = vmatprep.subr.mxu0 0.0
    %1098 = vmatpush1.msra.mxu0 0.0
    %1099 = vmatprep.subr.mxu0 0.0
    %1100 = vmatpush1.msra.mxu0 0.0
    %1101 = vmatprep.subr.mxu0 0.0
    %1102 = vmatpush1.msra.mxu0 0.0
    %1103 = vmatprep.subr.mxu0 0.0
    %1104 = vmatpush1.msra.mxu0 0.0
    %1105 = vmatprep.subr.mxu0 0.0
    %1106 = vmatpush1.msra.mxu0 0.0
    %1107 = vmatprep.subr.mxu0 0.0
    %1108 = vmatpush1.msra.mxu0 0.0
    %1109 = vmatprep.subr.mxu0 0.0
    %1110 = vmatpush1.msra.mxu0 0.0
    %1111 = vmatprep.subr.mxu0 0.0
    %1112 = vmatpush1.msra.mxu0 0.0
    %1113 = vmatprep.subr.mxu0 0.0
    %1114 = vmatpush1.msra.mxu0 0.0
    %1115 = vmatprep.subr.mxu0 0.0
    %1116 = vmatpush1.msra.mxu0 0.0
    %1117 = vmatprep.mubr.f32.mxu0 0.0
    %1118 = vmatmul.mubr.f32.gmra.mrb[0].mxu0 %v1048
    %v1119 = vpop.f32.mrb[0].mxu0
    %v1120 = vadd.f32 %v1045, %v1119
    %v1121 = vpop.f32.mrb[0].mxu0
    %1122 = vmatprep.mubr.f32.mxu0 0.0
    %1123 = vmatmul.mubr.f32.gmra.mrb[0].mxu0 %v1051
    %v1124 = vpop.f32.mrb[0].mxu0
    %v1125 = vadd.f32 %v1045, %v1124
    %v1126 = vpop.f32.mrb[0].mxu0
    %1127 = vdwg.mxu0
    %v1128 = vadd.f32 %v271, %v1120
    %v1129 = vadd.f32 %v272, %v1125
    %v1130 = vld [vmem:[%s23] sm:$0x1]
    %v1131 = vld [vmem:[%s25] sm:$0x1]
    %v1132 = vsel %vm289, %v1128, 0.0
    %1133 = vadd.xlane.f32.xlu0 %v1132
    %v1134 = vpop.xlane.xlu0 %1133
    %vm1135 = vcmask 254976
    %v1136 = vsel %vm1135, %v1129, 0.0
    %1137 = vadd.xlane.f32.xlu0 %v1136
    %v1138 = vpop.xlane.xlu0 %1137
    %v1139 = vrcp.pop 32.0
    %v1140 = vmul.f32 %v1134, %v1139
    %v1141 = vmul.f32 %v1138, %v1139
    %v1142 = vsub.f32 %v1128, %v1140
    %v1143 = vsub.f32 %v1129, %v1141
    %v1144 = vmul.f32 %v1142, %v1142
    %v1145 = vmul.f32 %v1143, %v1143
    %v1146 = vsel %vm289, %v1144, 0.0
    %1147 = vadd.xlane.f32.xlu0 %v1146
    %v1148 = vpop.xlane.xlu0 %1147
    %v1149 = vsel %vm1135, %v1145, 0.0
    %1150 = vadd.xlane.f32.xlu0 %v1149
    %v1151 = vpop.xlane.xlu0 %1150
    %v1152 = vmul.f32 %v1148, %v1139
    %v1153 = vmul.f32 %v1151, %v1139
    %v1154 = vadd.f32 %v1152, 1e-05
    %v1155 = vadd.f32 %v1153, 1e-05
    %v1156 = vrsqrt.pop %v1154
    %v1157 = vrsqrt.pop %v1155
    %v1158 = vmul.f32 %v1142, %v1156
    %v1159 = vmul.f32 %v1143, %v1157
    %v1161 = vlaneseq
    %v1162 = vshrl.u32 %v1161, 7
    %v1163 = vsub.s32 0, %v1162
    %v1164 = vrot.slane %v1130, %v1163
    %v1166 = vmul.f32 %v1158, %v1164
    %v1167 = vmul.f32 %v1159, %v1164
    %v1169 = vlaneseq
    %v1170 = vshrl.u32 %v1169, 7
    %v1171 = vsub.s32 0, %v1170
    %v1172 = vrot.slane %v1131, %v1171
    %v1174 = vadd.f32 %v1166, %v1172
    %v1175 = vadd.f32 %v1167, %v1172
    %v1176 = vld [vmem:[%s27] sm:$0xff]
    %v1177 = vld [vmem:[%s27 + $0x8] sm:$0xff]
    %v1178 = vld [vmem:[%s27 + $0x10] sm:$0xff]
    %v1179 = vld [vmem:[%s27 + $0x18] sm:$0xff]
    %v1180 = vld [vmem:[%s29] sm:$0x1]
    %v1182 = vlaneseq
    %v1183 = vshrl.u32 %v1182, 7
    %v1184 = vsub.s32 0, %v1183
    %v1185 = vrot.slane %v1180, %v1184
    %v1188 = vsel %vm289, %v1174, 0
    %v1191 = vsel %vm289, %v1175, 0
    %1193 = vmatprep.subr.mxu0 0.0
    %1194 = vmatpush1.msra.mxu0 %v1176
    %1195 = vmatprep.subr.mxu0 0.0
    %1196 = vmatpush1.msra.mxu0 %v1177
    %1197 = vmatprep.subr.mxu0 0.0
    %1198 = vmatpush1.msra.mxu0 %v1178
    %1199 = vmatprep.subr.mxu0 0.0
    %1200 = vmatpush1.msra.mxu0 %v1179
    %1201 = vmatprep.subr.mxu0 0.0
    %1202 = vmatpush1.msra.mxu0 0.0
    %1203 = vmatprep.subr.mxu0 0.0
    %1204 = vmatpush1.msra.mxu0 0.0
    %1205 = vmatprep.subr.mxu0 0.0
    %1206 = vmatpush1.msra.mxu0 0.0
    %1207 = vmatprep.subr.mxu0 0.0
    %1208 = vmatpush1.msra.mxu0 0.0
    %1209 = vmatprep.subr.mxu0 0.0
    %1210 = vmatpush1.msra.mxu0 0.0
    %1211 = vmatprep.subr.mxu0 0.0
    %1212 = vmatpush1.msra.mxu0 0.0
    %1213 = vmatprep.subr.mxu0 0.0
    %1214 = vmatpush1.msra.mxu0 0.0
    %1215 = vmatprep.subr.mxu0 0.0
    %1216 = vmatpush1.msra.mxu0 0.0
    %1217 = vmatprep.subr.mxu0 0.0
    %1218 = vmatpush1.msra.mxu0 0.0
    %1219 = vmatprep.subr.mxu0 0.0
    %1220 = vmatpush1.msra.mxu0 0.0
    %1221 = vmatprep.subr.mxu0 0.0
    %1222 = vmatpush1.msra.mxu0 0.0
    %1223 = vmatprep.subr.mxu0 0.0
    %1224 = vmatpush1.msra.mxu0 0.0
    %1225 = vmatprep.subr.mxu0 0.0
    %1226 = vmatpush1.msra.mxu0 0.0
    %1227 = vmatprep.subr.mxu0 0.0
    %1228 = vmatpush1.msra.mxu0 0.0
    %1229 = vmatprep.subr.mxu0 0.0
    %1230 = vmatpush1.msra.mxu0 0.0
    %1231 = vmatprep.subr.mxu0 0.0
    %1232 = vmatpush1.msra.mxu0 0.0
    %1233 = vmatprep.subr.mxu0 0.0
    %1234 = vmatpush1.msra.mxu0 0.0
    %1235 = vmatprep.subr.mxu0 0.0
    %1236 = vmatpush1.msra.mxu0 0.0
    %1237 = vmatprep.subr.mxu0 0.0
    %1238 = vmatpush1.msra.mxu0 0.0
    %1239 = vmatprep.subr.mxu0 0.0
    %1240 = vmatpush1.msra.mxu0 0.0
    %1241 = vmatprep.subr.mxu0 0.0
    %1242 = vmatpush1.msra.mxu0 0.0
    %1243 = vmatprep.subr.mxu0 0.0
    %1244 = vmatpush1.msra.mxu0 0.0
    %1245 = vmatprep.subr.mxu0 0.0
    %1246 = vmatpush1.msra.mxu0 0.0
    %1247 = vmatprep.subr.mxu0 0.0
    %1248 = vmatpush1.msra.mxu0 0.0
    %1249 = vmatprep.subr.mxu0 0.0
    %1250 = vmatpush1.msra.mxu0 0.0
    %1251 = vmatprep.subr.mxu0 0.0
    %1252 = vmatpush1.msra.mxu0 0.0
    %1253 = vmatprep.subr.mxu0 0.0
    %1254 = vmatpush1.msra.mxu0 0.0
    %1255 = vmatprep.subr.mxu0 0.0
    %1256 = vmatpush1.msra.mxu0 0.0
    %1257 = vmatprep.mubr.f32.mxu0 0.0
    %1258 = vmatmul.mubr.f32.gmra.mrb[0].mxu0 %v1188
    %v1259 = vpop.f32.mrb[0].mxu0
    %v1260 = vadd.f32 %v1185, %v1259
    %v1261 = vpop.f32.mrb[0].mxu0
    %1262 = vmatprep.mubr.f32.mxu0 0.0
    %1263 = vmatmul.mubr.f32.gmra.mrb[0].mxu0 %v1191
    %v1264 = vpop.f32.mrb[0].mxu0
    %v1265 = vadd.f32 %v1185, %v1264
    %v1266 = vpop.f32.mrb[0].mxu0
    %1267 = vdwg.mxu0
    %v1268 = vmax.f32 %v1260, 0.0
    %v1269 = vmax.f32 %v1265, 0.0
    %v1270 = vld [vmem:[%s31] sm:$0xff]
    %v1271 = vld [vmem:[%s31 + $0x8] sm:$0xff]
    %v1272 = vld [vmem:[%s31 + $0x10] sm:$0xff]
    %v1273 = vld [vmem:[%s31 + $0x18] sm:$0xff]
    %v1274 = vld [vmem:[%s31 + $0x20] sm:$0xff]
    %v1275 = vld [vmem:[%s31 + $0x28] sm:$0xff]
    %v1276 = vld [vmem:[%s31 + $0x30] sm:$0xff]
    %v1277 = vld [vmem:[%s31 + $0x38] sm:$0xff]
    %v1278 = vld [vmem:[%s33] sm:$0x1]
    %v1280 = vlaneseq
    %v1281 = vshrl.u32 %v1280, 7
    %v1282 = vsub.s32 0, %v1281
    %v1283 = vrot.slane %v1278, %v1282
    %v1286 = vsel %vm180, %v1268, 0
    %v1289 = vsel %vm180, %v1269, 0
    %1291 = vmatprep.subr.mxu0 0.0
    %1292 = vmatpush1.msra.mxu0 %v1270
    %1293 = vmatprep.subr.mxu0 0.0
    %1294 = vmatpush1.msra.mxu0 %v1271
    %1295 = vmatprep.subr.mxu0 0.0
    %1296 = vmatpush1.msra.mxu0 %v1272
    %1297 = vmatprep.subr.mxu0 0.0
    %1298 = vmatpush1.msra.mxu0 %v1273
    %1299 = vmatprep.subr.mxu0 0.0
    %1300 = vmatpush1.msra.mxu0 %v1274
    %1301 = vmatprep.subr.mxu0 0.0
    %1302 = vmatpush1.msra.mxu0 %v1275
    %1303 = vmatprep.subr.mxu0 0.0
    %1304 = vmatpush1.msra.mxu0 %v1276
    %1305 = vmatprep.subr.mxu0 0.0
    %1306 = vmatpush1.msra.mxu0 %v1277
    %1307 = vmatprep.subr.mxu0 0.0
    %1308 = vmatpush1.msra.mxu0 0.0
    %1309 = vmatprep.subr.mxu0 0.0
    %1310 = vmatpush1.msra.mxu0 0.0
    %1311 = vmatprep.subr.mxu0 0.0
    %1312 = vmatpush1.msra.mxu0 0.0
    %1313 = vmatprep.subr.mxu0 0.0
    %1314 = vmatpush1.msra.mxu0 0.0
    %1315 = vmatprep.subr.mxu0 0.0
    %1316 = vmatpush1.msra.mxu0 0.0
    %1317 = vmatprep.subr.mxu0 0.0
    %1318 = vmatpush1.msra.mxu0 0.0
    %1319 = vmatprep.subr.mxu0 0.0
    %1320 = vmatpush1.msra.mxu0 0.0
    %1321 = vmatprep.subr.mxu0 0.0
    %1322 = vmatpush1.msra.mxu0 0.0
    %1323 = vmatprep.subr.mxu0 0.0
    %1324 = vmatpush1.msra.mxu0 0.0
    %1325 = vmatprep.subr.mxu0 0.0
    %1326 = vmatpush1.msra.mxu0 0.0
    %1327 = vmatprep.subr.mxu0 0.0
    %1328 = vmatpush1.msra.mxu0 0.0
    %1329 = vmatprep.subr.mxu0 0.0
    %1330 = vmatpush1.msra.mxu0 0.0
    %1331 = vmatprep.subr.mxu0 0.0
    %1332 = vmatpush1.msra.mxu0 0.0
    %1333 = vmatprep.subr.mxu0 0.0
    %1334 = vmatpush1.msra.mxu0 0.0
    %1335 = vmatprep.subr.mxu0 0.0
    %1336 = vmatpush1.msra.mxu0 0.0
    %1337 = vmatprep.subr.mxu0 0.0
    %1338 = vmatpush1.msra.mxu0 0.0
    %1339 = vmatprep.subr.mxu0 0.0
    %1340 = vmatpush1.msra.mxu0 0.0
    %1341 = vmatprep.subr.mxu0 0.0
    %1342 = vmatpush1.msra.mxu0 0.0
    %1343 = vmatprep.subr.mxu0 0.0
    %1344 = vmatpush1.msra.mxu0 0.0
    %1345 = vmatprep.subr.mxu0 0.0
    %1346 = vmatpush1.msra.mxu0 0.0
    %1347 = vmatprep.subr.mxu0 0.0
    %1348 = vmatpush1.msra.mxu0 0.0
    %1349 = vmatprep.subr.mxu0 0.0
    %1350 = vmatpush1.msra.mxu0 0.0
    %1351 = vmatprep.subr.mxu0 0.0
    %1352 = vmatpush1.msra.mxu0 0.0
    %1353 = vmatprep.subr.mxu0 0.0
    %1354 = vmatpush1.msra.mxu0 0.0
    %1355 = vmatprep.mubr.f32.mxu0 0.0
    %1356 = vmatmul.mubr.f32.gmra.mrb[0].mxu0 %v1286
    %v1357 = vpop.f32.mrb[0].mxu0
    %v1358 = vadd.f32 %v1283, %v1357
    %v1359 = vpop.f32.mrb[0].mxu0
    %1360 = vmatprep.mubr.f32.mxu0 0.0
    %1361 = vmatmul.mubr.f32.gmra.mrb[0].mxu0 %v1289
    %v1362 = vpop.f32.mrb[0].mxu0
    %v1363 = vadd.f32 %v1283, %v1362
    %v1364 = vpop.f32.mrb[0].mxu0
    %1365 = vdwg.mxu0
    %v1366 = vadd.f32 %v1174, %v1358
    %v1367 = vadd.f32 %v1175, %v1363
    %v1368 = vld [vmem:[%s35] sm:$0x1]
    %v1369 = vld [vmem:[%s37] sm:$0x1]
    %v1370 = vsel %vm289, %v1366, 0.0
    %1371 = vadd.xlane.f32.xlu0 %v1370
    %v1372 = vpop.xlane.xlu0 %1371
    %v1373 = vsel %vm1135, %v1367, 0.0
    %1374 = vadd.xlane.f32.xlu0 %v1373
    %v1375 = vpop.xlane.xlu0 %1374
    %v1376 = vmul.f32 %v1372, %v1139
    %v1377 = vmul.f32 %v1375, %v1139
    %v1378 = vsub.f32 %v1366, %v1376
    %v1379 = vsub.f32 %v1367, %v1377
    %v1380 = vmul.f32 %v1378, %v1378
    %v1381 = vmul.f32 %v1379, %v1379
    %v1382 = vsel %vm289, %v1380, 0.0
    %1383 = vadd.xlane.f32.xlu0 %v1382
    %v1384 = vpop.xlane.xlu0 %1383
    %v1385 = vsel %vm1135, %v1381, 0.0
    %1386 = vadd.xlane.f32.xlu0 %v1385
    %v1387 = vpop.xlane.xlu0 %1386
    %v1388 = vmul.f32 %v1384, %v1139
    %v1389 = vmul.f32 %v1387, %v1139
    %v1390 = vadd.f32 %v1388, 1e-05
    %v1391 = vadd.f32 %v1389, 1e-05
    %v1392 = vrsqrt.pop %v1390
    %v1393 = vrsqrt.pop %v1391
    %v1394 = vmul.f32 %v1378, %v1392
    %v1395 = vmul.f32 %v1379, %v1393
    %v1397 = vlaneseq
    %v1398 = vshrl.u32 %v1397, 7
    %v1399 = vsub.s32 0, %v1398
    %v1400 = vrot.slane %v1368, %v1399
    %v1402 = vmul.f32 %v1394, %v1400
    %v1403 = vmul.f32 %v1395, %v1400
    %v1405 = vlaneseq
    %v1406 = vshrl.u32 %v1405, 7
    %v1407 = vsub.s32 0, %v1406
    %v1408 = vrot.slane %v1369, %v1407
    %v1410 = vadd.f32 %v1402, %v1408
    %v1411 = vadd.f32 %v1403, %v1408
    %v1412 = vld [vmem:[%s39] sm:$0xff]
    %v1413 = vld [vmem:[%s39 + $0x8] sm:$0xff]
    %v1414 = vld [vmem:[%s39 + $0x10] sm:$0xff]
    %v1415 = vld [vmem:[%s39 + $0x18] sm:$0xff]
    %v1416 = vld [vmem:[%s41] sm:$0x1]
    %v1418 = vlaneseq
    %v1419 = vshrl.u32 %v1418, 7
    %v1420 = vsub.s32 0, %v1419
    %v1421 = vrot.slane %v1416, %v1420
    %v1424 = vsel %vm289, %v1410, 0
    %v1427 = vsel %vm289, %v1411, 0
    %1429 = vmatprep.subr.mxu0 0.0
    %1430 = vmatpush1.msra.mxu0 %v1412
    %1431 = vmatprep.subr.mxu0 0.0
    %1432 = vmatpush1.msra.mxu0 %v1413
    %1433 = vmatprep.subr.mxu0 0.0
    %1434 = vmatpush1.msra.mxu0 %v1414
    %1435 = vmatprep.subr.mxu0 0.0
    %1436 = vmatpush1.msra.mxu0 %v1415
    %1437 = vmatprep.subr.mxu0 0.0
    %1438 = vmatpush1.msra.mxu0 0.0
    %1439 = vmatprep.subr.mxu0 0.0
    %1440 = vmatpush1.msra.mxu0 0.0
    %1441 = vmatprep.subr.mxu0 0.0
    %1442 = vmatpush1.msra.mxu0 0.0
    %1443 = vmatprep.subr.mxu0 0.0
    %1444 = vmatpush1.msra.mxu0 0.0
    %1445 = vmatprep.subr.mxu0 0.0
    %1446 = vmatpush1.msra.mxu0 0.0
    %1447 = vmatprep.subr.mxu0 0.0
    %1448 = vmatpush1.msra.mxu0 0.0
    %1449 = vmatprep.subr.mxu0 0.0
    %1450 = vmatpush1.msra.mxu0 0.0
    %1451 = vmatprep.subr.mxu0 0.0
    %1452 = vmatpush1.msra.mxu0 0.0
    %1453 = vmatprep.subr.mxu0 0.0
    %1454 = vmatpush1.msra.mxu0 0.0
    %1455 = vmatprep.subr.mxu0 0.0
    %1456 = vmatpush1.msra.mxu0 0.0
    %1457 = vmatprep.subr.mxu0 0.0
    %1458 = vmatpush1.msra.mxu0 0.0
    %1459 = vmatprep.subr.mxu0 0.0
    %1460 = vmatpush1.msra.mxu0 0.0
    %1461 = vmatprep.subr.mxu0 0.0
    %1462 = vmatpush1.msra.mxu0 0.0
    %1463 = vmatprep.subr.mxu0 0.0
    %1464 = vmatpush1.msra.mxu0 0.0
    %1465 = vmatprep.subr.mxu0 0.0
    %1466 = vmatpush1.msra.mxu0 0.0
    %1467 = vmatprep.subr.mxu0 0.0
    %1468 = vmatpush1.msra.mxu0 0.0
    %1469 = vmatprep.subr.mxu0 0.0
    %1470 = vmatpush1.msra.mxu0 0.0
    %1471 = vmatprep.subr.mxu0 0.0
    %1472 = vmatpush1.msra.mxu0 0.0
    %1473 = vmatprep.subr.mxu0 0.0
    %1474 = vmatpush1.msra.mxu0 0.0
    %1475 = vmatprep.subr.mxu0 0.0
    %1476 = vmatpush1.msra.mxu0 0.0
    %1477 = vmatprep.subr.mxu0 0.0
    %1478 = vmatpush1.msra.mxu0 0.0
    %1479 = vmatprep.subr.mxu0 0.0
    %1480 = vmatpush1.msra.mxu0 0.0
    %1481 = vmatprep.subr.mxu0 0.0
    %1482 = vmatpush1.msra.mxu0 0.0
    %1483 = vmatprep.subr.mxu0 0.0
    %1484 = vmatpush1.msra.mxu0 0.0
    %1485 = vmatprep.subr.mxu0 0.0
    %1486 = vmatpush1.msra.mxu0 0.0
    %1487 = vmatprep.subr.mxu0 0.0
    %1488 = vmatpush1.msra.mxu0 0.0
    %1489 = vmatprep.subr.mxu0 0.0
    %1490 = vmatpush1.msra.mxu0 0.0
    %1491 = vmatprep.subr.mxu0 0.0
    %1492 = vmatpush1.msra.mxu0 0.0
    %1493 = vmatprep.mubr.f32.mxu0 0.0
    %1494 = vmatmul.mubr.f32.gmra.mrb[0].mxu0 %v1424
    %v1495 = vpop.f32.mrb[0].mxu0
    %v1496 = vadd.f32 %v1421, %v1495
    %v1497 = vpop.f32.mrb[0].mxu0
    %1498 = vmatprep.mubr.f32.mxu0 0.0
    %1499 = vmatmul.mubr.f32.gmra.mrb[0].mxu0 %v1427
    %v1500 = vpop.f32.mrb[0].mxu0
    %v1501 = vadd.f32 %v1421, %v1500
    %v1502 = vpop.f32.mrb[0].mxu0
    %1503 = vdwg.mxu0
    %1505 = vrot.lane.b32.xlu0 %v1496, 96
    %v1506 = vpop.permute.xlu0 %1505
    %v1508 = vmul.f32 %v1496, %v1506
    %v1510 = vsel %vm289, %v1508, 0
    %1512 = vmatprep.subr.mxu0 0.0
    %1513 = vmatpush1.msra.mxu0 %v273
    %1514 = vmatprep.subr.mxu0 0.0
    %1515 = vmatpush1.msra.mxu0 %v274
    %1516 = vmatprep.subr.mxu0 0.0
    %1517 = vmatpush1.msra.mxu0 %v275
    %1518 = vmatprep.subr.mxu0 0.0
    %1519 = vmatpush1.msra.mxu0 %v276
    %1520 = vmatprep.subr.mxu0 0.0
    %1521 = vmatpush1.msra.mxu0 0.0
    %1522 = vmatprep.subr.mxu0 0.0
    %1523 = vmatpush1.msra.mxu0 0.0
    %1524 = vmatprep.subr.mxu0 0.0
    %1525 = vmatpush1.msra.mxu0 0.0
    %1526 = vmatprep.subr.mxu0 0.0
    %1527 = vmatpush1.msra.mxu0 0.0
    %1528 = vmatprep.subr.mxu0 0.0
    %1529 = vmatpush1.msra.mxu0 0.0
    %1530 = vmatprep.subr.mxu0 0.0
    %1531 = vmatpush1.msra.mxu0 0.0
    %1532 = vmatprep.subr.mxu0 0.0
    %1533 = vmatpush1.msra.mxu0 0.0
    %1534 = vmatprep.subr.mxu0 0.0
    %1535 = vmatpush1.msra.mxu0 0.0
    %1536 = vmatprep.subr.mxu0 0.0
    %1537 = vmatpush1.msra.mxu0 0.0
    %1538 = vmatprep.subr.mxu0 0.0
    %1539 = vmatpush1.msra.mxu0 0.0
    %1540 = vmatprep.subr.mxu0 0.0
    %1541 = vmatpush1.msra.mxu0 0.0
    %1542 = vmatprep.subr.mxu0 0.0
    %1543 = vmatpush1.msra.mxu0 0.0
    %1544 = vmatprep.subr.mxu0 0.0
    %1545 = vmatpush1.msra.mxu0 0.0
    %1546 = vmatprep.subr.mxu0 0.0
    %1547 = vmatpush1.msra.mxu0 0.0
    %1548 = vmatprep.subr.mxu0 0.0
    %1549 = vmatpush1.msra.mxu0 0.0
    %1550 = vmatprep.subr.mxu0 0.0
    %1551 = vmatpush1.msra.mxu0 0.0
    %1552 = vmatprep.subr.mxu0 0.0
    %1553 = vmatpush1.msra.mxu0 0.0
    %1554 = vmatprep.subr.mxu0 0.0
    %1555 = vmatpush1.msra.mxu0 0.0
    %1556 = vmatprep.subr.mxu0 0.0
    %1557 = vmatpush1.msra.mxu0 0.0
    %1558 = vmatprep.subr.mxu0 0.0
    %1559 = vmatpush1.msra.mxu0 0.0
    %1560 = vmatprep.subr.mxu0 0.0
    %1561 = vmatpush1.msra.mxu0 0.0
    %1562 = vmatprep.subr.mxu0 0.0
    %1563 = vmatpush1.msra.mxu0 0.0
    %1564 = vmatprep.subr.mxu0 0.0
    %1565 = vmatpush1.msra.mxu0 0.0
    %1566 = vmatprep.subr.mxu0 0.0
    %1567 = vmatpush1.msra.mxu0 0.0
    %1568 = vmatprep.subr.mxu0 0.0
    %1569 = vmatpush1.msra.mxu0 0.0
    %1570 = vmatprep.subr.mxu0 0.0
    %1571 = vmatpush1.msra.mxu0 0.0
    %1572 = vmatprep.subr.mxu0 0.0
    %1573 = vmatpush1.msra.mxu0 0.0
    %1574 = vmatprep.subr.mxu0 0.0
    %1575 = vmatpush1.msra.mxu0 0.0
    %1576 = vmatprep.mubr.f32.mxu0 0.0
    %1577 = vmatmul.mubr.f32.gmra.mrb[0].mxu0 %v1510
    %v1578 = vpop.f32.mrb[0].mxu0
    %v1579 = vadd.f32 0.0, %v1578
    %v1580 = vpop.f32.mrb[0].mxu0
    %1581 = vdwg.mxu0
    %v1582 = vmul.f32 %v1579, 0.35355338
    %v1584 = vrot.slane %v1496, 5
    %v1585 = vrot.slane %v1501, 5
    %v1586 = vsel %vm451, %v1584, %v1585
    %1587 = vrot.lane.b32.xlu0 %v1586, 96
    %v1588 = vpop.permute.xlu0 %1587
    %v1590 = vmul.f32 %v1496, %v1588
    %v1592 = vsel %vm289, %v1590, 0
    %1594 = vmatprep.subr.mxu0 0.0
    %1595 = vmatpush1.msra.mxu0 %v273
    %1596 = vmatprep.subr.mxu0 0.0
    %1597 = vmatpush1.msra.mxu0 %v274
    %1598 = vmatprep.subr.mxu0 0.0
    %1599 = vmatpush1.msra.mxu0 %v275
    %1600 = vmatprep.subr.mxu0 0.0
    %1601 = vmatpush1.msra.mxu0 %v276
    %1602 = vmatprep.subr.mxu0 0.0
    %1603 = vmatpush1.msra.mxu0 0.0
    %1604 = vmatprep.subr.mxu0 0.0
    %1605 = vmatpush1.msra.mxu0 0.0
    %1606 = vmatprep.subr.mxu0 0.0
    %1607 = vmatpush1.msra.mxu0 0.0
    %1608 = vmatprep.subr.mxu0 0.0
    %1609 = vmatpush1.msra.mxu0 0.0
    %1610 = vmatprep.subr.mxu0 0.0
    %1611 = vmatpush1.msra.mxu0 0.0
    %1612 = vmatprep.subr.mxu0 0.0
    %1613 = vmatpush1.msra.mxu0 0.0
    %1614 = vmatprep.subr.mxu0 0.0
    %1615 = vmatpush1.msra.mxu0 0.0
    %1616 = vmatprep.subr.mxu0 0.0
    %1617 = vmatpush1.msra.mxu0 0.0
    %1618 = vmatprep.subr.mxu0 0.0
    %1619 = vmatpush1.msra.mxu0 0.0
    %1620 = vmatprep.subr.mxu0 0.0
    %1621 = vmatpush1.msra.mxu0 0.0
    %1622 = vmatprep.subr.mxu0 0.0
    %1623 = vmatpush1.msra.mxu0 0.0
    %1624 = vmatprep.subr.mxu0 0.0
    %1625 = vmatpush1.msra.mxu0 0.0
    %1626 = vmatprep.subr.mxu0 0.0
    %1627 = vmatpush1.msra.mxu0 0.0
    %1628 = vmatprep.subr.mxu0 0.0
    %1629 = vmatpush1.msra.mxu0 0.0
    %1630 = vmatprep.subr.mxu0 0.0
    %1631 = vmatpush1.msra.mxu0 0.0
    %1632 = vmatprep.subr.mxu0 0.0
    %1633 = vmatpush1.msra.mxu0 0.0
    %1634 = vmatprep.subr.mxu0 0.0
    %1635 = vmatpush1.msra.mxu0 0.0
    %1636 = vmatprep.subr.mxu0 0.0
    %1637 = vmatpush1.msra.mxu0 0.0
    %1638 = vmatprep.subr.mxu0 0.0
    %1639 = vmatpush1.msra.mxu0 0.0
    %1640 = vmatprep.subr.mxu0 0.0
    %1641 = vmatpush1.msra.mxu0 0.0
    %1642 = vmatprep.subr.mxu0 0.0
    %1643 = vmatpush1.msra.mxu0 0.0
    %1644 = vmatprep.subr.mxu0 0.0
    %1645 = vmatpush1.msra.mxu0 0.0
    %1646 = vmatprep.subr.mxu0 0.0
    %1647 = vmatpush1.msra.mxu0 0.0
    %1648 = vmatprep.subr.mxu0 0.0
    %1649 = vmatpush1.msra.mxu0 0.0
    %1650 = vmatprep.subr.mxu0 0.0
    %1651 = vmatpush1.msra.mxu0 0.0
    %1652 = vmatprep.subr.mxu0 0.0
    %1653 = vmatpush1.msra.mxu0 0.0
    %1654 = vmatprep.subr.mxu0 0.0
    %1655 = vmatpush1.msra.mxu0 0.0
    %1656 = vmatprep.subr.mxu0 0.0
    %1657 = vmatpush1.msra.mxu0 0.0
    %1658 = vmatprep.mubr.f32.mxu0 0.0
    %1659 = vmatmul.mubr.f32.gmra.mrb[0].mxu0 %v1592
    %v1660 = vpop.f32.mrb[0].mxu0
    %v1661 = vadd.f32 0.0, %v1660
    %v1662 = vpop.f32.mrb[0].mxu0
    %1663 = vdwg.mxu0
    %v1664 = vmul.f32 %v1661, 0.35355338
    %v1665 = vmax.f32 %v1582, %v1664
    %v1666 = vsub.f32 %v1582, %v1665
    %v1667 = vmul.f32 %v1666, 1.442695
    %v1668 = vpow.pop %v1667
    %v1669 = vsub.f32 %v1664, %v1665
    %v1670 = vmul.f32 %v1669, 1.442695
    %v1671 = vpow.pop %v1670
    %v1672 = vadd.f32 %v1668, %v1671
    %v1673 = vrcp.pop %v1672
    %v1674 = vmul.f32 %v1668, %v1673
    %v1676 = vsel %vm543, %v1674, 0
    %1678 = vmatprep.subr.mxu0 0.0
    %1679 = vmatpush1.msra.mxu0 %v549
    %1680 = vmatprep.subr.mxu0 0.0
    %1681 = vmatpush1.msra.mxu0 0.0
    %1682 = vmatprep.subr.mxu0 0.0
    %1683 = vmatpush1.msra.mxu0 0.0
    %1684 = vmatprep.subr.mxu0 0.0
    %1685 = vmatpush1.msra.mxu0 0.0
    %1686 = vmatprep.subr.mxu0 0.0
    %1687 = vmatpush1.msra.mxu0 0.0
    %1688 = vmatprep.subr.mxu0 0.0
    %1689 = vmatpush1.msra.mxu0 0.0
    %1690 = vmatprep.subr.mxu0 0.0
    %1691 = vmatpush1.msra.mxu0 0.0
    %1692 = vmatprep.subr.mxu0 0.0
    %1693 = vmatpush1.msra.mxu0 0.0
    %1694 = vmatprep.subr.mxu0 0.0
    %1695 = vmatpush1.msra.mxu0 0.0
    %1696 = vmatprep.subr.mxu0 0.0
    %1697 = vmatpush1.msra.mxu0 0.0
    %1698 = vmatprep.subr.mxu0 0.0
    %1699 = vmatpush1.msra.mxu0 0.0
    %1700 = vmatprep.subr.mxu0 0.0
    %1701 = vmatpush1.msra.mxu0 0.0
    %1702 = vmatprep.subr.mxu0 0.0
    %1703 = vmatpush1.msra.mxu0 0.0
    %1704 = vmatprep.subr.mxu0 0.0
    %1705 = vmatpush1.msra.mxu0 0.0
    %1706 = vmatprep.subr.mxu0 0.0
    %1707 = vmatpush1.msra.mxu0 0.0
    %1708 = vmatprep.subr.mxu0 0.0
    %1709 = vmatpush1.msra.mxu0 0.0
    %1710 = vmatprep.subr.mxu0 0.0
    %1711 = vmatpush1.msra.mxu0 0.0
    %1712 = vmatprep.subr.mxu0 0.0
    %1713 = vmatpush1.msra.mxu0 0.0
    %1714 = vmatprep.subr.mxu0 0.0
    %1715 = vmatpush1.msra.mxu0 0.0
    %1716 = vmatprep.subr.mxu0 0.0
    %1717 = vmatpush1.msra.mxu0 0.0
    %1718 = vmatprep.subr.mxu0 0.0
    %1719 = vmatpush1.msra.mxu0 0.0
    %1720 = vmatprep.subr.mxu0 0.0
    %1721 = vmatpush1.msra.mxu0 0.0
    %1722 = vmatprep.subr.mxu0 0.0
    %1723 = vmatpush1.msra.mxu0 0.0
    %1724 = vmatprep.subr.mxu0 0.0
    %1725 = vmatpush1.msra.mxu0 0.0
    %1726 = vmatprep.subr.mxu0 0.0
    %1727 = vmatpush1.msra.mxu0 0.0
    %1728 = vmatprep.subr.mxu0 0.0
    %1729 = vmatpush1.msra.mxu0 0.0
    %1730 = vmatprep.subr.mxu0 0.0
    %1731 = vmatpush1.msra.mxu0 0.0
    %1732 = vmatprep.subr.mxu0 0.0
    %1733 = vmatpush1.msra.mxu0 0.0
    %1734 = vmatprep.subr.mxu0 0.0
    %1735 = vmatpush1.msra.mxu0 0.0
    %1736 = vmatprep.subr.mxu0 0.0
    %1737 = vmatpush1.msra.mxu0 0.0
    %1738 = vmatprep.subr.mxu0 0.0
    %1739 = vmatpush1.msra.mxu0 0.0
    %1740 = vmatprep.subr.mxu0 0.0
    %1741 = vmatpush1.msra.mxu0 0.0
    %1742 = vmatprep.mubr.f32.mxu0 0.0
    %1743 = vmatmul.mubr.f32.gmra.mrb[0].mxu0 %v1676
    %v1744 = vpop.f32.mrb[0].mxu0
    %v1745 = vadd.f32 0.0, %v1744
    %v1746 = vpop.f32.mrb[0].mxu0
    %1747 = vdwg.mxu0
    %1748 = vrot.lane.b32.xlu0 %v1496, 64
    %v1749 = vpop.permute.xlu0 %1748
    %v1751 = vmul.f32 %v1745, %v1749
    %v1752 = vadd.f32 %v1751, 0.0
    %v1753 = vmul.f32 %v1671, %v1673
    %v1755 = vsel %vm543, %v1753, 0
    %1757 = vmatprep.subr.mxu0 0.0
    %1758 = vmatpush1.msra.mxu0 %v549
    %1759 = vmatprep.subr.mxu0 0.0
    %1760 = vmatpush1.msra.mxu0 0.0
    %1761 = vmatprep.subr.mxu0 0.0
    %1762 = vmatpush1.msra.mxu0 0.0
    %1763 = vmatprep.subr.mxu0 0.0
    %1764 = vmatpush1.msra.mxu0 0.0
    %1765 = vmatprep.subr.mxu0 0.0
    %1766 = vmatpush1.msra.mxu0 0.0
    %1767 = vmatprep.subr.mxu0 0.0
    %1768 = vmatpush1.msra.mxu0 0.0
    %1769 = vmatprep.subr.mxu0 0.0
    %1770 = vmatpush1.msra.mxu0 0.0
    %1771 = vmatprep.subr.mxu0 0.0
    %1772 = vmatpush1.msra.mxu0 0.0
    %1773 = vmatprep.subr.mxu0 0.0
    %1774 = vmatpush1.msra.mxu0 0.0
    %1775 = vmatprep.subr.mxu0 0.0
    %1776 = vmatpush1.msra.mxu0 0.0
    %1777 = vmatprep.subr.mxu0 0.0
    %1778 = vmatpush1.msra.mxu0 0.0
    %1779 = vmatprep.subr.mxu0 0.0
    %1780 = vmatpush1.msra.mxu0 0.0
    %1781 = vmatprep.subr.mxu0 0.0
    %1782 = vmatpush1.msra.mxu0 0.0
    %1783 = vmatprep.subr.mxu0 0.0
    %1784 = vmatpush1.msra.mxu0 0.0
    %1785 = vmatprep.subr.mxu0 0.0
    %1786 = vmatpush1.msra.mxu0 0.0
    %1787 = vmatprep.subr.mxu0 0.0
    %1788 = vmatpush1.msra.mxu0 0.0
    %1789 = vmatprep.subr.mxu0 0.0
    %1790 = vmatpush1.msra.mxu0 0.0
    %1791 = vmatprep.subr.mxu0 0.0
    %1792 = vmatpush1.msra.mxu0 0.0
    %1793 = vmatprep.subr.mxu0 0.0
    %1794 = vmatpush1.msra.mxu0 0.0
    %1795 = vmatprep.subr.mxu0 0.0
    %1796 = vmatpush1.msra.mxu0 0.0
    %1797 = vmatprep.subr.mxu0 0.0
    %1798 = vmatpush1.msra.mxu0 0.0
    %1799 = vmatprep.subr.mxu0 0.0
    %1800 = vmatpush1.msra.mxu0 0.0
    %1801 = vmatprep.subr.mxu0 0.0
    %1802 = vmatpush1.msra.mxu0 0.0
    %1803 = vmatprep.subr.mxu0 0.0
    %1804 = vmatpush1.msra.mxu0 0.0
    %1805 = vmatprep.subr.mxu0 0.0
    %1806 = vmatpush1.msra.mxu0 0.0
    %1807 = vmatprep.subr.mxu0 0.0
    %1808 = vmatpush1.msra.mxu0 0.0
    %1809 = vmatprep.subr.mxu0 0.0
    %1810 = vmatpush1.msra.mxu0 0.0
    %1811 = vmatprep.subr.mxu0 0.0
    %1812 = vmatpush1.msra.mxu0 0.0
    %1813 = vmatprep.subr.mxu0 0.0
    %1814 = vmatpush1.msra.mxu0 0.0
    %1815 = vmatprep.subr.mxu0 0.0
    %1816 = vmatpush1.msra.mxu0 0.0
    %1817 = vmatprep.subr.mxu0 0.0
    %1818 = vmatpush1.msra.mxu0 0.0
    %1819 = vmatprep.subr.mxu0 0.0
    %1820 = vmatpush1.msra.mxu0 0.0
    %1821 = vmatprep.mubr.f32.mxu0 0.0
    %1822 = vmatmul.mubr.f32.gmra.mrb[0].mxu0 %v1755
    %v1823 = vpop.f32.mrb[0].mxu0
    %v1824 = vadd.f32 0.0, %v1823
    %v1825 = vpop.f32.mrb[0].mxu0
    %1826 = vdwg.mxu0
    %1827 = vrot.lane.b32.xlu0 %v1586, 64
    %v1828 = vpop.permute.xlu0 %1827
    %v1830 = vmul.f32 %v1824, %v1828
    %v1831 = vadd.f32 %v1752, %v1830
    %1832 = vst.msk [vmem:[#allocation2] sm:$0x1f] %vm705, %v1831
    %v1833 = vrot.slane %v1496, 3
    %1834 = vrot.lane.b32.xlu0 %v1833, 96
    %v1835 = vpop.permute.xlu0 %1834
    %v1837 = vmul.f32 %v1496, %v1835
    %v1838 = vmul.f32 %v1501, %v1835
    %v1841 = vrot.slane %v1837, 5
    %v1842 = vrot.slane %v1838, 5
    %v1843 = vsel %vm451, %v1841, %v1842
    %v1844 = vsel %vm289, %v1843, 0
    %1846 = vmatprep.subr.mxu0 0.0
    %1847 = vmatpush1.msra.mxu0 %v273
    %1848 = vmatprep.subr.mxu0 0.0
    %1849 = vmatpush1.msra.mxu0 %v274
    %1850 = vmatprep.subr.mxu0 0.0
    %1851 = vmatpush1.msra.mxu0 %v275
    %1852 = vmatprep.subr.mxu0 0.0
    %1853 = vmatpush1.msra.mxu0 %v276
    %1854 = vmatprep.subr.mxu0 0.0
    %1855 = vmatpush1.msra.mxu0 0.0
    %1856 = vmatprep.subr.mxu0 0.0
    %1857 = vmatpush1.msra.mxu0 0.0
    %1858 = vmatprep.subr.mxu0 0.0
    %1859 = vmatpush1.msra.mxu0 0.0
    %1860 = vmatprep.subr.mxu0 0.0
    %1861 = vmatpush1.msra.mxu0 0.0
    %1862 = vmatprep.subr.mxu0 0.0
    %1863 = vmatpush1.msra.mxu0 0.0
    %1864 = vmatprep.subr.mxu0 0.0
    %1865 = vmatpush1.msra.mxu0 0.0
    %1866 = vmatprep.subr.mxu0 0.0
    %1867 = vmatpush1.msra.mxu0 0.0
    %1868 = vmatprep.subr.mxu0 0.0
    %1869 = vmatpush1.msra.mxu0 0.0
    %1870 = vmatprep.subr.mxu0 0.0
    %1871 = vmatpush1.msra.mxu0 0.0
    %1872 = vmatprep.subr.mxu0 0.0
    %1873 = vmatpush1.msra.mxu0 0.0
    %1874 = vmatprep.subr.mxu0 0.0
    %1875 = vmatpush1.msra.mxu0 0.0
    %1876 = vmatprep.subr.mxu0 0.0
    %1877 = vmatpush1.msra.mxu0 0.0
    %1878 = vmatprep.subr.mxu0 0.0
    %1879 = vmatpush1.msra.mxu0 0.0
    %1880 = vmatprep.subr.mxu0 0.0
    %1881 = vmatpush1.msra.mxu0 0.0
    %1882 = vmatprep.subr.mxu0 0.0
    %1883 = vmatpush1.msra.mxu0 0.0
    %1884 = vmatprep.subr.mxu0 0.0
    %1885 = vmatpush1.msra.mxu0 0.0
    %1886 = vmatprep.subr.mxu0 0.0
    %1887 = vmatpush1.msra.mxu0 0.0
    %1888 = vmatprep.subr.mxu0 0.0
    %1889 = vmatpush1.msra.mxu0 0.0
    %1890 = vmatprep.subr.mxu0 0.0
    %1891 = vmatpush1.msra.mxu0 0.0
    %1892 = vmatprep.subr.mxu0 0.0
    %1893 = vmatpush1.msra.mxu0 0.0
    %1894 = vmatprep.subr.mxu0 0.0
    %1895 = vmatpush1.msra.mxu0 0.0
    %1896 = vmatprep.subr.mxu0 0.0
    %1897 = vmatpush1.msra.mxu0 0.0
    %1898 = vmatprep.subr.mxu0 0.0
    %1899 = vmatpush1.msra.mxu0 0.0
    %1900 = vmatprep.subr.mxu0 0.0
    %1901 = vmatpush1.msra.mxu0 0.0
    %1902 = vmatprep.subr.mxu0 0.0
    %1903 = vmatpush1.msra.mxu0 0.0
    %1904 = vmatprep.subr.mxu0 0.0
    %1905 = vmatpush1.msra.mxu0 0.0
    %1906 = vmatprep.subr.mxu0 0.0
    %1907 = vmatpush1.msra.mxu0 0.0
    %1908 = vmatprep.subr.mxu0 0.0
    %1909 = vmatpush1.msra.mxu0 0.0
    %1910 = vmatprep.mubr.f32.mxu0 0.0
    %1911 = vmatmul.mubr.f32.gmra.mrb[0].mxu0 %v1844
    %v1912 = vpop.f32.mrb[0].mxu0
    %v1913 = vadd.f32 0.0, %v1912
    %v1914 = vpop.f32.mrb[0].mxu0
    %1915 = vdwg.mxu0
    %v1916 = vmul.f32 %v1913, 0.35355338
    %1917 = vrot.lane.b32.xlu0 %v1501, 96
    %v1918 = vpop.permute.xlu0 %1917
    %v1920 = vmul.f32 %v1501, %v1918
    %v1922 = vrot.slane %v1508, 5
    %v1923 = vrot.slane %v1920, 5
    %v1924 = vsel %vm451, %v1922, %v1923
    %v1925 = vsel %vm289, %v1924, 0
    %1927 = vmatprep.subr.mxu0 0.0
    %1928 = vmatpush1.msra.mxu0 %v273
    %1929 = vmatprep.subr.mxu0 0.0
    %1930 = vmatpush1.msra.mxu0 %v274
    %1931 = vmatprep.subr.mxu0 0.0
    %1932 = vmatpush1.msra.mxu0 %v275
    %1933 = vmatprep.subr.mxu0 0.0
    %1934 = vmatpush1.msra.mxu0 %v276
    %1935 = vmatprep.subr.mxu0 0.0
    %1936 = vmatpush1.msra.mxu0 0.0
    %1937 = vmatprep.subr.mxu0 0.0
    %1938 = vmatpush1.msra.mxu0 0.0
    %1939 = vmatprep.subr.mxu0 0.0
    %1940 = vmatpush1.msra.mxu0 0.0
    %1941 = vmatprep.subr.mxu0 0.0
    %1942 = vmatpush1.msra.mxu0 0.0
    %1943 = vmatprep.subr.mxu0 0.0
    %1944 = vmatpush1.msra.mxu0 0.0
    %1945 = vmatprep.subr.mxu0 0.0
    %1946 = vmatpush1.msra.mxu0 0.0
    %1947 = vmatprep.subr.mxu0 0.0
    %1948 = vmatpush1.msra.mxu0 0.0
    %1949 = vmatprep.subr.mxu0 0.0
    %1950 = vmatpush1.msra.mxu0 0.0
    %1951 = vmatprep.subr.mxu0 0.0
    %1952 = vmatpush1.msra.mxu0 0.0
    %1953 = vmatprep.subr.mxu0 0.0
    %1954 = vmatpush1.msra.mxu0 0.0
    %1955 = vmatprep.subr.mxu0 0.0
    %1956 = vmatpush1.msra.mxu0 0.0
    %1957 = vmatprep.subr.mxu0 0.0
    %1958 = vmatpush1.msra.mxu0 0.0
    %1959 = vmatprep.subr.mxu0 0.0
    %1960 = vmatpush1.msra.mxu0 0.0
    %1961 = vmatprep.subr.mxu0 0.0
    %1962 = vmatpush1.msra.mxu0 0.0
    %1963 = vmatprep.subr.mxu0 0.0
    %1964 = vmatpush1.msra.mxu0 0.0
    %1965 = vmatprep.subr.mxu0 0.0
    %1966 = vmatpush1.msra.mxu0 0.0
    %1967 = vmatprep.subr.mxu0 0.0
    %1968 = vmatpush1.msra.mxu0 0.0
    %1969 = vmatprep.subr.mxu0 0.0
    %1970 = vmatpush1.msra.mxu0 0.0
    %1971 = vmatprep.subr.mxu0 0.0
    %1972 = vmatpush1.msra.mxu0 0.0
    %1973 = vmatprep.subr.mxu0 0.0
    %1974 = vmatpush1.msra.mxu0 0.0
    %1975 = vmatprep.subr.mxu0 0.0
    %1976 = vmatpush1.msra.mxu0 0.0
    %1977 = vmatprep.subr.mxu0 0.0
    %1978 = vmatpush1.msra.mxu0 0.0
    %1979 = vmatprep.subr.mxu0 0.0
    %1980 = vmatpush1.msra.mxu0 0.0
    %1981 = vmatprep.subr.mxu0 0.0
    %1982 = vmatpush1.msra.mxu0 0.0
    %1983 = vmatprep.subr.mxu0 0.0
    %1984 = vmatpush1.msra.mxu0 0.0
    %1985 = vmatprep.subr.mxu0 0.0
    %1986 = vmatpush1.msra.mxu0 0.0
    %1987 = vmatprep.subr.mxu0 0.0
    %1988 = vmatpush1.msra.mxu0 0.0
    %1989 = vmatprep.subr.mxu0 0.0
    %1990 = vmatpush1.msra.mxu0 0.0
    %1991 = vmatprep.mubr.f32.mxu0 0.0
    %1992 = vmatmul.mubr.f32.gmra.mrb[0].mxu0 %v1925
    %v1993 = vpop.f32.mrb[0].mxu0
    %v1994 = vadd.f32 0.0, %v1993
    %v1995 = vpop.f32.mrb[0].mxu0
    %1996 = vdwg.mxu0
    %v1997 = vmul.f32 %v1994, 0.35355338
    %v1998 = vmax.f32 %v1916, %v1997
    %v1999 = vsub.f32 %v1916, %v1998
    %v2000 = vmul.f32 %v1999, 1.442695
    %v2001 = vpow.pop %v2000
    %v2002 = vsub.f32 %v1997, %v1998
    %v2003 = vmul.f32 %v2002, 1.442695
    %v2004 = vpow.pop %v2003
    %v2005 = vadd.f32 %v2001, %v2004
    %v2006 = vrcp.pop %v2005
    %v2007 = vmul.f32 %v2001, %v2006
    %v2009 = vsel %vm543, %v2007, 0
    %2011 = vmatprep.subr.mxu0 0.0
    %2012 = vmatpush1.msra.mxu0 %v549
    %2013 = vmatprep.subr.mxu0 0.0
    %2014 = vmatpush1.msra.mxu0 0.0
    %2015 = vmatprep.subr.mxu0 0.0
    %2016 = vmatpush1.msra.mxu0 0.0
    %2017 = vmatprep.subr.mxu0 0.0
    %2018 = vmatpush1.msra.mxu0 0.0
    %2019 = vmatprep.subr.mxu0 0.0
    %2020 = vmatpush1.msra.mxu0 0.0
    %2021 = vmatprep.subr.mxu0 0.0
    %2022 = vmatpush1.msra.mxu0 0.0
    %2023 = vmatprep.subr.mxu0 0.0
    %2024 = vmatpush1.msra.mxu0 0.0
    %2025 = vmatprep.subr.mxu0 0.0
    %2026 = vmatpush1.msra.mxu0 0.0
    %2027 = vmatprep.subr.mxu0 0.0
    %2028 = vmatpush1.msra.mxu0 0.0
    %2029 = vmatprep.subr.mxu0 0.0
    %2030 = vmatpush1.msra.mxu0 0.0
    %2031 = vmatprep.subr.mxu0 0.0
    %2032 = vmatpush1.msra.mxu0 0.0
    %2033 = vmatprep.subr.mxu0 0.0
    %2034 = vmatpush1.msra.mxu0 0.0
    %2035 = vmatprep.subr.mxu0 0.0
    %2036 = vmatpush1.msra.mxu0 0.0
    %2037 = vmatprep.subr.mxu0 0.0
    %2038 = vmatpush1.msra.mxu0 0.0
    %2039 = vmatprep.subr.mxu0 0.0
    %2040 = vmatpush1.msra.mxu0 0.0
    %2041 = vmatprep.subr.mxu0 0.0
    %2042 = vmatpush1.msra.mxu0 0.0
    %2043 = vmatprep.subr.mxu0 0.0
    %2044 = vmatpush1.msra.mxu0 0.0
    %2045 = vmatprep.subr.mxu0 0.0
    %2046 = vmatpush1.msra.mxu0 0.0
    %2047 = vmatprep.subr.mxu0 0.0
    %2048 = vmatpush1.msra.mxu0 0.0
    %2049 = vmatprep.subr.mxu0 0.0
    %2050 = vmatpush1.msra.mxu0 0.0
    %2051 = vmatprep.subr.mxu0 0.0
    %2052 = vmatpush1.msra.mxu0 0.0
    %2053 = vmatprep.subr.mxu0 0.0
    %2054 = vmatpush1.msra.mxu0 0.0
    %2055 = vmatprep.subr.mxu0 0.0
    %2056 = vmatpush1.msra.mxu0 0.0
    %2057 = vmatprep.subr.mxu0 0.0
    %2058 = vmatpush1.msra.mxu0 0.0
    %2059 = vmatprep.subr.mxu0 0.0
    %2060 = vmatpush1.msra.mxu0 0.0
    %2061 = vmatprep.subr.mxu0 0.0
    %2062 = vmatpush1.msra.mxu0 0.0
    %2063 = vmatprep.subr.mxu0 0.0
    %2064 = vmatpush1.msra.mxu0 0.0
    %2065 = vmatprep.subr.mxu0 0.0
    %2066 = vmatpush1.msra.mxu0 0.0
    %2067 = vmatprep.subr.mxu0 0.0
    %2068 = vmatpush1.msra.mxu0 0.0
    %2069 = vmatprep.subr.mxu0 0.0
    %2070 = vmatpush1.msra.mxu0 0.0
    %2071 = vmatprep.subr.mxu0 0.0
    %2072 = vmatpush1.msra.mxu0 0.0
    %2073 = vmatprep.subr.mxu0 0.0
    %2074 = vmatpush1.msra.mxu0 0.0
    %2075 = vmatprep.mubr.f32.mxu0 0.0
    %2076 = vmatmul.mubr.f32.gmra.mrb[0].mxu0 %v2009
    %v2077 = vpop.f32.mrb[0].mxu0
    %v2078 = vadd.f32 0.0, %v2077
    %v2079 = vpop.f32.mrb[0].mxu0
    %2080 = vdwg.mxu0
    %v2081 = vmul.f32 %v2078, %v1749
    %v2082 = vadd.f32 %v2081, 0.0
    %v2083 = vmul.f32 %v2004, %v2006
    %v2085 = vsel %vm543, %v2083, 0
    %2087 = vmatprep.subr.mxu0 0.0
    %2088 = vmatpush1.msra.mxu0 %v549
    %2089 = vmatprep.subr.mxu0 0.0
    %2090 = vmatpush1.msra.mxu0 0.0
    %2091 = vmatprep.subr.mxu0 0.0
    %2092 = vmatpush1.msra.mxu0 0.0
    %2093 = vmatprep.subr.mxu0 0.0
    %2094 = vmatpush1.msra.mxu0 0.0
    %2095 = vmatprep.subr.mxu0 0.0
    %2096 = vmatpush1.msra.mxu0 0.0
    %2097 = vmatprep.subr.mxu0 0.0
    %2098 = vmatpush1.msra.mxu0 0.0
    %2099 = vmatprep.subr.mxu0 0.0
    %2100 = vmatpush1.msra.mxu0 0.0
    %2101 = vmatprep.subr.mxu0 0.0
    %2102 = vmatpush1.msra.mxu0 0.0
    %2103 = vmatprep.subr.mxu0 0.0
    %2104 = vmatpush1.msra.mxu0 0.0
    %2105 = vmatprep.subr.mxu0 0.0
    %2106 = vmatpush1.msra.mxu0 0.0
    %2107 = vmatprep.subr.mxu0 0.0
    %2108 = vmatpush1.msra.mxu0 0.0
    %2109 = vmatprep.subr.mxu0 0.0
    %2110 = vmatpush1.msra.mxu0 0.0
    %2111 = vmatprep.subr.mxu0 0.0
    %2112 = vmatpush1.msra.mxu0 0.0
    %2113 = vmatprep.subr.mxu0 0.0
    %2114 = vmatpush1.msra.mxu0 0.0
    %2115 = vmatprep.subr.mxu0 0.0
    %2116 = vmatpush1.msra.mxu0 0.0
    %2117 = vmatprep.subr.mxu0 0.0
    %2118 = vmatpush1.msra.mxu0 0.0
    %2119 = vmatprep.subr.mxu0 0.0
    %2120 = vmatpush1.msra.mxu0 0.0
    %2121 = vmatprep.subr.mxu0 0.0
    %2122 = vmatpush1.msra.mxu0 0.0
    %2123 = vmatprep.subr.mxu0 0.0
    %2124 = vmatpush1.msra.mxu0 0.0
    %2125 = vmatprep.subr.mxu0 0.0
    %2126 = vmatpush1.msra.mxu0 0.0
    %2127 = vmatprep.subr.mxu0 0.0
    %2128 = vmatpush1.msra.mxu0 0.0
    %2129 = vmatprep.subr.mxu0 0.0
    %2130 = vmatpush1.msra.mxu0 0.0
    %2131 = vmatprep.subr.mxu0 0.0
    %2132 = vmatpush1.msra.mxu0 0.0
    %2133 = vmatprep.subr.mxu0 0.0
    %2134 = vmatpush1.msra.mxu0 0.0
    %2135 = vmatprep.subr.mxu0 0.0
    %2136 = vmatpush1.msra.mxu0 0.0
    %2137 = vmatprep.subr.mxu0 0.0
    %2138 = vmatpush1.msra.mxu0 0.0
    %2139 = vmatprep.subr.mxu0 0.0
    %2140 = vmatpush1.msra.mxu0 0.0
    %2141 = vmatprep.subr.mxu0 0.0
    %2142 = vmatpush1.msra.mxu0 0.0
    %2143 = vmatprep.subr.mxu0 0.0
    %2144 = vmatpush1.msra.mxu0 0.0
    %2145 = vmatprep.subr.mxu0 0.0
    %2146 = vmatpush1.msra.mxu0 0.0
    %2147 = vmatprep.subr.mxu0 0.0
    %2148 = vmatpush1.msra.mxu0 0.0
    %2149 = vmatprep.subr.mxu0 0.0
    %2150 = vmatpush1.msra.mxu0 0.0
    %2151 = vmatprep.mubr.f32.mxu0 0.0
    %2152 = vmatmul.mubr.f32.gmra.mrb[0].mxu0 %v2085
    %v2153 = vpop.f32.mrb[0].mxu0
    %v2154 = vadd.f32 0.0, %v2153
    %v2155 = vpop.f32.mrb[0].mxu0
    %2156 = vdwg.mxu0
    %v2157 = vmul.f32 %v2154, %v1828
    %v2158 = vadd.f32 %v2082, %v2157
    %2159 = vst.msk [vmem:[#allocation2 + $0x5] sm:$0x1f] %vm705, %v2158
    %v2160 = vld [vmem:[#allocation2] sm:$0xff]
    %v2161 = vld [vmem:[#allocation2 + $0x8] sm:$0x3]
    %v2162 = vld [vmem:[%s43] sm:$0xff]
    %v2163 = vld [vmem:[%s43 + $0x8] sm:$0xff]
    %v2164 = vld [vmem:[%s43 + $0x10] sm:$0xff]
    %v2165 = vld [vmem:[%s43 + $0x18] sm:$0xff]
    %v2166 = vld [vmem:[%s45] sm:$0x1]
    %v2168 = vlaneseq
    %v2169 = vshrl.u32 %v2168, 7
    %v2170 = vsub.s32 0, %v2169
    %v2171 = vrot.slane %v2166, %v2170
    %v2174 = vsel %vm289, %v2160, 0
    %v2177 = vsel %vm289, %v2161, 0
    %2179 = vmatprep.subr.mxu0 0.0
    %2180 = vmatpush1.msra.mxu0 %v2162
    %2181 = vmatprep.subr.mxu0 0.0
    %2182 = vmatpush1.msra.mxu0 %v2163
    %2183 = vmatprep.subr.mxu0 0.0
    %2184 = vmatpush1.msra.mxu0 %v2164
    %2185 = vmatprep.subr.mxu0 0.0
    %2186 = vmatpush1.msra.mxu0 %v2165
    %2187 = vmatprep.subr.mxu0 0.0
    %2188 = vmatpush1.msra.mxu0 0.0
    %2189 = vmatprep.subr.mxu0 0.0
    %2190 = vmatpush1.msra.mxu0 0.0
    %2191 = vmatprep.subr.mxu0 0.0
    %2192 = vmatpush1.msra.mxu0 0.0
    %2193 = vmatprep.subr.mxu0 0.0
    %2194 = vmatpush1.msra.mxu0 0.0
    %2195 = vmatprep.subr.mxu0 0.0
    %2196 = vmatpush1.msra.mxu0 0.0
    %2197 = vmatprep.subr.mxu0 0.0
    %2198 = vmatpush1.msra.mxu0 0.0
    %2199 = vmatprep.subr.mxu0 0.0
    %2200 = vmatpush1.msra.mxu0 0.0
    %2201 = vmatprep.subr.mxu0 0.0
    %2202 = vmatpush1.msra.mxu0 0.0
    %2203 = vmatprep.subr.mxu0 0.0
    %2204 = vmatpush1.msra.mxu0 0.0
    %2205 = vmatprep.subr.mxu0 0.0
    %2206 = vmatpush1.msra.mxu0 0.0
    %2207 = vmatprep.subr.mxu0 0.0
    %2208 = vmatpush1.msra.mxu0 0.0
    %2209 = vmatprep.subr.mxu0 0.0
    %2210 = vmatpush1.msra.mxu0 0.0
    %2211 = vmatprep.subr.mxu0 0.0
    %2212 = vmatpush1.msra.mxu0 0.0
    %2213 = vmatprep.subr.mxu0 0.0
    %2214 = vmatpush1.msra.mxu0 0.0
    %2215 = vmatprep.subr.mxu0 0.0
    %2216 = vmatpush1.msra.mxu0 0.0
    %2217 = vmatprep.subr.mxu0 0.0
    %2218 = vmatpush1.msra.mxu0 0.0
    %2219 = vmatprep.subr.mxu0 0.0
    %2220 = vmatpush1.msra.mxu0 0.0
    %2221 = vmatprep.subr.mxu0 0.0
    %2222 = vmatpush1.msra.mxu0 0.0
    %2223 = vmatprep.subr.mxu0 0.0
    %2224 = vmatpush1.msra.mxu0 0.0
    %2225 = vmatprep.subr.mxu0 0.0
    %2226 = vmatpush1.msra.mxu0 0.0
    %2227 = vmatprep.subr.mxu0 0.0
    %2228 = vmatpush1.msra.mxu0 0.0
    %2229 = vmatprep.subr.mxu0 0.0
    %2230 = vmatpush1.msra.mxu0 0.0
    %2231 = vmatprep.subr.mxu0 0.0
    %2232 = vmatpush1.msra.mxu0 0.0
    %2233 = vmatprep.subr.mxu0 0.0
    %2234 = vmatpush1.msra.mxu0 0.0
    %2235 = vmatprep.subr.mxu0 0.0
    %2236 = vmatpush1.msra.mxu0 0.0
    %2237 = vmatprep.subr.mxu0 0.0
    %2238 = vmatpush1.msra.mxu0 0.0
    %2239 = vmatprep.subr.mxu0 0.0
    %2240 = vmatpush1.msra.mxu0 0.0
    %2241 = vmatprep.subr.mxu0 0.0
    %2242 = vmatpush1.msra.mxu0 0.0
    %2243 = vmatprep.mubr.f32.mxu0 0.0
    %2244 = vmatmul.mubr.f32.gmra.mrb[0].mxu0 %v2174
    %v2245 = vpop.f32.mrb[0].mxu0
    %v2246 = vadd.f32 %v2171, %v2245
    %v2247 = vpop.f32.mrb[0].mxu0
    %2248 = vmatprep.mubr.f32.mxu0 0.0
    %2249 = vmatmul.mubr.f32.gmra.mrb[0].mxu0 %v2177
    %v2250 = vpop.f32.mrb[0].mxu0
    %v2251 = vadd.f32 %v2171, %v2250
    %v2252 = vpop.f32.mrb[0].mxu0
    %2253 = vdwg.mxu0
    %v2254 = vadd.f32 %v1410, %v2246
    %v2255 = vadd.f32 %v1411, %v2251
    %v2256 = vld [vmem:[%s47] sm:$0x1]
    %v2257 = vld [vmem:[%s49] sm:$0x1]
    %v2258 = vsel %vm289, %v2254, 0.0
    %2259 = vadd.xlane.f32.xlu0 %v2258
    %v2260 = vpop.xlane.xlu0 %2259
    %v2261 = vsel %vm1135, %v2255, 0.0
    %2262 = vadd.xlane.f32.xlu0 %v2261
    %v2263 = vpop.xlane.xlu0 %2262
    %v2264 = vmul.f32 %v2260, %v1139
    %v2265 = vmul.f32 %v2263, %v1139
    %v2266 = vsub.f32 %v2254, %v2264
    %v2267 = vsub.f32 %v2255, %v2265
    %v2268 = vmul.f32 %v2266, %v2266
    %v2269 = vmul.f32 %v2267, %v2267
    %v2270 = vsel %vm289, %v2268, 0.0
    %2271 = vadd.xlane.f32.xlu0 %v2270
    %v2272 = vpop.xlane.xlu0 %2271
    %v2273 = vsel %vm1135, %v2269, 0.0
    %2274 = vadd.xlane.f32.xlu0 %v2273
    %v2275 = vpop.xlane.xlu0 %2274
    %v2276 = vmul.f32 %v2272, %v1139
    %v2277 = vmul.f32 %v2275, %v1139
    %v2278 = vadd.f32 %v2276, 1e-05
    %v2279 = vadd.f32 %v2277, 1e-05
    %v2280 = vrsqrt.pop %v2278
    %v2281 = vrsqrt.pop %v2279
    %v2282 = vmul.f32 %v2266, %v2280
    %v2283 = vmul.f32 %v2267, %v2281
    %v2285 = vlaneseq
    %v2286 = vshrl.u32 %v2285, 7
    %v2287 = vsub.s32 0, %v2286
    %v2288 = vrot.slane %v2256, %v2287
    %v2290 = vmul.f32 %v2282, %v2288
    %v2291 = vmul.f32 %v2283, %v2288
    %v2293 = vlaneseq
    %v2294 = vshrl.u32 %v2293, 7
    %v2295 = vsub.s32 0, %v2294
    %v2296 = vrot.slane %v2257, %v2295
    %v2298 = vadd.f32 %v2290, %v2296
    %v2299 = vadd.f32 %v2291, %v2296
    %v2300 = vld [vmem:[%s51] sm:$0xff]
    %v2301 = vld [vmem:[%s51 + $0x8] sm:$0xff]
    %v2302 = vld [vmem:[%s51 + $0x10] sm:$0xff]
    %v2303 = vld [vmem:[%s51 + $0x18] sm:$0xff]
    %v2304 = vld [vmem:[%s53] sm:$0x1]
    %v2306 = vlaneseq
    %v2307 = vshrl.u32 %v2306, 7
    %v2308 = vsub.s32 0, %v2307
    %v2309 = vrot.slane %v2304, %v2308
    %v2312 = vsel %vm289, %v2298, 0
    %v2315 = vsel %vm289, %v2299, 0
    %2317 = vmatprep.subr.mxu0 0.0
    %2318 = vmatpush1.msra.mxu0 %v2300
    %2319 = vmatprep.subr.mxu0 0.0
    %2320 = vmatpush1.msra.mxu0 %v2301
    %2321 = vmatprep.subr.mxu0 0.0
    %2322 = vmatpush1.msra.mxu0 %v2302
    %2323 = vmatprep.subr.mxu0 0.0
    %2324 = vmatpush1.msra.mxu0 %v2303
    %2325 = vmatprep.subr.mxu0 0.0
    %2326 = vmatpush1.msra.mxu0 0.0
    %2327 = vmatprep.subr.mxu0 0.0
    %2328 = vmatpush1.msra.mxu0 0.0
    %2329 = vmatprep.subr.mxu0 0.0
    %2330 = vmatpush1.msra.mxu0 0.0
    %2331 = vmatprep.subr.mxu0 0.0
    %2332 = vmatpush1.msra.mxu0 0.0
    %2333 = vmatprep.subr.mxu0 0.0
    %2334 = vmatpush1.msra.mxu0 0.0
    %2335 = vmatprep.subr.mxu0 0.0
    %2336 = vmatpush1.msra.mxu0 0.0
    %2337 = vmatprep.subr.mxu0 0.0
    %2338 = vmatpush1.msra.mxu0 0.0
    %2339 = vmatprep.subr.mxu0 0.0
    %2340 = vmatpush1.msra.mxu0 0.0
    %2341 = vmatprep.subr.mxu0 0.0
    %2342 = vmatpush1.msra.mxu0 0.0
    %2343 = vmatprep.subr.mxu0 0.0
    %2344 = vmatpush1.msra.mxu0 0.0
    %2345 = vmatprep.subr.mxu0 0.0
    %2346 = vmatpush1.msra.mxu0 0.0
    %2347 = vmatprep.subr.mxu0 0.0
    %2348 = vmatpush1.msra.mxu0 0.0
    %2349 = vmatprep.subr.mxu0 0.0
    %2350 = vmatpush1.msra.mxu0 0.0
    %2351 = vmatprep.subr.mxu0 0.0
    %2352 = vmatpush1.msra.mxu0 0.0
    %2353 = vmatprep.subr.mxu0 0.0
    %2354 = vmatpush1.msra.mxu0 0.0
    %2355 = vmatprep.subr.mxu0 0.0
    %2356 = vmatpush1.msra.mxu0 0.0
    %2357 = vmatprep.subr.mxu0 0.0
    %2358 = vmatpush1.msra.mxu0 0.0
    %2359 = vmatprep.subr.mxu0 0.0
    %2360 = vmatpush1.msra.mxu0 0.0
    %2361 = vmatprep.subr.mxu0 0.0
    %2362 = vmatpush1.msra.mxu0 0.0
    %2363 = vmatprep.subr.mxu0 0.0
    %2364 = vmatpush1.msra.mxu0 0.0
    %2365 = vmatprep.subr.mxu0 0.0
    %2366 = vmatpush1.msra.mxu0 0.0
    %2367 = vmatprep.subr.mxu0 0.0
    %2368 = vmatpush1.msra.mxu0 0.0
    %2369 = vmatprep.subr.mxu0 0.0
    %2370 = vmatpush1.msra.mxu0 0.0
    %2371 = vmatprep.subr.mxu0 0.0
    %2372 = vmatpush1.msra.mxu0 0.0
    %2373 = vmatprep.subr.mxu0 0.0
    %2374 = vmatpush1.msra.mxu0 0.0
    %2375 = vmatprep.subr.mxu0 0.0
    %2376 = vmatpush1.msra.mxu0 0.0
    %2377 = vmatprep.subr.mxu0 0.0
    %2378 = vmatpush1.msra.mxu0 0.0
    %2379 = vmatprep.subr.mxu0 0.0
    %2380 = vmatpush1.msra.mxu0 0.0
    %2381 = vmatprep.mubr.f32.mxu0 0.0
    %2382 = vmatmul.mubr.f32.gmra.mrb[0].mxu0 %v2312
    %v2383 = vpop.f32.mrb[0].mxu0
    %v2384 = vadd.f32 %v2309, %v2383
    %v2385 = vpop.f32.mrb[0].mxu0
    %2386 = vmatprep.mubr.f32.mxu0 0.0
    %2387 = vmatmul.mubr.f32.gmra.mrb[0].mxu0 %v2315
    %v2388 = vpop.f32.mrb[0].mxu0
    %v2389 = vadd.f32 %v2309, %v2388
    %v2390 = vpop.f32.mrb[0].mxu0
    %2391 = vdwg.mxu0
    %v2392 = vmax.f32 %v2384, 0.0
    %v2393 = vmax.f32 %v2389, 0.0
    %v2394 = vld [vmem:[%s55] sm:$0xff]
    %v2395 = vld [vmem:[%s55 + $0x8] sm:$0xff]
    %v2396 = vld [vmem:[%s55 + $0x10] sm:$0xff]
    %v2397 = vld [vmem:[%s55 + $0x18] sm:$0xff]
    %v2398 = vld [vmem:[%s55 + $0x20] sm:$0xff]
    %v2399 = vld [vmem:[%s55 + $0x28] sm:$0xff]
    %v2400 = vld [vmem:[%s55 + $0x30] sm:$0xff]
    %v2401 = vld [vmem:[%s55 + $0x38] sm:$0xff]
    %v2402 = vld [vmem:[%s57] sm:$0x1]
    %v2404 = vlaneseq
    %v2405 = vshrl.u32 %v2404, 7
    %v2406 = vsub.s32 0, %v2405
    %v2407 = vrot.slane %v2402, %v2406
    %v2410 = vsel %vm180, %v2392, 0
    %v2413 = vsel %vm180, %v2393, 0
    %2415 = vmatprep.subr.mxu0 0.0
    %2416 = vmatpush1.msra.mxu0 %v2394
    %2417 = vmatprep.subr.mxu0 0.0
    %2418 = vmatpush1.msra.mxu0 %v2395
    %2419 = vmatprep.subr.mxu0 0.0
    %2420 = vmatpush1.msra.mxu0 %v2396
    %2421 = vmatprep.subr.mxu0 0.0
    %2422 = vmatpush1.msra.mxu0 %v2397
    %2423 = vmatprep.subr.mxu0 0.0
    %2424 = vmatpush1.msra.mxu0 %v2398
    %2425 = vmatprep.subr.mxu0 0.0
    %2426 = vmatpush1.msra.mxu0 %v2399
    %2427 = vmatprep.subr.mxu0 0.0
    %2428 = vmatpush1.msra.mxu0 %v2400
    %2429 = vmatprep.subr.mxu0 0.0
    %2430 = vmatpush1.msra.mxu0 %v2401
    %2431 = vmatprep.subr.mxu0 0.0
    %2432 = vmatpush1.msra.mxu0 0.0
    %2433 = vmatprep.subr.mxu0 0.0
    %2434 = vmatpush1.msra.mxu0 0.0
    %2435 = vmatprep.subr.mxu0 0.0
    %2436 = vmatpush1.msra.mxu0 0.0
    %2437 = vmatprep.subr.mxu0 0.0
    %2438 = vmatpush1.msra.mxu0 0.0
    %2439 = vmatprep.subr.mxu0 0.0
    %2440 = vmatpush1.msra.mxu0 0.0
    %2441 = vmatprep.subr.mxu0 0.0
    %2442 = vmatpush1.msra.mxu0 0.0
    %2443 = vmatprep.subr.mxu0 0.0
    %2444 = vmatpush1.msra.mxu0 0.0
    %2445 = vmatprep.subr.mxu0 0.0
    %2446 = vmatpush1.msra.mxu0 0.0
    %2447 = vmatprep.subr.mxu0 0.0
    %2448 = vmatpush1.msra.mxu0 0.0
    %2449 = vmatprep.subr.mxu0 0.0
    %2450 = vmatpush1.msra.mxu0 0.0
    %2451 = vmatprep.subr.mxu0 0.0
    %2452 = vmatpush1.msra.mxu0 0.0
    %2453 = vmatprep.subr.mxu0 0.0
    %2454 = vmatpush1.msra.mxu0 0.0
    %2455 = vmatprep.subr.mxu0 0.0
    %2456 = vmatpush1.msra.mxu0 0.0
    %2457 = vmatprep.subr.mxu0 0.0
    %2458 = vmatpush1.msra.mxu0 0.0
    %2459 = vmatprep.subr.mxu0 0.0
    %2460 = vmatpush1.msra.mxu0 0.0
    %2461 = vmatprep.subr.mxu0 0.0
    %2462 = vmatpush1.msra.mxu0 0.0
    %2463 = vmatprep.subr.mxu0 0.0
    %2464 = vmatpush1.msra.mxu0 0.0
    %2465 = vmatprep.subr.mxu0 0.0
    %2466 = vmatpush1.msra.mxu0 0.0
    %2467 = vmatprep.subr.mxu0 0.0
    %2468 = vmatpush1.msra.mxu0 0.0
    %2469 = vmatprep.subr.mxu0 0.0
    %2470 = vmatpush1.msra.mxu0 0.0
    %2471 = vmatprep.subr.mxu0 0.0
    %2472 = vmatpush1.msra.mxu0 0.0
    %2473 = vmatprep.subr.mxu0 0.0
    %2474 = vmatpush1.msra.mxu0 0.0
    %2475 = vmatprep.subr.mxu0 0.0
    %2476 = vmatpush1.msra.mxu0 0.0
    %2477 = vmatprep.subr.mxu0 0.0
    %2478 = vmatpush1.msra.mxu0 0.0
    %2479 = vmatprep.mubr.f32.mxu0 0.0
    %2480 = vmatmul.mubr.f32.gmra.mrb[0].mxu0 %v2410
    %v2481 = vpop.f32.mrb[0].mxu0
    %v2482 = vadd.f32 %v2407, %v2481
    %v2483 = vpop.f32.mrb[0].mxu0
    %2484 = vmatprep.mubr.f32.mxu0 0.0
    %2485 = vmatmul.mubr.f32.gmra.mrb[0].mxu0 %v2413
    %v2486 = vpop.f32.mrb[0].mxu0
    %v2487 = vadd.f32 %v2407, %v2486
    %v2488 = vpop.f32.mrb[0].mxu0
    %2489 = vdwg.mxu0
    %v2490 = vadd.f32 %v2298, %v2482
    %v2491 = vadd.f32 %v2299, %v2487
    %v2492 = vld [vmem:[%s59] sm:$0x1]
    %v2493 = vld [vmem:[%s61] sm:$0x1]
    %v2494 = vsel %vm289, %v2490, 0.0
    %2495 = vadd.xlane.f32.xlu0 %v2494
    %v2496 = vpop.xlane.xlu0 %2495
    %v2497 = vsel %vm1135, %v2491, 0.0
    %2498 = vadd.xlane.f32.xlu0 %v2497
    %v2499 = vpop.xlane.xlu0 %2498
    %v2500 = vmul.f32 %v2496, %v1139
    %v2501 = vmul.f32 %v2499, %v1139
    %v2502 = vsub.f32 %v2490, %v2500
    %v2503 = vsub.f32 %v2491, %v2501
    %v2504 = vmul.f32 %v2502, %v2502
    %v2505 = vmul.f32 %v2503, %v2503
    %v2506 = vsel %vm289, %v2504, 0.0
    %2507 = vadd.xlane.f32.xlu0 %v2506
    %v2508 = vpop.xlane.xlu0 %2507
    %v2509 = vsel %vm1135, %v2505, 0.0
    %2510 = vadd.xlane.f32.xlu0 %v2509
    %v2511 = vpop.xlane.xlu0 %2510
    %v2512 = vmul.f32 %v2508, %v1139
    %v2513 = vmul.f32 %v2511, %v1139
    %v2514 = vadd.f32 %v2512, 1e-05
    %v2515 = vadd.f32 %v2513, 1e-05
    %v2516 = vrsqrt.pop %v2514
    %v2517 = vrsqrt.pop %v2515
    %v2518 = vmul.f32 %v2502, %v2516
    %v2519 = vmul.f32 %v2503, %v2517
    %v2521 = vlaneseq
    %v2522 = vshrl.u32 %v2521, 7
    %v2523 = vsub.s32 0, %v2522
    %v2524 = vrot.slane %v2492, %v2523
    %v2526 = vmul.f32 %v2518, %v2524
    %v2527 = vmul.f32 %v2519, %v2524
    %v2529 = vlaneseq
    %v2530 = vshrl.u32 %v2529, 7
    %v2531 = vsub.s32 0, %v2530
    %v2532 = vrot.slane %v2493, %v2531
    %v2534 = vadd.f32 %v2526, %v2532
    %v2535 = vadd.f32 %v2527, %v2532
    %v2536 = vld [vmem:[%s63] sm:$0x1]
    %v2537 = vld [vmem:[%s65] sm:$0x1]
    %v2538 = vsel %vm289, %v2534, 0.0
    %2539 = vadd.xlane.f32.xlu0 %v2538
    %v2540 = vpop.xlane.xlu0 %2539
    %v2541 = vsel %vm1135, %v2535, 0.0
    %2542 = vadd.xlane.f32.xlu0 %v2541
    %v2543 = vpop.xlane.xlu0 %2542
    %v2544 = vmul.f32 %v2540, %v1139
    %v2545 = vmul.f32 %v2543, %v1139
    %v2546 = vsub.f32 %v2534, %v2544
    %v2547 = vsub.f32 %v2535, %v2545
    %v2548 = vmul.f32 %v2546, %v2546
    %v2549 = vmul.f32 %v2547, %v2547
    %v2550 = vsel %vm289, %v2548, 0.0
    %2551 = vadd.xlane.f32.xlu0 %v2550
    %v2552 = vpop.xlane.xlu0 %2551
    %v2553 = vsel %vm1135, %v2549, 0.0
    %2554 = vadd.xlane.f32.xlu0 %v2553
    %v2555 = vpop.xlane.xlu0 %2554
    %v2556 = vmul.f32 %v2552, %v1139
    %v2557 = vmul.f32 %v2555, %v1139
    %v2558 = vadd.f32 %v2556, 1e-05
    %v2559 = vadd.f32 %v2557, 1e-05
    %v2560 = vrsqrt.pop %v2558
    %v2561 = vrsqrt.pop %v2559
    %v2562 = vmul.f32 %v2546, %v2560
    %v2563 = vmul.f32 %v2547, %v2561
    %v2565 = vlaneseq
    %v2566 = vshrl.u32 %v2565, 7
    %v2567 = vsub.s32 0, %v2566
    %v2568 = vrot.slane %v2536, %v2567
    %v2570 = vmul.f32 %v2562, %v2568
    %v2571 = vmul.f32 %v2563, %v2568
    %v2573 = vlaneseq
    %v2574 = vshrl.u32 %v2573, 7
    %v2575 = vsub.s32 0, %v2574
    %v2576 = vrot.slane %v2537, %v2575
    %v2578 = vadd.f32 %v2570, %v2576
    %v2579 = vadd.f32 %v2571, %v2576
    %v2580 = vld [vmem:[%s67] sm:$0xff]
    %v2581 = vld [vmem:[%s67 + $0x8] sm:$0xff]
    %v2582 = vld [vmem:[%s67 + $0x10] sm:$0xff]
    %v2583 = vld [vmem:[%s67 + $0x18] sm:$0xff]
    %v2584 = vld [vmem:[%s69] sm:$0x1]
    %v2586 = vlaneseq
    %v2587 = vshrl.u32 %v2586, 7
    %v2588 = vsub.s32 0, %v2587
    %v2589 = vrot.slane %v2584, %v2588
    %v2592 = vsel %vm289, %v2578, 0
    %v2595 = vsel %vm289, %v2579, 0
    %2597 = vmatprep.subr.mxu0 0.0
    %2598 = vmatpush1.msra.mxu0 %v2580
    %2599 = vmatprep.subr.mxu0 0.0
    %2600 = vmatpush1.msra.mxu0 %v2581
    %2601 = vmatprep.subr.mxu0 0.0
    %2602 = vmatpush1.msra.mxu0 %v2582
    %2603 = vmatprep.subr.mxu0 0.0
    %2604 = vmatpush1.msra.mxu0 %v2583
    %2605 = vmatprep.subr.mxu0 0.0
    %2606 = vmatpush1.msra.mxu0 0.0
    %2607 = vmatprep.subr.mxu0 0.0
    %2608 = vmatpush1.msra.mxu0 0.0
    %2609 = vmatprep.subr.mxu0 0.0
    %2610 = vmatpush1.msra.mxu0 0.0
    %2611 = vmatprep.subr.mxu0 0.0
    %2612 = vmatpush1.msra.mxu0 0.0
    %2613 = vmatprep.subr.mxu0 0.0
    %2614 = vmatpush1.msra.mxu0 0.0
    %2615 = vmatprep.subr.mxu0 0.0
    %2616 = vmatpush1.msra.mxu0 0.0
    %2617 = vmatprep.subr.mxu0 0.0
    %2618 = vmatpush1.msra.mxu0 0.0
    %2619 = vmatprep.subr.mxu0 0.0
    %2620 = vmatpush1.msra.mxu0 0.0
    %2621 = vmatprep.subr.mxu0 0.0
    %2622 = vmatpush1.msra.mxu0 0.0
    %2623 = vmatprep.subr.mxu0 0.0
    %2624 = vmatpush1.msra.mxu0 0.0
    %2625 = vmatprep.subr.mxu0 0.0
    %2626 = vmatpush1.msra.mxu0 0.0
    %2627 = vmatprep.subr.mxu0 0.0
    %2628 = vmatpush1.msra.mxu0 0.0
    %2629 = vmatprep.subr.mxu0 0.0
    %2630 = vmatpush1.msra.mxu0 0.0
    %2631 = vmatprep.subr.mxu0 0.0
    %2632 = vmatpush1.msra.mxu0 0.0
    %2633 = vmatprep.subr.mxu0 0.0
    %2634 = vmatpush1.msra.mxu0 0.0
    %2635 = vmatprep.subr.mxu0 0.0
    %2636 = vmatpush1.msra.mxu0 0.0
    %2637 = vmatprep.subr.mxu0 0.0
    %2638 = vmatpush1.msra.mxu0 0.0
    %2639 = vmatprep.subr.mxu0 0.0
    %2640 = vmatpush1.msra.mxu0 0.0
    %2641 = vmatprep.subr.mxu0 0.0
    %2642 = vmatpush1.msra.mxu0 0.0
    %2643 = vmatprep.subr.mxu0 0.0
    %2644 = vmatpush1.msra.mxu0 0.0
    %2645 = vmatprep.subr.mxu0 0.0
    %2646 = vmatpush1.msra.mxu0 0.0
    %2647 = vmatprep.subr.mxu0 0.0
    %2648 = vmatpush1.msra.mxu0 0.0
    %2649 = vmatprep.subr.mxu0 0.0
    %2650 = vmatpush1.msra.mxu0 0.0
    %2651 = vmatprep.subr.mxu0 0.0
    %2652 = vmatpush1.msra.mxu0 0.0
    %2653 = vmatprep.subr.mxu0 0.0
    %2654 = vmatpush1.msra.mxu0 0.0
    %2655 = vmatprep.subr.mxu0 0.0
    %2656 = vmatpush1.msra.mxu0 0.0
    %2657 = vmatprep.subr.mxu0 0.0
    %2658 = vmatpush1.msra.mxu0 0.0
    %2659 = vmatprep.subr.mxu0 0.0
    %2660 = vmatpush1.msra.mxu0 0.0
    %2661 = vmatprep.mubr.f32.mxu0 0.0
    %2662 = vmatmul.mubr.f32.gmra.mrb[0].mxu0 %v2592
    %v2663 = vpop.f32.mrb[0].mxu0
    %v2664 = vadd.f32 %v2589, %v2663
    %v2665 = vpop.f32.mrb[0].mxu0
    %2666 = vmatprep.mubr.f32.mxu0 0.0
    %2667 = vmatmul.mubr.f32.gmra.mrb[0].mxu0 %v2595
    %v2668 = vpop.f32.mrb[0].mxu0
    %v2669 = vpop.f32.mrb[0].mxu0
    %2670 = vdwg.mxu0
    %vm2671 = vcmask 16384
    %2672 = vst.msk [vmem:[#allocation3] sm:$0x1] %vm2671, %v2664
    %vm2673 = vcmask 21509
    %2674 = vst.msk [vmem:[#allocation3 - $0x4] sm:$0x20] %vm2673, %v2664
    // Predicated region
    $region142: #{vit_forward.1} parent=1 // pred_check
      _
    $region143: #{vit_forward.1} parent=1 // pred_check_branch
      %2676 = sbr.rel (0) target = $region145
    $region144: #{vit_forward.1} parent=1 // pred_region
      %s2678 = ssub.s32 32, 32
      %2679 = vsyncadd [#allocation4], %s2678
      %s2681 = sshll.u32 [#allocation3], 4
      %s2682 = int_to_ptr.vmem [resolvable:$true] %s2681
      %2684 = dma.vmem_to_hbm [thread:$0]  %s2682, 32, %s71, [#allocation4]
    $region145: #{vit_forward.1} parent=1 // pred_fallthru
      _
    // Predicated region
    $region146: #{vit_forward.1} parent=1 // pred_check
      _
    $region147: #{vit_forward.1} parent=1 // pred_check_branch
      %2686 = sbr.rel (0) target = $region149
    $region148: #{vit_forward.1} parent=1 // pred_region
      %2687 = dma.done [#allocation4], 32
    $region149: #{vit_forward.1} parent=1 // pred_fallthru
      _
    %2688 = vsyncpa [#allocation4], 1

</llo_original>
